<compile_context>
chip_gen: v6e
topology: v6e:2x2x1
jax: 0.10.0
libtpu: 0.0.40
codegen_flags: <defaults>
</compile_context>

<pallas_src>
import jax
import jax.numpy as jnp
from jax import lax
from jax.experimental import pallas as pl
from jax.experimental.pallas import tpu as pltpu

# ---------------- static cell configuration (small, test-sized) -------------
B = 2              # batch
C = 8              # args.C   (channels)
L = 128            # args.L   (sequence length)
NODE_STEPS = 2
NODE_MULTIPLIER = 2
NUM_INPUT_NODES = 2
NUM_EDGES = sum(NUM_INPUT_NODES + i for i in range(NODE_STEPS))   # = 5
NUM_EDGE_PRIMS = 2   # ['none', 'skip']
NUM_NODE_PRIMS = 4   # ['Sum', 'ScaleDotAttn', 'LinearGLU', 'ConcatFC']
BN_EPS = 1e-5
LN_EPS = 1e-5


def node_cell_kernel(x_ref, y_ref, edge_w_ref, node_w_ref,
                     proj_w_ref, proj_b_ref, out_w_ref, out_b_ref,
                     ln_w_ref, ln_b_ref, o_ref):
    bb = x_ref.shape[0]                       # batch elements in this grid step

    # ---- hoisted scalar / parameter loads (shared across the batch loop) ----
    edge_skip = [edge_w_ref[e, 1] for e in range(NUM_EDGES)]           # 'skip' w
    node_w = [[node_w_ref[i, p] for p in range(NUM_NODE_PRIMS)]
              for i in range(NODE_STEPS)]
    proj_w = [proj_w_ref[i] for i in range(NODE_STEPS)]                # (3C, C)
    proj_b = [proj_b_ref[i] for i in range(NODE_STEPS)]                # (3C, 1)
    out_w = [out_w_ref[m] for m in range(NODE_MULTIPLIER)]             # (C, C)
    out_b = out_b_ref[...]                                             # (C, 1)
    ln_w = ln_w_ref[...]                                               # (C, L)
    ln_b = ln_b_ref[...]                                               # (C, L)

    inv_sqrt_c = 1.0 / (C ** 0.5)
    inv_n = 1.0 / (C * L)

    for b in range(bb):                       # tiny, fully unrolled
        x = x_ref[b]                          # (C, L)
        y = y_ref[b]                          # (C, L)
        states = [x, y]
        offset = 0

        for i in range(NODE_STEPS):
            # -- FusionMixedOp on every incoming edge:
            #    'none' -> 0, 'skip' -> h   =>   mixed = w_skip * h
            step_in = edge_skip[offset + 0] * states[0]
            for j in range(1, len(states)):
                step_in = step_in + edge_skip[offset + j] * states[j]

            a = step_in          # NodeMixedOp(step_in, step_in, w): a == b

            # -- Sum
            op_sum = 2.0 * a

            # -- ScaleDotAttn (q = a^T, k = v = a^T), contraction over the
            #    channel axis -- no transposes, all intermediates lane-dense.
            scores = lax.dot_general(
                a, a, (((0,), (0,)), ((), ())),
                preferred_element_type=jnp.float32) * inv_sqrt_c       # (L, L)
            m = jnp.max(scores, axis=-1, keepdims=True)
            e = jnp.exp(scores - m)
            attn = e * pl.reciprocal(jnp.sum(e, axis=-1, keepdims=True),
                                     approx=True)
            # op_attn[c, i] = sum_j a[c, j] * attn[i, j]
            op_attn = lax.dot_general(
                a, attn, (((1,), (1,)), ((), ())),
                preferred_element_type=jnp.float32)                    # (C, L)

            # -- LinearGLU + ConcatFC fused into ONE matmul.
            #    Since a == b:  W @ concat([a, a]) == (W[:, :C] + W[:, C:]) @ a.
            #    proj_w[i] rows = [GLU linear (C); GLU gate (C); FC (C)].
            h = jnp.dot(proj_w[i], a,
                        preferred_element_type=jnp.float32) + proj_b[i]   # (3C, L)
            op_glu = h[:C, :] * jax.nn.sigmoid(h[C:2 * C, :])             # (C, L)
            op_fc = jnp.maximum(h[2 * C:, :], 0.0)                        # (C, L)

            s = (node_w[i][0] * op_sum + node_w[i][1] * op_attn
                 + node_w[i][2] * op_glu + node_w[i][3] * op_fc)

            offset += len(states)
            states.append(s)

        # ---- output head --------------------------------------------------
        if NODE_MULTIPLIER != 1:
            # out_conv (1x1) + eval-mode BatchNorm1d folded into one affine
            # conv host-side; weight pre-split per concatenated state so no
            # concat is needed.  Then ReLU.  out_dropout = identity (eval).
            last_states = states[-NODE_MULTIPLIER:]
            out = out_b
            for m_idx in range(NODE_MULTIPLIER):
                out = out + jnp.dot(out_w[m_idx], last_states[m_idx],
                                    preferred_element_type=jnp.float32)
            out = jnp.maximum(out, 0.0)
        else:
            out = states[-1]

        out = out + x                         # residual (out += x)

        # ---- LayerNorm over [C, L], one-pass mean / variance ---------------
        mu = jnp.sum(out, axis=(0, 1), keepdims=True) * inv_n          # (1, 1)
        msq = jnp.sum(out * out, axis=(0, 1), keepdims=True) * inv_n   # (1, 1)
        var = msq - mu * mu
        out = (out - mu) * lax.rsqrt(var + LN_EPS)
        out = out * ln_w + ln_b
        # self.dropout is declared but unused in forward -> nothing to do.

        o_ref[b] = out


def _batch_block():
    """v7x has 2 TensorCores per chip -> keep a parallel batch grid there;
    v5e/v6e have 1 TC -> fold the whole batch into a single grid step."""
    try:
        kind = jax.devices()[0].device_kind.lower()
    except Exception:
        return B
    if "7" in kind and B > 1:
        return 1
    return B


def node_cell_forward(x, y, edge_weights, node_weights, params):
    """x, y: (B, C, L) f32.  edge_weights: (NUM_EDGES, 2).  node_weights: (steps, 4)."""
    # ---- host-side (exact) parameter folding --------------------------------
    glu_w = params["glu_w"]                              # (steps, 2C, 2C)
    glu_b = params["glu_b"]                              # (steps, 2C)
    fc_w = params["fc_w"]                                # (steps, C, 2C)
    fc_b = params["fc_b"]                                # (steps, C)

    # a == b folding of the channel concat.
    glu_w_f = glu_w[:, :, :C] + glu_w[:, :, C:]          # (steps, 2C, C)
    fc_w_f = fc_w[:, :, :C] + fc_w[:, :, C:]             # (steps, C, C)
    proj_w = jnp.concatenate([glu_w_f, fc_w_f], axis=1)  # (steps, 3C, C)
    proj_b = jnp.concatenate([glu_b, fc_b], axis=1)[..., None]   # (steps, 3C, 1)

    # Fold eval-mode BatchNorm1d into the 1x1 out_conv (exact).
    bn = params["bn"]                                    # (4, C): gamma, beta, mean, var
    scale = bn[0] * lax.rsqrt(bn[3] + BN_EPS)            # (C,)
    out_w_eff = scale[:, None] * params["out_w"]         # (C, mult*C)
    out_b_eff = (scale * (params["out_b"][0] - bn[2]) + bn[1])[:, None]   # (C, 1)
    out_w_split = jnp.transpose(
        out_w_eff.reshape(C, NODE_MULTIPLIER, C), (1, 0, 2))              # (mult, C, C)

    # ---- grid / specs --------------------------------------------------------
    bb = _batch_block()
    grid = (B // bb,)

    smem = pl.BlockSpec(memory_space=pltpu.SMEM)
    full = lambda a: pl.BlockSpec(a.shape, lambda i, _n=a.ndim: (0,) * _n)
    batched = pl.BlockSpec((bb, C, L), lambda i: (i, 0, 0))

    in_specs = [
        batched,                  # x
        batched,                  # y
        smem,                     # edge_weights
        smem,                     # node_weights
        full(proj_w),
        full(proj_b),
        full(out_w_split),
        full(out_b_eff),
        full(params["ln_w"]),
        full(params["ln_b"]),
    ]
    out_spec = pl.BlockSpec((bb, C, L), lambda i: (i, 0, 0))

    return pl.pallas_call(
        node_cell_kernel,
        out_shape=jax.ShapeDtypeStruct((B, C, L), jnp.float32),
        grid=grid,
        in_specs=in_specs,
        out_specs=out_spec,
        compiler_params=pltpu.CompilerParams(
            dimension_semantics=("parallel",)),
    )(x, y, edge_weights, node_weights,
      proj_w, proj_b, out_w_split, out_b_eff,
      params["ln_w"], params["ln_b"])


def init_params(key):
    ks = jax.random.split(key, 6)
    scale = 0.1
    params = {
        # per-step NodeMixedOp parameters (stacked over steps)
        "glu_w": scale * jax.random.normal(ks[0], (NODE_STEPS, 2 * C, 2 * C), jnp.float32),
        "glu_b": scale * jax.random.normal(ks[1], (NODE_STEPS, 2 * C), jnp.float32),
        "fc_w": scale * jax.random.normal(ks[2], (NODE_STEPS, C, 2 * C), jnp.float32),
        "fc_b": scale * jax.random.normal(ks[3], (NODE_STEPS, C), jnp.float32),
        # out_conv (1x1 Conv1d: mult*C -> C)
        "out_w": scale * jax.random.normal(ks[4], (C, NODE_MULTIPLIER * C), jnp.float32),
        "out_b": scale * jax.random.normal(ks[5], (1, C), jnp.float32),
        # BatchNorm1d: [gamma, beta, running_mean, running_var]
        "bn": jnp.stack([jnp.ones((C,), jnp.float32),
                         jnp.zeros((C,), jnp.float32),
                         jnp.zeros((C,), jnp.float32),
                         jnp.ones((C,), jnp.float32)], axis=0),
        # LayerNorm([C, L])
        "ln_w": jnp.ones((C, L), jnp.float32),
        "ln_b": jnp.zeros((C, L), jnp.float32),
    }
    return params


if __name__ == "__main__":
    key = jax.random.PRNGKey(0)
    kx, ky, ke, kn, kp = jax.random.split(key, 5)

    x = jax.random.normal(kx, (B, C, L), jnp.float32)
    y = jax.random.normal(ky, (B, C, L), jnp.float32)

    # DARTS-style architecture weights (softmax over candidate ops).
    edge_weights = jax.nn.softmax(
        jax.random.normal(ke, (NUM_EDGES, NUM_EDGE_PRIMS), jnp.float32), axis=-1)
    node_weights = jax.nn.softmax(
        jax.random.normal(kn, (NODE_STEPS, NUM_NODE_PRIMS), jnp.float32), axis=-1)

    params = init_params(kp)

    out = node_cell_forward(x, y, edge_weights, node_weights, params)
    out = jax.block_until_ready(out)

    assert out.shape == (B, C, L), out.shape
    assert bool(jnp.all(jnp.isfinite(out)))
    print("KERNEL_OK")
</pallas_src>

<mosaic_0001>
module attributes {stable_mosaic.version = 11 : i64} {
  func.func @node_cell_kernel(%arg0: i32, %arg1: memref<2x8x128xf32, #tpu.memory_space<vmem>>, %arg2: memref<2x8x128xf32, #tpu.memory_space<vmem>>, %arg3: memref<5x2xf32, #tpu.memory_space<smem>>, %arg4: memref<2x4xf32, #tpu.memory_space<smem>>, %arg5: memref<2x24x8xf32, #tpu.memory_space<vmem>>, %arg6: memref<2x24x1xf32, #tpu.memory_space<vmem>>, %arg7: memref<2x8x8xf32, #tpu.memory_space<vmem>>, %arg8: memref<8x1xf32, #tpu.memory_space<vmem>>, %arg9: memref<8x128xf32, #tpu.memory_space<vmem>>, %arg10: memref<8x128xf32, #tpu.memory_space<vmem>>, %arg11: memref<2x8x128xf32, #tpu.memory_space<vmem>>) attributes {dimension_semantics = [#tpu.dimension_semantics<parallel>], iteration_bounds = array<i64: 1>, scalar_prefetch = 0 : i64, scratch_operands = 0 : i64, tpu.core_type = #tpu.core_type<tc>, window_params = [{transform_indices = @transform_0, window_bounds = array<i64: 2, 8, 128>}, {transform_indices = @transform_1, window_bounds = array<i64: 2, 8, 128>}, {transform_indices = @transform_2, window_bounds = array<i64: 5, 2>}, {transform_indices = @transform_3, window_bounds = array<i64: 2, 4>}, {pipeline_mode = #tpu.pipeline_mode<synchronous>, transform_indices = @transform_4, window_bounds = array<i64: 2, 24, 8>}, {pipeline_mode = #tpu.pipeline_mode<synchronous>, transform_indices = @transform_5, window_bounds = array<i64: 2, 24, 1>}, {pipeline_mode = #tpu.pipeline_mode<synchronous>, transform_indices = @transform_6, window_bounds = array<i64: 2, 8, 8>}, {pipeline_mode = #tpu.pipeline_mode<synchronous>, transform_indices = @transform_7, window_bounds = array<i64: 8, 1>}, {pipeline_mode = #tpu.pipeline_mode<synchronous>, transform_indices = @transform_8, window_bounds = array<i64: 8, 128>}, {pipeline_mode = #tpu.pipeline_mode<synchronous>, transform_indices = @transform_9, window_bounds = array<i64: 8, 128>}, {transform_indices = @transform_10, window_bounds = array<i64: 2, 8, 128>}]} {
    %c0 = arith.constant 0 : index
    %c1 = arith.constant 1 : index
    %0 = memref.load %arg3[%c0, %c1] : memref<5x2xf32, #tpu.memory_space<smem>>
    %c1_0 = arith.constant 1 : index
    %c1_1 = arith.constant 1 : index
    %1 = memref.load %arg3[%c1_0, %c1_1] : memref<5x2xf32, #tpu.memory_space<smem>>
    %c2 = arith.constant 2 : index
    %c1_2 = arith.constant 1 : index
    %2 = memref.load %arg3[%c2, %c1_2] : memref<5x2xf32, #tpu.memory_space<smem>>
    %c3 = arith.constant 3 : index
    %c1_3 = arith.constant 1 : index
    %3 = memref.load %arg3[%c3, %c1_3] : memref<5x2xf32, #tpu.memory_space<smem>>
    %c4 = arith.constant 4 : index
    %c1_4 = arith.constant 1 : index
    %4 = memref.load %arg3[%c4, %c1_4] : memref<5x2xf32, #tpu.memory_space<smem>>
    %c0_5 = arith.constant 0 : index
    %c0_6 = arith.constant 0 : index
    %5 = memref.load %arg4[%c0_5, %c0_6] : memref<2x4xf32, #tpu.memory_space<smem>>
    %c0_7 = arith.constant 0 : index
    %c1_8 = arith.constant 1 : index
    %6 = memref.load %arg4[%c0_7, %c1_8] : memref<2x4xf32, #tpu.memory_space<smem>>
    %c0_9 = arith.constant 0 : index
    %c2_10 = arith.constant 2 : index
    %7 = memref.load %arg4[%c0_9, %c2_10] : memref<2x4xf32, #tpu.memory_space<smem>>
    %c0_11 = arith.constant 0 : index
    %c3_12 = arith.constant 3 : index
    %8 = memref.load %arg4[%c0_11, %c3_12] : memref<2x4xf32, #tpu.memory_space<smem>>
    %c1_13 = arith.constant 1 : index
    %c0_14 = arith.constant 0 : index
    %9 = memref.load %arg4[%c1_13, %c0_14] : memref<2x4xf32, #tpu.memory_space<smem>>
    %c1_15 = arith.constant 1 : index
    %c1_16 = arith.constant 1 : index
    %10 = memref.load %arg4[%c1_15, %c1_16] : memref<2x4xf32, #tpu.memory_space<smem>>
    %c1_17 = arith.constant 1 : index
    %c2_18 = arith.constant 2 : index
    %11 = memref.load %arg4[%c1_17, %c2_18] : memref<2x4xf32, #tpu.memory_space<smem>>
    %c1_19 = arith.constant 1 : index
    %c3_20 = arith.constant 3 : index
    %12 = memref.load %arg4[%c1_19, %c3_20] : memref<2x4xf32, #tpu.memory_space<smem>>
    %c0_21 = arith.constant 0 : index
    %c0_22 = arith.constant 0 : index
    %c0_23 = arith.constant 0 : index
    %13 = vector.load %arg5[%c0_21, %c0_22, %c0_23] : memref<2x24x8xf32, #tpu.memory_space<vmem>>, vector<1x24x8xf32>
    %14 = vector.shape_cast %13 : vector<1x24x8xf32> to vector<24x8xf32>
    %c1_24 = arith.constant 1 : index
    %c0_25 = arith.constant 0 : index
    %c0_26 = arith.constant 0 : index
    %15 = vector.load %arg5[%c1_24, %c0_25, %c0_26] : memref<2x24x8xf32, #tpu.memory_space<vmem>>, vector<1x24x8xf32>
    %16 = vector.shape_cast %15 : vector<1x24x8xf32> to vector<24x8xf32>
    %c0_27 = arith.constant 0 : index
    %c0_28 = arith.constant 0 : index
    %c0_29 = arith.constant 0 : index
    %17 = vector.load %arg6[%c0_27, %c0_28, %c0_29] : memref<2x24x1xf32, #tpu.memory_space<vmem>>, vector<1x24x1xf32>
    %18 = vector.shape_cast %17 : vector<1x24x1xf32> to vector<24x1xf32>
    %c1_30 = arith.constant 1 : index
    %c0_31 = arith.constant 0 : index
    %c0_32 = arith.constant 0 : index
    %19 = vector.load %arg6[%c1_30, %c0_31, %c0_32] : memref<2x24x1xf32, #tpu.memory_space<vmem>>, vector<1x24x1xf32>
    %20 = vector.shape_cast %19 : vector<1x24x1xf32> to vector<24x1xf32>
    %c0_33 = arith.constant 0 : index
    %c0_34 = arith.constant 0 : index
    %c0_35 = arith.constant 0 : index
    %21 = vector.load %arg7[%c0_33, %c0_34, %c0_35] : memref<2x8x8xf32, #tpu.memory_space<vmem>>, vector<1x8x8xf32>
    %22 = vector.shape_cast %21 : vector<1x8x8xf32> to vector<8x8xf32>
    %c1_36 = arith.constant 1 : index
    %c0_37 = arith.constant 0 : index
    %c0_38 = arith.constant 0 : index
    %23 = vector.load %arg7[%c1_36, %c0_37, %c0_38] : memref<2x8x8xf32, #tpu.memory_space<vmem>>, vector<1x8x8xf32>
    %24 = vector.shape_cast %23 : vector<1x8x8xf32> to vector<8x8xf32>
    %c0_39 = arith.constant 0 : index
    %c0_40 = arith.constant 0 : index
    %25 = vector.load %arg8[%c0_39, %c0_40] : memref<8x1xf32, #tpu.memory_space<vmem>>, vector<8x1xf32>
    %c0_41 = arith.constant 0 : index
    %c0_42 = arith.constant 0 : index
    %26 = vector.load %arg9[%c0_41, %c0_42] : memref<8x128xf32, #tpu.memory_space<vmem>>, vector<8x128xf32>
    %c0_43 = arith.constant 0 : index
    %c0_44 = arith.constant 0 : index
    %27 = vector.load %arg10[%c0_43, %c0_44] : memref<8x128xf32, #tpu.memory_space<vmem>>, vector<8x128xf32>
    %c0_45 = arith.constant 0 : index
    %c0_46 = arith.constant 0 : index
    %c0_47 = arith.constant 0 : index
    %28 = vector.load %arg1[%c0_45, %c0_46, %c0_47] : memref<2x8x128xf32, #tpu.memory_space<vmem>>, vector<1x8x128xf32>
    %29 = vector.shape_cast %28 : vector<1x8x128xf32> to vector<8x128xf32>
    %c0_48 = arith.constant 0 : index
    %c0_49 = arith.constant 0 : index
    %c0_50 = arith.constant 0 : index
    %30 = vector.load %arg2[%c0_48, %c0_49, %c0_50] : memref<2x8x128xf32, #tpu.memory_space<vmem>>, vector<1x8x128xf32>
    %31 = vector.shape_cast %30 : vector<1x8x128xf32> to vector<8x128xf32>
    %32 = vector.broadcast %0 : f32 to vector<8x128xf32>
    %33 = arith.mulf %32, %29 : vector<8x128xf32>
    %34 = vector.broadcast %1 : f32 to vector<8x128xf32>
    %35 = arith.mulf %34, %31 : vector<8x128xf32>
    %36 = arith.addf %33, %35 : vector<8x128xf32>
    %cst = arith.constant 2.000000e+00 : f32
    %37 = vector.broadcast %cst : f32 to vector<8x128xf32>
    %38 = arith.mulf %37, %36 : vector<8x128xf32>
    %cst_51 = arith.constant dense<0.000000e+00> : vector<128x128xf32>
    %39 = tpu.matmul %36, %36, %cst_51 {dimension_numbers = #tpu.dot_dimension_numbers<[0], [0], [1], [1], [0, 1, 1, 1], [], []>} : vector<8x128xf32>, vector<8x128xf32>, vector<128x128xf32> -> vector<128x128xf32>
    %cst_52 = arith.constant 0.353553385 : f32
    %40 = vector.broadcast %cst_52 : f32 to vector<128x128xf32>
    %41 = arith.mulf %39, %40 : vector<128x128xf32>
    %cst_53 = arith.constant dense<0xFF800000> : vector<128xf32>
    %42 = vector.multi_reduction <maximumf>, %41, %cst_53 [1] : vector<128x128xf32> to vector<128xf32>
    %43 = vector.shape_cast %42 : vector<128xf32> to vector<128x1xf32>
    %44 = vector.broadcast %43 : vector<128x1xf32> to vector<128x128xf32>
    %45 = arith.subf %41, %44 : vector<128x128xf32>
    %46 = math.exp %45 : vector<128x128xf32>
    %cst_54 = arith.constant dense<0.000000e+00> : vector<128xf32>
    %47 = vector.multi_reduction <add>, %46, %cst_54 [1] : vector<128x128xf32> to vector<128xf32>
    %48 = vector.shape_cast %47 : vector<128xf32> to vector<128x1xf32>
    %49 = tpu.reciprocal %48 {approx = true} : vector<128x1xf32> -> vector<128x1xf32>
    %50 = vector.broadcast %49 : vector<128x1xf32> to vector<128x128xf32>
    %51 = arith.mulf %46, %50 : vector<128x128xf32>
    %cst_55 = arith.constant dense<0.000000e+00> : vector<8x128xf32>
    %52 = tpu.matmul %36, %51, %cst_55 {dimension_numbers = #tpu.dot_dimension_numbers<[1], [1], [0], [0], [0, 0, 1, 0], [], []>} : vector<8x128xf32>, vector<128x128xf32>, vector<8x128xf32> -> vector<8x128xf32>
    %cst_56 = arith.constant dense<0.000000e+00> : vector<24x128xf32>
    %53 = tpu.matmul %14, %36, %cst_56 {dimension_numbers = #tpu.dot_dimension_numbers<[1], [0], [0], [1], [0, 0, 1, 1], [], []>} : vector<24x8xf32>, vector<8x128xf32>, vector<24x128xf32> -> vector<24x128xf32>
    %54 = vector.broadcast %18 : vector<24x1xf32> to vector<24x128xf32>
    %55 = arith.addf %53, %54 : vector<24x128xf32>
    %56 = vector.extract_strided_slice %55 {offsets = [0, 0], sizes = [8, 128], strides = [1, 1]} : vector<24x128xf32> to vector<8x128xf32>
    %57 = vector.extract_strided_slice %55 {offsets = [8, 0], sizes = [8, 128], strides = [1, 1]} : vector<24x128xf32> to vector<8x128xf32>
    %58 = arith.negf %57 : vector<8x128xf32>
    %59 = math.exp %58 : vector<8x128xf32>
    %cst_57 = arith.constant 1.000000e+00 : f32
    %60 = vector.broadcast %cst_57 : f32 to vector<8x128xf32>
    %61 = arith.addf %60, %59 : vector<8x128xf32>
    %62 = arith.divf %60, %61 : vector<8x128xf32>
    %63 = arith.mulf %56, %62 : vector<8x128xf32>
    %64 = vector.extract_strided_slice %55 {offsets = [16, 0], sizes = [8, 128], strides = [1, 1]} : vector<24x128xf32> to vector<8x128xf32>
    %cst_58 = arith.constant 0.000000e+00 : f32
    %65 = vector.broadcast %cst_58 : f32 to vector<8x128xf32>
    %66 = arith.maximumf %64, %65 : vector<8x128xf32>
    %67 = vector.broadcast %5 : f32 to vector<8x128xf32>
    %68 = arith.mulf %67, %38 : vector<8x128xf32>
    %69 = vector.broadcast %6 : f32 to vector<8x128xf32>
    %70 = arith.mulf %69, %52 : vector<8x128xf32>
    %71 = arith.addf %68, %70 : vector<8x128xf32>
    %72 = vector.broadcast %7 : f32 to vector<8x128xf32>
    %73 = arith.mulf %72, %63 : vector<8x128xf32>
    %74 = arith.addf %71, %73 : vector<8x128xf32>
    %75 = vector.broadcast %8 : f32 to vector<8x128xf32>
    %76 = arith.mulf %75, %66 : vector<8x128xf32>
    %77 = arith.addf %74, %76 : vector<8x128xf32>
    %78 = vector.broadcast %2 : f32 to vector<8x128xf32>
    %79 = arith.mulf %78, %29 : vector<8x128xf32>
    %80 = vector.broadcast %3 : f32 to vector<8x128xf32>
    %81 = arith.mulf %80, %31 : vector<8x128xf32>
    %82 = arith.addf %79, %81 : vector<8x128xf32>
    %83 = vector.broadcast %4 : f32 to vector<8x128xf32>
    %84 = arith.mulf %83, %77 : vector<8x128xf32>
    %85 = arith.addf %82, %84 : vector<8x128xf32>
    %cst_59 = arith.constant 2.000000e+00 : f32
    %86 = vector.broadcast %cst_59 : f32 to vector<8x128xf32>
    %87 = arith.mulf %86, %85 : vector<8x128xf32>
    %cst_60 = arith.constant dense<0.000000e+00> : vector<128x128xf32>
    %88 = tpu.matmul %85, %85, %cst_60 {dimension_numbers = #tpu.dot_dimension_numbers<[0], [0], [1], [1], [0, 1, 1, 1], [], []>} : vector<8x128xf32>, vector<8x128xf32>, vector<128x128xf32> -> vector<128x128xf32>
    %cst_61 = arith.constant 0.353553385 : f32
    %89 = vector.broadcast %cst_61 : f32 to vector<128x128xf32>
    %90 = arith.mulf %88, %89 : vector<128x128xf32>
    %cst_62 = arith.constant dense<0xFF800000> : vector<128xf32>
    %91 = vector.multi_reduction <maximumf>, %90, %cst_62 [1] : vector<128x128xf32> to vector<128xf32>
    %92 = vector.shape_cast %91 : vector<128xf32> to vector<128x1xf32>
    %93 = vector.broadcast %92 : vector<128x1xf32> to vector<128x128xf32>
    %94 = arith.subf %90, %93 : vector<128x128xf32>
    %95 = math.exp %94 : vector<128x128xf32>
    %cst_63 = arith.constant dense<0.000000e+00> : vector<128xf32>
    %96 = vector.multi_reduction <add>, %95, %cst_63 [1] : vector<128x128xf32> to vector<128xf32>
    %97 = vector.shape_cast %96 : vector<128xf32> to vector<128x1xf32>
    %98 = tpu.reciprocal %97 {approx = true} : vector<128x1xf32> -> vector<128x1xf32>
    %99 = vector.broadcast %98 : vector<128x1xf32> to vector<128x128xf32>
    %100 = arith.mulf %95, %99 : vector<128x128xf32>
    %cst_64 = arith.constant dense<0.000000e+00> : vector<8x128xf32>
    %101 = tpu.matmul %85, %100, %cst_64 {dimension_numbers = #tpu.dot_dimension_numbers<[1], [1], [0], [0], [0, 0, 1, 0], [], []>} : vector<8x128xf32>, vector<128x128xf32>, vector<8x128xf32> -> vector<8x128xf32>
    %cst_65 = arith.constant dense<0.000000e+00> : vector<24x128xf32>
    %102 = tpu.matmul %16, %85, %cst_65 {dimension_numbers = #tpu.dot_dimension_numbers<[1], [0], [0], [1], [0, 0, 1, 1], [], []>} : vector<24x8xf32>, vector<8x128xf32>, vector<24x128xf32> -> vector<24x128xf32>
    %103 = vector.broadcast %20 : vector<24x1xf32> to vector<24x128xf32>
    %104 = arith.addf %102, %103 : vector<24x128xf32>
    %105 = vector.extract_strided_slice %104 {offsets = [0, 0], sizes = [8, 128], strides = [1, 1]} : vector<24x128xf32> to vector<8x128xf32>
    %106 = vector.extract_strided_slice %104 {offsets = [8, 0], sizes = [8, 128], strides = [1, 1]} : vector<24x128xf32> to vector<8x128xf32>
    %107 = arith.negf %106 : vector<8x128xf32>
    %108 = math.exp %107 : vector<8x128xf32>
    %cst_66 = arith.constant 1.000000e+00 : f32
    %109 = vector.broadcast %cst_66 : f32 to vector<8x128xf32>
    %110 = arith.addf %109, %108 : vector<8x128xf32>
    %111 = arith.divf %109, %110 : vector<8x128xf32>
    %112 = arith.mulf %105, %111 : vector<8x128xf32>
    %113 = vector.extract_strided_slice %104 {offsets = [16, 0], sizes = [8, 128], strides = [1, 1]} : vector<24x128xf32> to vector<8x128xf32>
    %cst_67 = arith.constant 0.000000e+00 : f32
    %114 = vector.broadcast %cst_67 : f32 to vector<8x128xf32>
    %115 = arith.maximumf %113, %114 : vector<8x128xf32>
    %116 = vector.broadcast %9 : f32 to vector<8x128xf32>
    %117 = arith.mulf %116, %87 : vector<8x128xf32>
    %118 = vector.broadcast %10 : f32 to vector<8x128xf32>
    %119 = arith.mulf %118, %101 : vector<8x128xf32>
    %120 = arith.addf %117, %119 : vector<8x128xf32>
    %121 = vector.broadcast %11 : f32 to vector<8x128xf32>
    %122 = arith.mulf %121, %112 : vector<8x128xf32>
    %123 = arith.addf %120, %122 : vector<8x128xf32>
    %124 = vector.broadcast %12 : f32 to vector<8x128xf32>
    %125 = arith.mulf %124, %115 : vector<8x128xf32>
    %126 = arith.addf %123, %125 : vector<8x128xf32>
    %cst_68 = arith.constant dense<0.000000e+00> : vector<8x128xf32>
    %127 = tpu.matmul %22, %77, %cst_68 {dimension_numbers = #tpu.dot_dimension_numbers<[1], [0], [0], [1], [0, 0, 1, 1], [], []>} : vector<8x8xf32>, vector<8x128xf32>, vector<8x128xf32> -> vector<8x128xf32>
    %128 = vector.broadcast %25 : vector<8x1xf32> to vector<8x128xf32>
    %129 = arith.addf %128, %127 : vector<8x128xf32>
    %cst_69 = arith.constant dense<0.000000e+00> : vector<8x128xf32>
    %130 = tpu.matmul %24, %126, %cst_69 {dimension_numbers = #tpu.dot_dimension_numbers<[1], [0], [0], [1], [0, 0, 1, 1], [], []>} : vector<8x8xf32>, vector<8x128xf32>, vector<8x128xf32> -> vector<8x128xf32>
    %131 = arith.addf %129, %130 : vector<8x128xf32>
    %cst_70 = arith.constant 0.000000e+00 : f32
    %132 = vector.broadcast %cst_70 : f32 to vector<8x128xf32>
    %133 = arith.maximumf %131, %132 : vector<8x128xf32>
    %134 = arith.addf %133, %29 : vector<8x128xf32>
    %135 = vector.shape_cast %134 : vector<8x128xf32> to vector<1x8x128xf32>
    %cst_71 = arith.constant dense<0.000000e+00> : vector<1xf32>
    %136 = vector.multi_reduction <add>, %135, %cst_71 [1, 2] : vector<1x8x128xf32> to vector<1xf32>
    %137 = vector.shape_cast %136 : vector<1xf32> to vector<1x1x1xf32>
    %138 = vector.extract %137[0, 0, 0] : f32 from vector<1x1x1xf32>
    %139 = vector.broadcast %138 : f32 to vector<1x1xf32>
    %cst_72 = arith.constant 9.765625E-4 : f32
    %140 = vector.broadcast %cst_72 : f32 to vector<1x1xf32>
    %141 = arith.mulf %139, %140 : vector<1x1xf32>
    %142 = arith.mulf %134, %134 : vector<8x128xf32>
    %143 = vector.shape_cast %142 : vector<8x128xf32> to vector<1x8x128xf32>
    %cst_73 = arith.constant dense<0.000000e+00> : vector<1xf32>
    %144 = vector.multi_reduction <add>, %143, %cst_73 [1, 2] : vector<1x8x128xf32> to vector<1xf32>
    %145 = vector.shape_cast %144 : vector<1xf32> to vector<1x1x1xf32>
    %146 = vector.extract %145[0, 0, 0] : f32 from vector<1x1x1xf32>
    %147 = vector.broadcast %146 : f32 to vector<1x1xf32>
    %cst_74 = arith.constant 9.765625E-4 : f32
    %148 = vector.broadcast %cst_74 : f32 to vector<1x1xf32>
    %149 = arith.mulf %147, %148 : vector<1x1xf32>
    %150 = arith.mulf %141, %141 : vector<1x1xf32>
    %151 = arith.subf %149, %150 : vector<1x1xf32>
    %152 = vector.broadcast %141 : vector<1x1xf32> to vector<8x128xf32>
    %153 = arith.subf %134, %152 : vector<8x128xf32>
    %cst_75 = arith.constant 9.99999974E-6 : f32
    %154 = vector.broadcast %cst_75 : f32 to vector<1x1xf32>
    %155 = arith.addf %151, %154 : vector<1x1xf32>
    %156 = math.rsqrt %155 : vector<1x1xf32>
    %157 = vector.broadcast %156 : vector<1x1xf32> to vector<8x128xf32>
    %158 = arith.mulf %153, %157 : vector<8x128xf32>
    %159 = arith.mulf %158, %26 : vector<8x128xf32>
    %160 = arith.addf %159, %27 : vector<8x128xf32>
    %c0_76 = arith.constant 0 : index
    %c0_77 = arith.constant 0 : index
    %c0_78 = arith.constant 0 : index
    %161 = vector.load %arg11[%c0_76, %c0_77, %c0_78] : memref<2x8x128xf32, #tpu.memory_space<vmem>>, vector<1x8x128xf32>
    %162 = vector.shape_cast %161 : vector<1x8x128xf32> to vector<8x128xf32>
    %163 = vector.shape_cast %160 : vector<8x128xf32> to vector<1x8x128xf32>
    tpu.vector_store %arg11[%c0_76, %c0_77, %c0_78], %163 {strides = array<i32>} : memref<2x8x128xf32, #tpu.memory_space<vmem>>, vector<1x8x128xf32>,
    %c1_79 = arith.constant 1 : index
    %c0_80 = arith.constant 0 : index
    %c0_81 = arith.constant 0 : index
    %164 = vector.load %arg1[%c1_79, %c0_80, %c0_81] : memref<2x8x128xf32, #tpu.memory_space<vmem>>, vector<1x8x128xf32>
    %165 = vector.shape_cast %164 : vector<1x8x128xf32> to vector<8x128xf32>
    %c1_82 = arith.constant 1 : index
    %c0_83 = arith.constant 0 : index
    %c0_84 = arith.constant 0 : index
    %166 = vector.load %arg2[%c1_82, %c0_83, %c0_84] : memref<2x8x128xf32, #tpu.memory_space<vmem>>, vector<1x8x128xf32>
    %167 = vector.shape_cast %166 : vector<1x8x128xf32> to vector<8x128xf32>
    %168 = vector.broadcast %0 : f32 to vector<8x128xf32>
    %169 = arith.mulf %168, %165 : vector<8x128xf32>
    %170 = vector.broadcast %1 : f32 to vector<8x128xf32>
    %171 = arith.mulf %170, %167 : vector<8x128xf32>
    %172 = arith.addf %169, %171 : vector<8x128xf32>
    %cst_85 = arith.constant 2.000000e+00 : f32
    %173 = vector.broadcast %cst_85 : f32 to vector<8x128xf32>
    %174 = arith.mulf %173, %172 : vector<8x128xf32>
    %cst_86 = arith.constant dense<0.000000e+00> : vector<128x128xf32>
    %175 = tpu.matmul %172, %172, %cst_86 {dimension_numbers = #tpu.dot_dimension_numbers<[0], [0], [1], [1], [0, 1, 1, 1], [], []>} : vector<8x128xf32>, vector<8x128xf32>, vector<128x128xf32> -> vector<128x128xf32>
    %cst_87 = arith.constant 0.353553385 : f32
    %176 = vector.broadcast %cst_87 : f32 to vector<128x128xf32>
    %177 = arith.mulf %175, %176 : vector<128x128xf32>
    %cst_88 = arith.constant dense<0xFF800000> : vector<128xf32>
    %178 = vector.multi_reduction <maximumf>, %177, %cst_88 [1] : vector<128x128xf32> to vector<128xf32>
    %179 = vector.shape_cast %178 : vector<128xf32> to vector<128x1xf32>
    %180 = vector.broadcast %179 : vector<128x1xf32> to vector<128x128xf32>
    %181 = arith.subf %177, %180 : vector<128x128xf32>
    %182 = math.exp %181 : vector<128x128xf32>
    %cst_89 = arith.constant dense<0.000000e+00> : vector<128xf32>
    %183 = vector.multi_reduction <add>, %182, %cst_89 [1] : vector<128x128xf32> to vector<128xf32>
    %184 = vector.shape_cast %183 : vector<128xf32> to vector<128x1xf32>
    %185 = tpu.reciprocal %184 {approx = true} : vector<128x1xf32> -> vector<128x1xf32>
    %186 = vector.broadcast %185 : vector<128x1xf32> to vector<128x128xf32>
    %187 = arith.mulf %182, %186 : vector<128x128xf32>
    %cst_90 = arith.constant dense<0.000000e+00> : vector<8x128xf32>
    %188 = tpu.matmul %172, %187, %cst_90 {dimension_numbers = #tpu.dot_dimension_numbers<[1], [1], [0], [0], [0, 0, 1, 0], [], []>} : vector<8x128xf32>, vector<128x128xf32>, vector<8x128xf32> -> vector<8x128xf32>
    %cst_91 = arith.constant dense<0.000000e+00> : vector<24x128xf32>
    %189 = tpu.matmul %14, %172, %cst_91 {dimension_numbers = #tpu.dot_dimension_numbers<[1], [0], [0], [1], [0, 0, 1, 1], [], []>} : vector<24x8xf32>, vector<8x128xf32>, vector<24x128xf32> -> vector<24x128xf32>
    %190 = vector.broadcast %18 : vector<24x1xf32> to vector<24x128xf32>
    %191 = arith.addf %189, %190 : vector<24x128xf32>
    %192 = vector.extract_strided_slice %191 {offsets = [0, 0], sizes = [8, 128], strides = [1, 1]} : vector<24x128xf32> to vector<8x128xf32>
    %193 = vector.extract_strided_slice %191 {offsets = [8, 0], sizes = [8, 128], strides = [1, 1]} : vector<24x128xf32> to vector<8x128xf32>
    %194 = arith.negf %193 : vector<8x128xf32>
    %195 = math.exp %194 : vector<8x128xf32>
    %cst_92 = arith.constant 1.000000e+00 : f32
    %196 = vector.broadcast %cst_92 : f32 to vector<8x128xf32>
    %197 = arith.addf %196, %195 : vector<8x128xf32>
    %198 = arith.divf %196, %197 : vector<8x128xf32>
    %199 = arith.mulf %192, %198 : vector<8x128xf32>
    %200 = vector.extract_strided_slice %191 {offsets = [16, 0], sizes = [8, 128], strides = [1, 1]} : vector<24x128xf32> to vector<8x128xf32>
    %cst_93 = arith.constant 0.000000e+00 : f32
    %201 = vector.broadcast %cst_93 : f32 to vector<8x128xf32>
    %202 = arith.maximumf %200, %201 : vector<8x128xf32>
    %203 = vector.broadcast %5 : f32 to vector<8x128xf32>
    %204 = arith.mulf %203, %174 : vector<8x128xf32>
    %205 = vector.broadcast %6 : f32 to vector<8x128xf32>
    %206 = arith.mulf %205, %188 : vector<8x128xf32>
    %207 = arith.addf %204, %206 : vector<8x128xf32>
    %208 = vector.broadcast %7 : f32 to vector<8x128xf32>
    %209 = arith.mulf %208, %199 : vector<8x128xf32>
    %210 = arith.addf %207, %209 : vector<8x128xf32>
    %211 = vector.broadcast %8 : f32 to vector<8x128xf32>
    %212 = arith.mulf %211, %202 : vector<8x128xf32>
    %213 = arith.addf %210, %212 : vector<8x128xf32>
    %214 = vector.broadcast %2 : f32 to vector<8x128xf32>
    %215 = arith.mulf %214, %165 : vector<8x128xf32>
    %216 = vector.broadcast %3 : f32 to vector<8x128xf32>
    %217 = arith.mulf %216, %167 : vector<8x128xf32>
    %218 = arith.addf %215, %217 : vector<8x128xf32>
    %219 = vector.broadcast %4 : f32 to vector<8x128xf32>
    %220 = arith.mulf %219, %213 : vector<8x128xf32>
    %221 = arith.addf %218, %220 : vector<8x128xf32>
    %cst_94 = arith.constant 2.000000e+00 : f32
    %222 = vector.broadcast %cst_94 : f32 to vector<8x128xf32>
    %223 = arith.mulf %222, %221 : vector<8x128xf32>
    %cst_95 = arith.constant dense<0.000000e+00> : vector<128x128xf32>
    %224 = tpu.matmul %221, %221, %cst_95 {dimension_numbers = #tpu.dot_dimension_numbers<[0], [0], [1], [1], [0, 1, 1, 1], [], []>} : vector<8x128xf32>, vector<8x128xf32>, vector<128x128xf32> -> vector<128x128xf32>
    %cst_96 = arith.constant 0.353553385 : f32
    %225 = vector.broadcast %cst_96 : f32 to vector<128x128xf32>
    %226 = arith.mulf %224, %225 : vector<128x128xf32>
    %cst_97 = arith.constant dense<0xFF800000> : vector<128xf32>
    %227 = vector.multi_reduction <maximumf>, %226, %cst_97 [1] : vector<128x128xf32> to vector<128xf32>
    %228 = vector.shape_cast %227 : vector<128xf32> to vector<128x1xf32>
    %229 = vector.broadcast %228 : vector<128x1xf32> to vector<128x128xf32>
    %230 = arith.subf %226, %229 : vector<128x128xf32>
    %231 = math.exp %230 : vector<128x128xf32>
    %cst_98 = arith.constant dense<0.000000e+00> : vector<128xf32>
    %232 = vector.multi_reduction <add>, %231, %cst_98 [1] : vector<128x128xf32> to vector<128xf32>
    %233 = vector.shape_cast %232 : vector<128xf32> to vector<128x1xf32>
    %234 = tpu.reciprocal %233 {approx = true} : vector<128x1xf32> -> vector<128x1xf32>
    %235 = vector.broadcast %234 : vector<128x1xf32> to vector<128x128xf32>
    %236 = arith.mulf %231, %235 : vector<128x128xf32>
    %cst_99 = arith.constant dense<0.000000e+00> : vector<8x128xf32>
    %237 = tpu.matmul %221, %236, %cst_99 {dimension_numbers = #tpu.dot_dimension_numbers<[1], [1], [0], [0], [0, 0, 1, 0], [], []>} : vector<8x128xf32>, vector<128x128xf32>, vector<8x128xf32> -> vector<8x128xf32>
    %cst_100 = arith.constant dense<0.000000e+00> : vector<24x128xf32>
    %238 = tpu.matmul %16, %221, %cst_100 {dimension_numbers = #tpu.dot_dimension_numbers<[1], [0], [0], [1], [0, 0, 1, 1], [], []>} : vector<24x8xf32>, vector<8x128xf32>, vector<24x128xf32> -> vector<24x128xf32>
    %239 = vector.broadcast %20 : vector<24x1xf32> to vector<24x128xf32>
    %240 = arith.addf %238, %239 : vector<24x128xf32>
    %241 = vector.extract_strided_slice %240 {offsets = [0, 0], sizes = [8, 128], strides = [1, 1]} : vector<24x128xf32> to vector<8x128xf32>
    %242 = vector.extract_strided_slice %240 {offsets = [8, 0], sizes = [8, 128], strides = [1, 1]} : vector<24x128xf32> to vector<8x128xf32>
    %243 = arith.negf %242 : vector<8x128xf32>
    %244 = math.exp %243 : vector<8x128xf32>
    %cst_101 = arith.constant 1.000000e+00 : f32
    %245 = vector.broadcast %cst_101 : f32 to vector<8x128xf32>
    %246 = arith.addf %245, %244 : vector<8x128xf32>
    %247 = arith.divf %245, %246 : vector<8x128xf32>
    %248 = arith.mulf %241, %247 : vector<8x128xf32>
    %249 = vector.extract_strided_slice %240 {offsets = [16, 0], sizes = [8, 128], strides = [1, 1]} : vector<24x128xf32> to vector<8x128xf32>
    %cst_102 = arith.constant 0.000000e+00 : f32
    %250 = vector.broadcast %cst_102 : f32 to vector<8x128xf32>
    %251 = arith.maximumf %249, %250 : vector<8x128xf32>
    %252 = vector.broadcast %9 : f32 to vector<8x128xf32>
    %253 = arith.mulf %252, %223 : vector<8x128xf32>
    %254 = vector.broadcast %10 : f32 to vector<8x128xf32>
    %255 = arith.mulf %254, %237 : vector<8x128xf32>
    %256 = arith.addf %253, %255 : vector<8x128xf32>
    %257 = vector.broadcast %11 : f32 to vector<8x128xf32>
    %258 = arith.mulf %257, %248 : vector<8x128xf32>
    %259 = arith.addf %256, %258 : vector<8x128xf32>
    %260 = vector.broadcast %12 : f32 to vector<8x128xf32>
    %261 = arith.mulf %260, %251 : vector<8x128xf32>
    %262 = arith.addf %259, %261 : vector<8x128xf32>
    %cst_103 = arith.constant dense<0.000000e+00> : vector<8x128xf32>
    %263 = tpu.matmul %22, %213, %cst_103 {dimension_numbers = #tpu.dot_dimension_numbers<[1], [0], [0], [1], [0, 0, 1, 1], [], []>} : vector<8x8xf32>, vector<8x128xf32>, vector<8x128xf32> -> vector<8x128xf32>
    %264 = vector.broadcast %25 : vector<8x1xf32> to vector<8x128xf32>
    %265 = arith.addf %264, %263 : vector<8x128xf32>
    %cst_104 = arith.constant dense<0.000000e+00> : vector<8x128xf32>
    %266 = tpu.matmul %24, %262, %cst_104 {dimension_numbers = #tpu.dot_dimension_numbers<[1], [0], [0], [1], [0, 0, 1, 1], [], []>} : vector<8x8xf32>, vector<8x128xf32>, vector<8x128xf32> -> vector<8x128xf32>
    %267 = arith.addf %265, %266 : vector<8x128xf32>
    %cst_105 = arith.constant 0.000000e+00 : f32
    %268 = vector.broadcast %cst_105 : f32 to vector<8x128xf32>
    %269 = arith.maximumf %267, %268 : vector<8x128xf32>
    %270 = arith.addf %269, %165 : vector<8x128xf32>
    %271 = vector.shape_cast %270 : vector<8x128xf32> to vector<1x8x128xf32>
    %cst_106 = arith.constant dense<0.000000e+00> : vector<1xf32>
    %272 = vector.multi_reduction <add>, %271, %cst_106 [1, 2] : vector<1x8x128xf32> to vector<1xf32>
    %273 = vector.shape_cast %272 : vector<1xf32> to vector<1x1x1xf32>
    %274 = vector.extract %273[0, 0, 0] : f32 from vector<1x1x1xf32>
    %275 = vector.broadcast %274 : f32 to vector<1x1xf32>
    %cst_107 = arith.constant 9.765625E-4 : f32
    %276 = vector.broadcast %cst_107 : f32 to vector<1x1xf32>
    %277 = arith.mulf %275, %276 : vector<1x1xf32>
    %278 = arith.mulf %270, %270 : vector<8x128xf32>
    %279 = vector.shape_cast %278 : vector<8x128xf32> to vector<1x8x128xf32>
    %cst_108 = arith.constant dense<0.000000e+00> : vector<1xf32>
    %280 = vector.multi_reduction <add>, %279, %cst_108 [1, 2] : vector<1x8x128xf32> to vector<1xf32>
    %281 = vector.shape_cast %280 : vector<1xf32> to vector<1x1x1xf32>
    %282 = vector.extract %281[0, 0, 0] : f32 from vector<1x1x1xf32>
    %283 = vector.broadcast %282 : f32 to vector<1x1xf32>
    %cst_109 = arith.constant 9.765625E-4 : f32
    %284 = vector.broadcast %cst_109 : f32 to vector<1x1xf32>
    %285 = arith.mulf %283, %284 : vector<1x1xf32>
    %286 = arith.mulf %277, %277 : vector<1x1xf32>
    %287 = arith.subf %285, %286 : vector<1x1xf32>
    %288 = vector.broadcast %277 : vector<1x1xf32> to vector<8x128xf32>
    %289 = arith.subf %270, %288 : vector<8x128xf32>
    %cst_110 = arith.constant 9.99999974E-6 : f32
    %290 = vector.broadcast %cst_110 : f32 to vector<1x1xf32>
    %291 = arith.addf %287, %290 : vector<1x1xf32>
    %292 = math.rsqrt %291 : vector<1x1xf32>
    %293 = vector.broadcast %292 : vector<1x1xf32> to vector<8x128xf32>
    %294 = arith.mulf %289, %293 : vector<8x128xf32>
    %295 = arith.mulf %294, %26 : vector<8x128xf32>
    %296 = arith.addf %295, %27 : vector<8x128xf32>
    %c1_111 = arith.constant 1 : index
    %c0_112 = arith.constant 0 : index
    %c0_113 = arith.constant 0 : index
    %297 = vector.load %arg11[%c1_111, %c0_112, %c0_113] : memref<2x8x128xf32, #tpu.memory_space<vmem>>, vector<1x8x128xf32>
    %298 = vector.shape_cast %297 : vector<1x8x128xf32> to vector<8x128xf32>
    %299 = vector.shape_cast %296 : vector<8x128xf32> to vector<1x8x128xf32>
    tpu.vector_store %arg11[%c1_111, %c0_112, %c0_113], %299 {strides = array<i32>} : memref<2x8x128xf32, #tpu.memory_space<vmem>>, vector<1x8x128xf32>,
    return
  }
  func.func @transform_0(%arg0: i32) -> (i32, i32, i32) {
    %c0_i32 = arith.constant 0 : i32
    %c0_i32_0 = arith.constant 0 : i32
    %c0_i32_1 = arith.constant 0 : i32
    return %arg0, %c0_i32, %c0_i32_0 : i32, i32, i32
  }
  func.func @transform_1(%arg0: i32) -> (i32, i32, i32) {
    %c0_i32 = arith.constant 0 : i32
    %c0_i32_0 = arith.constant 0 : i32
    %c0_i32_1 = arith.constant 0 : i32
    return %arg0, %c0_i32, %c0_i32_0 : i32, i32, i32
  }
  func.func @transform_2(%arg0: i32) -> (i32, i32) {
    %c0_i32 = arith.constant 0 : i32
    %c0_i32_0 = arith.constant 0 : i32
    %c0_i32_1 = arith.constant 0 : i32
    return %c0_i32, %c0_i32_0 : i32, i32
  }
  func.func @transform_3(%arg0: i32) -> (i32, i32) {
    %c0_i32 = arith.constant 0 : i32
    %c0_i32_0 = arith.constant 0 : i32
    %c0_i32_1 = arith.constant 0 : i32
    return %c0_i32, %c0_i32_0 : i32, i32
  }
  func.func @transform_4(%arg0: i32) -> (i32, i32, i32) {
    %c0_i32 = arith.constant 0 : i32
    %c0_i32_0 = arith.constant 0 : i32
    %c0_i32_1 = arith.constant 0 : i32
    %c0_i32_2 = arith.constant 0 : i32
    return %c0_i32, %c0_i32_0, %c0_i32_1 : i32, i32, i32
  }
  func.func @transform_5(%arg0: i32) -> (i32, i32, i32) {
    %c0_i32 = arith.constant 0 : i32
    %c0_i32_0 = arith.constant 0 : i32
    %c0_i32_1 = arith.constant 0 : i32
    %c0_i32_2 = arith.constant 0 : i32
    return %c0_i32, %c0_i32_0, %c0_i32_1 : i32, i32, i32
  }
  func.func @transform_6(%arg0: i32) -> (i32, i32, i32) {
    %c0_i32 = arith.constant 0 : i32
    %c0_i32_0 = arith.constant 0 : i32
    %c0_i32_1 = arith.constant 0 : i32
    %c0_i32_2 = arith.constant 0 : i32
    return %c0_i32, %c0_i32_0, %c0_i32_1 : i32, i32, i32
  }
  func.func @transform_7(%arg0: i32) -> (i32, i32) {
    %c0_i32 = arith.constant 0 : i32
    %c0_i32_0 = arith.constant 0 : i32
    %c0_i32_1 = arith.constant 0 : i32
    return %c0_i32, %c0_i32_0 : i32, i32
  }
  func.func @transform_8(%arg0: i32) -> (i32, i32) {
    %c0_i32 = arith.constant 0 : i32
    %c0_i32_0 = arith.constant 0 : i32
    %c0_i32_1 = arith.constant 0 : i32
    return %c0_i32, %c0_i32_0 : i32, i32
  }
  func.func @transform_9(%arg0: i32) -> (i32, i32) {
    %c0_i32 = arith.constant 0 : i32
    %c0_i32_0 = arith.constant 0 : i32
    %c0_i32_1 = arith.constant 0 : i32
    return %c0_i32, %c0_i32_0 : i32, i32
  }
  func.func @transform_10(%arg0: i32) -> (i32, i32, i32) {
    %c0_i32 = arith.constant 0 : i32
    %c0_i32_0 = arith.constant 0 : i32
    %c0_i32_1 = arith.constant 0 : i32
    return %arg0, %c0_i32, %c0_i32_0 : i32, i32, i32
  }
}

</mosaic_0001>

<llo_original>
// kernel: tpu_custom_call.1
$region0: #{tpu_custom_call.1}
  #allocation0 [shape = 'u32[]', space=smem, size = 0x4, offset = 0x4, fixed_abs, tag = 'smem constant byte address 0x4 - core index']
  #allocation1 [shape = 'u32[144,128]{1,0:T(1,128)}', space=vmem, size = 0x12000, scoped, tag = 'internal scratch']
  %s0 = inlined_call_operand.vmem [shape: f32[2,8,128], index: 0, kind: input, shape index: {}]
  %s1 = inlined_call_operand.vmem [shape: f32[2,8,128], index: 1, kind: input, shape index: {}]
  %s2 = inlined_call_operand.vmem [shape: f32[5,2], index: 2, kind: input, shape index: {}]
  %s3 = inlined_call_operand.vmem [shape: f32[2,4], index: 3, kind: input, shape index: {}]
  %s4 = inlined_call_operand.vmem [shape: f32[2,24,8], index: 4, kind: input, shape index: {}]
  %s5 = inlined_call_operand.vmem [shape: f32[2,24,1], index: 5, kind: input, shape index: {}]
  %s6 = inlined_call_operand.vmem [shape: f32[2,8,8], index: 6, kind: input, shape index: {}]
  %s7 = inlined_call_operand.vmem [shape: f32[8,1], index: 7, kind: input, shape index: {}]
  %s8 = inlined_call_operand.vmem [shape: f32[8,128], index: 8, kind: input, shape index: {}]
  %s9 = inlined_call_operand.vmem [shape: f32[8,128], index: 9, kind: input, shape index: {}]
  %s10 = inlined_call_operand.hbm [shape: f32[2,8,128], index: 10, kind: output, shape index: {}]
  %s11 = sld [smem:[#allocation0]]
  $region58: #{tpu_custom_call.1} parent=0
    _
  %s13 = ssub.s32 1, %s11
  %s14 = scalar_select 0, %s13, %s11
  $region1: #{tpu_custom_call.1} parent=0
    #allocation2 [shape = 'u8[4096]{0}', space=smem, size = 0x1000, scoped, tag = 'input window, operand 2, single buffered']
    #allocation3 [shape = 's32[1]{0}', space=sflag, size = 0x4, scoped, tag = 'scoped memory for tpu_custom_call.1']
    #allocation4 [shape = 's32[1]{0}', space=sflag, size = 0x4, scoped, tag = 'scoped memory for tpu_custom_call.1']
    #allocation5 [shape = 'u8[1024]{0}', space=smem, size = 0x400, scoped, tag = 'input window, operand 3, single buffered']
    #allocation6 [shape = 's32[1]{0}', space=sflag, size = 0x4, scoped, tag = 'scoped memory for tpu_custom_call.1']
    #allocation7 [shape = 'u8[8192]{0}', space=vmem, size = 0x2000, scoped, tag = 'output window, operand 0, single buffered']
    %15 = vsyncpa [#allocation4], 0
    %16 = vsyncpa [#allocation6], 0
    %17 = vsyncpa [#allocation3], 0
    // Predicated region
    $region2: #{tpu_custom_call.1} parent=1 // pred_check
      _
    $region3: #{tpu_custom_call.1} parent=1 // pred_check_branch
      %19 = sbr.rel (0) target = $region5
    $region4: #{tpu_custom_call.1} parent=1 // pred_region
      _
    $region5: #{tpu_custom_call.1} parent=1 // pred_fallthru
      _
    // Predicated region
    $region6: #{tpu_custom_call.1} parent=1 // pred_check
      _
    $region7: #{tpu_custom_call.1} parent=1 // pred_check_branch
      %21 = sbr.rel (0) target = $region9
    $region8: #{tpu_custom_call.1} parent=1 // pred_region
      _
    $region9: #{tpu_custom_call.1} parent=1 // pred_fallthru
      _
    // Predicated region
    $region10: #{tpu_custom_call.1} parent=1 // pred_check
      _
    $region11: #{tpu_custom_call.1} parent=1 // pred_check_branch
      %23 = sbr.rel (0) target = $region13
    $region12: #{tpu_custom_call.1} parent=1 // pred_region
      %s25 = ssub.s32 128, 128
      %26 = vsyncadd [#allocation4], %s25
      %s28 = sshll.u32 %s2, 4
      %s29 = int_to_ptr.vmem [resolvable:$true] %s28
      %31 = dma.vmem_to_smem %s29, 128, [#allocation2], [#allocation4]
    $region13: #{tpu_custom_call.1} parent=1 // pred_fallthru
      _
    // Predicated region
    $region14: #{tpu_custom_call.1} parent=1 // pred_check
      _
    $region15: #{tpu_custom_call.1} parent=1 // pred_check_branch
      %33 = sbr.rel (0) target = $region17
    $region16: #{tpu_custom_call.1} parent=1 // pred_region
      %s35 = ssub.s32 32, 32
      %36 = vsyncadd [#allocation6], %s35
      %s38 = sshll.u32 %s3, 4
      %s39 = int_to_ptr.vmem [resolvable:$true] %s38
      %41 = dma.vmem_to_smem %s39, 32, [#allocation5], [#allocation6]
    $region17: #{tpu_custom_call.1} parent=1 // pred_fallthru
      _
    // Predicated region
    $region18: #{tpu_custom_call.1} parent=1 // pred_check
      _
    $region19: #{tpu_custom_call.1} parent=1 // pred_check_branch
      %43 = sbr.rel (0) target = $region21
    $region20: #{tpu_custom_call.1} parent=1 // pred_region
      _
    $region21: #{tpu_custom_call.1} parent=1 // pred_fallthru
      _
    // Predicated region
    $region22: #{tpu_custom_call.1} parent=1 // pred_check
      _
    $region23: #{tpu_custom_call.1} parent=1 // pred_check_branch
      %45 = sbr.rel (0) target = $region25
    $region24: #{tpu_custom_call.1} parent=1 // pred_region
      _
    $region25: #{tpu_custom_call.1} parent=1 // pred_fallthru
      _
    // Predicated region
    $region26: #{tpu_custom_call.1} parent=1 // pred_check
      _
    $region27: #{tpu_custom_call.1} parent=1 // pred_check_branch
      %47 = sbr.rel (0) target = $region29
    $region28: #{tpu_custom_call.1} parent=1 // pred_region
      _
    $region29: #{tpu_custom_call.1} parent=1 // pred_fallthru
      _
    // Predicated region
    $region30: #{tpu_custom_call.1} parent=1 // pred_check
      _
    $region31: #{tpu_custom_call.1} parent=1 // pred_check_branch
      %49 = sbr.rel (0) target = $region33
    $region32: #{tpu_custom_call.1} parent=1 // pred_region
      _
    $region33: #{tpu_custom_call.1} parent=1 // pred_fallthru
      _
    // Predicated region
    $region34: #{tpu_custom_call.1} parent=1 // pred_check
      _
    $region35: #{tpu_custom_call.1} parent=1 // pred_check_branch
      %51 = sbr.rel (0) target = $region37
    $region36: #{tpu_custom_call.1} parent=1 // pred_region
      _
    $region37: #{tpu_custom_call.1} parent=1 // pred_fallthru
      _
    // Predicated region
    $region38: #{tpu_custom_call.1} parent=1 // pred_check
      _
    $region39: #{tpu_custom_call.1} parent=1 // pred_check_branch
      %53 = sbr.rel (0) target = $region41
    $region40: #{tpu_custom_call.1} parent=1 // pred_region
      _
    $region41: #{tpu_custom_call.1} parent=1 // pred_fallthru
      _
    // Predicated region
    $region42: #{tpu_custom_call.1} parent=1 // pred_check
      _
    $region43: #{tpu_custom_call.1} parent=1 // pred_check_branch
      %55 = sbr.rel (0) target = $region45
    $region44: #{tpu_custom_call.1} parent=1 // pred_region
      %56 = dma.done [#allocation4], 128
    $region45: #{tpu_custom_call.1} parent=1 // pred_fallthru
      _
    // Predicated region
    $region46: #{tpu_custom_call.1} parent=1 // pred_check
      _
    $region47: #{tpu_custom_call.1} parent=1 // pred_check_branch
      %58 = sbr.rel (0) target = $region49
    $region48: #{tpu_custom_call.1} parent=1 // pred_region
      %59 = dma.done [#allocation6], 32
    $region49: #{tpu_custom_call.1} parent=1 // pred_fallthru
      _
    %60 = sfence
    %s61 = sld [smem:[#allocation2 + $0x1]]
    %s62 = sld [smem:[#allocation2 + $0x81]]
    %s63 = sld [smem:[#allocation2 + $0x101]]
    %s64 = sld [smem:[#allocation2 + $0x181]]
    %s65 = sld [smem:[#allocation2 + $0x201]]
    %s66 = sld [smem:[#allocation5]]
    %s67 = sld [smem:[#allocation5 + $0x1]]
    %s68 = sld [smem:[#allocation5 + $0x2]]
    %s69 = sld [smem:[#allocation5 + $0x3]]
    %s70 = sld [smem:[#allocation5 + $0x80]]
    %s71 = sld [smem:[#allocation5 + $0x81]]
    %s72 = sld [smem:[#allocation5 + $0x82]]
    %s73 = sld [smem:[#allocation5 + $0x83]]
    %v74 = vld [vmem:[%s4] sm:$0xff]
    %v75 = vld [vmem:[%s4 + $0x8] sm:$0xff]
    %v76 = vld [vmem:[%s4 + $0x10] sm:$0xff]
    %s77 = scalar_lea.vmem %s4, 24
    %v78 = vld [vmem:[%s77] sm:$0xff]
    %v79 = vld [vmem:[%s77 + $0x8] sm:$0xff]
    %v80 = vld [vmem:[%s77 + $0x10] sm:$0xff]
    %v81 = vld [vmem:[%s5] sm:$0xff]
    %v82 = vld [vmem:[%s5 + $0x8] sm:$0xff]
    %v83 = vld [vmem:[%s5 + $0x10] sm:$0xff]
    %s84 = scalar_lea.vmem %s5, 24
    %v85 = vld [vmem:[%s84] sm:$0xff]
    %v86 = vld [vmem:[%s84 + $0x8] sm:$0xff]
    %v87 = vld [vmem:[%s84 + $0x10] sm:$0xff]
    %v88 = vld [vmem:[%s6] sm:$0xff]
    %s89 = scalar_lea.vmem %s6, 8
    %v90 = vld [vmem:[%s89] sm:$0xff]
    %v91 = vld [vmem:[%s7] sm:$0xff]
    %v92 = vld [vmem:[%s8] sm:$0xff]
    %v93 = vld [vmem:[%s9] sm:$0xff]
    %v94 = vld [vmem:[%s0] sm:$0xff]
    %v95 = vld [vmem:[%s1] sm:$0xff]
    %v96 = vstv %s61
    %v97 = vmul.f32 %v96, %v94
    %v98 = vstv %s62
    %v99 = vmul.f32 %v98, %v95
    %v100 = vadd.f32 %v97, %v99
    %v101 = vmul.f32 %v100, 2.0
    %102 = vxpose.xlu0.b32.start [1/16] %v100, 128
    %103 = vxpose.xlu0.b32.cont [2/16] 0.0, 128
    %104 = vxpose.xlu0.b32.cont [3/16] 0.0, 128
    %105 = vxpose.xlu0.b32.cont [4/16] 0.0, 128
    %106 = vxpose.xlu0.b32.cont [5/16] 0.0, 128
    %107 = vxpose.xlu0.b32.cont [6/16] 0.0, 128
    %108 = vxpose.xlu0.b32.cont [7/16] 0.0, 128
    %109 = vxpose.xlu0.b32.cont [8/16] 0.0, 128
    %110 = vxpose.xlu0.b32.cont [9/16] 0.0, 128
    %111 = vxpose.xlu0.b32.cont [10/16] 0.0, 128
    %112 = vxpose.xlu0.b32.cont [11/16] 0.0, 128
    %113 = vxpose.xlu0.b32.cont [12/16] 0.0, 128
    %114 = vxpose.xlu0.b32.cont [13/16] 0.0, 128
    %115 = vxpose.xlu0.b32.cont [14/16] 0.0, 128
    %116 = vxpose.xlu0.b32.cont [15/16] 0.0, 128
    %117 = vxpose.xlu0.b32.end [16/16] 0.0, 128
    %v118 = vpop.trf.xlu0
    %v119 = vpop.trf.xlu0
    %v120 = vpop.trf.xlu0
    %v121 = vpop.trf.xlu0
    %v122 = vpop.trf.xlu0
    %v123 = vpop.trf.xlu0
    %v124 = vpop.trf.xlu0
    %v125 = vpop.trf.xlu0
    %v126 = vpop.trf.xlu0
    %v127 = vpop.trf.xlu0
    %v128 = vpop.trf.xlu0
    %v129 = vpop.trf.xlu0
    %v130 = vpop.trf.xlu0
    %v131 = vpop.trf.xlu0
    %v132 = vpop.trf.xlu0
    %v133 = vpop.trf.xlu0
    %vm134 = vcmask 64512
    %v136 = vsel %vm134, %v118, 0
    %v139 = vsel %vm134, %v119, 0
    %v142 = vsel %vm134, %v120, 0
    %v145 = vsel %vm134, %v121, 0
    %v148 = vsel %vm134, %v122, 0
    %v151 = vsel %vm134, %v123, 0
    %v154 = vsel %vm134, %v124, 0
    %v157 = vsel %vm134, %v125, 0
    %v160 = vsel %vm134, %v126, 0
    %v163 = vsel %vm134, %v127, 0
    %v166 = vsel %vm134, %v128, 0
    %v169 = vsel %vm134, %v129, 0
    %v172 = vsel %vm134, %v130, 0
    %v175 = vsel %vm134, %v131, 0
    %v178 = vsel %vm134, %v132, 0
    %v181 = vsel %vm134, %v133, 0
    %183 = vmatprep.subr.mxu0 0.0
    %184 = vmatpush1.msra.mxu0 0.0
    %185 = vmatprep.subr.mxu0 0.0
    %186 = vmatpush1.msra.mxu0 0.0
    %187 = vmatprep.subr.mxu0 0.0
    %188 = vmatpush1.msra.mxu0 0.0
    %189 = vmatprep.subr.mxu0 0.0
    %190 = vmatpush1.msra.mxu0 0.0
    %191 = vmatprep.subr.mxu0 0.0
    %192 = vmatpush1.msra.mxu0 0.0
    %193 = vmatprep.subr.mxu0 0.0
    %194 = vmatpush1.msra.mxu0 0.0
    %195 = vmatprep.subr.mxu0 0.0
    %196 = vmatpush1.msra.mxu0 0.0
    %197 = vmatprep.subr.mxu0 0.0
    %198 = vmatpush1.msra.mxu0 0.0
    %199 = vmatprep.subr.mxu0 0.0
    %200 = vmatpush1.msra.mxu0 0.0
    %201 = vmatprep.subr.mxu0 0.0
    %202 = vmatpush1.msra.mxu0 0.0
    %203 = vmatprep.subr.mxu0 0.0
    %204 = vmatpush1.msra.mxu0 0.0
    %205 = vmatprep.subr.mxu0 0.0
    %206 = vmatpush1.msra.mxu0 0.0
    %207 = vmatprep.subr.mxu0 0.0
    %208 = vmatpush1.msra.mxu0 0.0
    %209 = vmatprep.subr.mxu0 0.0
    %210 = vmatpush1.msra.mxu0 0.0
    %211 = vmatprep.subr.mxu0 0.0
    %212 = vmatpush1.msra.mxu0 0.0
    %213 = vmatprep.subr.mxu0 0.0
    %214 = vmatpush1.msra.mxu0 %v100
    %215 = vmatprep.subr.mxu0 0.0
    %216 = vmatpush2.msra.mxu0 0.0
    %217 = vmatprep.subr.mxu0 0.0
    %218 = vmatpush2.msra.mxu0 0.0
    %219 = vmatprep.subr.mxu0 0.0
    %220 = vmatpush2.msra.mxu0 0.0
    %221 = vmatprep.subr.mxu0 0.0
    %222 = vmatpush2.msra.mxu0 0.0
    %223 = vmatprep.subr.mxu0 0.0
    %224 = vmatpush2.msra.mxu0 0.0
    %225 = vmatprep.subr.mxu0 0.0
    %226 = vmatpush2.msra.mxu0 0.0
    %227 = vmatprep.subr.mxu0 0.0
    %228 = vmatpush2.msra.mxu0 0.0
    %229 = vmatprep.subr.mxu0 0.0
    %230 = vmatpush2.msra.mxu0 0.0
    %231 = vmatprep.subr.mxu0 0.0
    %232 = vmatpush2.msra.mxu0 0.0
    %233 = vmatprep.subr.mxu0 0.0
    %234 = vmatpush2.msra.mxu0 0.0
    %235 = vmatprep.subr.mxu0 0.0
    %236 = vmatpush2.msra.mxu0 0.0
    %237 = vmatprep.subr.mxu0 0.0
    %238 = vmatpush2.msra.mxu0 0.0
    %239 = vmatprep.subr.mxu0 0.0
    %240 = vmatpush2.msra.mxu0 0.0
    %241 = vmatprep.subr.mxu0 0.0
    %242 = vmatpush2.msra.mxu0 0.0
    %243 = vmatprep.subr.mxu0 0.0
    %244 = vmatpush2.msra.mxu0 0.0
    %245 = vmatprep.subr.mxu0 0.0
    %246 = vmatpush2.msra.mxu0 0.0
    %247 = vmatprep.mubr.f32.mxu0 0.0
    %248 = vmatmul.mubr.f32.gmra.mxu0 %v136
    %v249 = vpop.f32.mrf.mxu0
    %v250 = vadd.f32 0.0, %v249
    %v251 = vpop.f32.mrf.mxu0
    %252 = vmatprep.mubr.f32.mxu0 0.0
    %253 = vmatmul.mubr.f32.gmra.mxu0 %v139
    %v254 = vpop.f32.mrf.mxu0
    %v255 = vadd.f32 0.0, %v254
    %v256 = vpop.f32.mrf.mxu0
    %257 = vmatprep.mubr.f32.mxu0 0.0
    %258 = vmatmul.mubr.f32.gmra.mxu0 %v142
    %v259 = vpop.f32.mrf.mxu0
    %v260 = vadd.f32 0.0, %v259
    %v261 = vpop.f32.mrf.mxu0
    %262 = vmatprep.mubr.f32.mxu0 0.0
    %263 = vmatmul.mubr.f32.gmra.mxu0 %v145
    %v264 = vpop.f32.mrf.mxu0
    %v265 = vadd.f32 0.0, %v264
    %v266 = vpop.f32.mrf.mxu0
    %267 = vmatprep.mubr.f32.mxu0 0.0
    %268 = vmatmul.mubr.f32.gmra.mxu0 %v148
    %v269 = vpop.f32.mrf.mxu0
    %v270 = vadd.f32 0.0, %v269
    %v271 = vpop.f32.mrf.mxu0
    %272 = vmatprep.mubr.f32.mxu0 0.0
    %273 = vmatmul.mubr.f32.gmra.mxu0 %v151
    %v274 = vpop.f32.mrf.mxu0
    %v275 = vadd.f32 0.0, %v274
    %v276 = vpop.f32.mrf.mxu0
    %277 = vmatprep.mubr.f32.mxu0 0.0
    %278 = vmatmul.mubr.f32.gmra.mxu0 %v154
    %v279 = vpop.f32.mrf.mxu0
    %v280 = vadd.f32 0.0, %v279
    %v281 = vpop.f32.mrf.mxu0
    %282 = vmatprep.mubr.f32.mxu0 0.0
    %283 = vmatmul.mubr.f32.gmra.mxu0 %v157
    %v284 = vpop.f32.mrf.mxu0
    %v285 = vadd.f32 0.0, %v284
    %v286 = vpop.f32.mrf.mxu0
    %287 = vmatprep.mubr.f32.mxu0 0.0
    %288 = vmatmul.mubr.f32.gmra.mxu0 %v160
    %v289 = vpop.f32.mrf.mxu0
    %v290 = vadd.f32 0.0, %v289
    %v291 = vpop.f32.mrf.mxu0
    %292 = vmatprep.mubr.f32.mxu0 0.0
    %293 = vmatmul.mubr.f32.gmra.mxu0 %v163
    %v294 = vpop.f32.mrf.mxu0
    %v295 = vadd.f32 0.0, %v294
    %v296 = vpop.f32.mrf.mxu0
    %297 = vmatprep.mubr.f32.mxu0 0.0
    %298 = vmatmul.mubr.f32.gmra.mxu0 %v166
    %v299 = vpop.f32.mrf.mxu0
    %v300 = vadd.f32 0.0, %v299
    %v301 = vpop.f32.mrf.mxu0
    %302 = vmatprep.mubr.f32.mxu0 0.0
    %303 = vmatmul.mubr.f32.gmra.mxu0 %v169
    %v304 = vpop.f32.mrf.mxu0
    %v305 = vadd.f32 0.0, %v304
    %v306 = vpop.f32.mrf.mxu0
    %307 = vmatprep.mubr.f32.mxu0 0.0
    %308 = vmatmul.mubr.f32.gmra.mxu0 %v172
    %v309 = vpop.f32.mrf.mxu0
    %v310 = vadd.f32 0.0, %v309
    %v311 = vpop.f32.mrf.mxu0
    %312 = vmatprep.mubr.f32.mxu0 0.0
    %313 = vmatmul.mubr.f32.gmra.mxu0 %v175
    %v314 = vpop.f32.mrf.mxu0
    %v315 = vadd.f32 0.0, %v314
    %v316 = vpop.f32.mrf.mxu0
    %317 = vmatprep.mubr.f32.mxu0 0.0
    %318 = vmatmul.mubr.f32.gmra.mxu0 %v178
    %v319 = vpop.f32.mrf.mxu0
    %v320 = vadd.f32 0.0, %v319
    %v321 = vpop.f32.mrf.mxu0
    %322 = vmatprep.mubr.f32.mxu0 0.0
    %323 = vmatmul.mubr.f32.gmra.mxu0 %v181
    %v324 = vpop.f32.mrf.mxu0
    %v325 = vadd.f32 0.0, %v324
    %v326 = vpop.f32.mrf.mxu0
    %327 = vdwg.mxu0
    %v328 = vmul.f32 %v250, 0.35355338
    %v329 = vmul.f32 %v255, 0.35355338
    %v330 = vmul.f32 %v260, 0.35355338
    %v331 = vmul.f32 %v265, 0.35355338
    %v332 = vmul.f32 %v270, 0.35355338
    %v333 = vmul.f32 %v275, 0.35355338
    %v334 = vmul.f32 %v280, 0.35355338
    %v335 = vmul.f32 %v285, 0.35355338
    %v336 = vmul.f32 %v290, 0.35355338
    %v337 = vmul.f32 %v295, 0.35355338
    %v338 = vmul.f32 %v300, 0.35355338
    %v339 = vmul.f32 %v305, 0.35355338
    %v340 = vmul.f32 %v310, 0.35355338
    %v341 = vmul.f32 %v315, 0.35355338
    %v342 = vmul.f32 %v320, 0.35355338
    %v343 = vmul.f32 %v325, 0.35355338
    %344 = vmax.xlane.f32.xlu0 %v328
    %v345 = vpop.xlane.xlu0 %344
    %346 = vmax.xlane.f32.xlu0 %v329
    %v347 = vpop.xlane.xlu0 %346
    %348 = vmax.xlane.f32.xlu0 %v330
    %v349 = vpop.xlane.xlu0 %348
    %350 = vmax.xlane.f32.xlu0 %v331
    %v351 = vpop.xlane.xlu0 %350
    %352 = vmax.xlane.f32.xlu0 %v332
    %v353 = vpop.xlane.xlu0 %352
    %354 = vmax.xlane.f32.xlu0 %v333
    %v355 = vpop.xlane.xlu0 %354
    %356 = vmax.xlane.f32.xlu0 %v334
    %v357 = vpop.xlane.xlu0 %356
    %358 = vmax.xlane.f32.xlu0 %v335
    %v359 = vpop.xlane.xlu0 %358
    %360 = vmax.xlane.f32.xlu0 %v336
    %v361 = vpop.xlane.xlu0 %360
    %362 = vmax.xlane.f32.xlu0 %v337
    %v363 = vpop.xlane.xlu0 %362
    %364 = vmax.xlane.f32.xlu0 %v338
    %v365 = vpop.xlane.xlu0 %364
    %366 = vmax.xlane.f32.xlu0 %v339
    %v367 = vpop.xlane.xlu0 %366
    %368 = vmax.xlane.f32.xlu0 %v340
    %v369 = vpop.xlane.xlu0 %368
    %370 = vmax.xlane.f32.xlu0 %v341
    %v371 = vpop.xlane.xlu0 %370
    %372 = vmax.xlane.f32.xlu0 %v342
    %v373 = vpop.xlane.xlu0 %372
    %374 = vmax.xlane.f32.xlu0 %v343
    %v375 = vpop.xlane.xlu0 %374
    %v376 = vsub.f32 %v328, %v345
    %v377 = vsub.f32 %v329, %v347
    %v378 = vsub.f32 %v330, %v349
    %v379 = vsub.f32 %v331, %v351
    %v380 = vsub.f32 %v332, %v353
    %v381 = vsub.f32 %v333, %v355
    %v382 = vsub.f32 %v334, %v357
    %v383 = vsub.f32 %v335, %v359
    %v384 = vsub.f32 %v336, %v361
    %v385 = vsub.f32 %v337, %v363
    %v386 = vsub.f32 %v338, %v365
    %v387 = vsub.f32 %v339, %v367
    %v388 = vsub.f32 %v340, %v369
    %v389 = vsub.f32 %v341, %v371
    %v390 = vsub.f32 %v342, %v373
    %v391 = vsub.f32 %v343, %v375
    %v392 = vmul.f32 %v376, 1.442695
    %v393 = vpow.pop %v392
    %v394 = vmul.f32 %v377, 1.442695
    %v395 = vpow.pop %v394
    %v396 = vmul.f32 %v378, 1.442695
    %v397 = vpow.pop %v396
    %v398 = vmul.f32 %v379, 1.442695
    %v399 = vpow.pop %v398
    %v400 = vmul.f32 %v380, 1.442695
    %v401 = vpow.pop %v400
    %v402 = vmul.f32 %v381, 1.442695
    %v403 = vpow.pop %v402
    %v404 = vmul.f32 %v382, 1.442695
    %v405 = vpow.pop %v404
    %v406 = vmul.f32 %v383, 1.442695
    %v407 = vpow.pop %v406
    %v408 = vmul.f32 %v384, 1.442695
    %v409 = vpow.pop %v408
    %v410 = vmul.f32 %v385, 1.442695
    %v411 = vpow.pop %v410
    %v412 = vmul.f32 %v386, 1.442695
    %v413 = vpow.pop %v412
    %v414 = vmul.f32 %v387, 1.442695
    %v415 = vpow.pop %v414
    %v416 = vmul.f32 %v388, 1.442695
    %v417 = vpow.pop %v416
    %v418 = vmul.f32 %v389, 1.442695
    %v419 = vpow.pop %v418
    %v420 = vmul.f32 %v390, 1.442695
    %v421 = vpow.pop %v420
    %v422 = vmul.f32 %v391, 1.442695
    %v423 = vpow.pop %v422
    %424 = vadd.xlane.f32.xlu0 %v393
    %v425 = vpop.xlane.xlu0 %424
    %426 = vadd.xlane.f32.xlu0 %v395
    %v427 = vpop.xlane.xlu0 %426
    %428 = vadd.xlane.f32.xlu0 %v397
    %v429 = vpop.xlane.xlu0 %428
    %430 = vadd.xlane.f32.xlu0 %v399
    %v431 = vpop.xlane.xlu0 %430
    %432 = vadd.xlane.f32.xlu0 %v401
    %v433 = vpop.xlane.xlu0 %432
    %434 = vadd.xlane.f32.xlu0 %v403
    %v435 = vpop.xlane.xlu0 %434
    %436 = vadd.xlane.f32.xlu0 %v405
    %v437 = vpop.xlane.xlu0 %436
    %438 = vadd.xlane.f32.xlu0 %v407
    %v439 = vpop.xlane.xlu0 %438
    %440 = vadd.xlane.f32.xlu0 %v409
    %v441 = vpop.xlane.xlu0 %440
    %442 = vadd.xlane.f32.xlu0 %v411
    %v443 = vpop.xlane.xlu0 %442
    %444 = vadd.xlane.f32.xlu0 %v413
    %v445 = vpop.xlane.xlu0 %444
    %446 = vadd.xlane.f32.xlu0 %v415
    %v447 = vpop.xlane.xlu0 %446
    %448 = vadd.xlane.f32.xlu0 %v417
    %v449 = vpop.xlane.xlu0 %448
    %450 = vadd.xlane.f32.xlu0 %v419
    %v451 = vpop.xlane.xlu0 %450
    %452 = vadd.xlane.f32.xlu0 %v421
    %v453 = vpop.xlane.xlu0 %452
    %454 = vadd.xlane.f32.xlu0 %v423
    %v455 = vpop.xlane.xlu0 %454
    %v456 = vrcp.pop %v425
    %v457 = vrcp.pop %v427
    %v458 = vrcp.pop %v429
    %v459 = vrcp.pop %v431
    %v460 = vrcp.pop %v433
    %v461 = vrcp.pop %v435
    %v462 = vrcp.pop %v437
    %v463 = vrcp.pop %v439
    %v464 = vrcp.pop %v441
    %v465 = vrcp.pop %v443
    %v466 = vrcp.pop %v445
    %v467 = vrcp.pop %v447
    %v468 = vrcp.pop %v449
    %v469 = vrcp.pop %v451
    %v470 = vrcp.pop %v453
    %v471 = vrcp.pop %v455
    %v472 = vmul.f32 %v393, %v456
    %v473 = vmul.f32 %v395, %v457
    %v474 = vmul.f32 %v397, %v458
    %v475 = vmul.f32 %v399, %v459
    %v476 = vmul.f32 %v401, %v460
    %v477 = vmul.f32 %v403, %v461
    %v478 = vmul.f32 %v405, %v462
    %v479 = vmul.f32 %v407, %v463
    %v480 = vmul.f32 %v409, %v464
    %v481 = vmul.f32 %v411, %v465
    %v482 = vmul.f32 %v413, %v466
    %v483 = vmul.f32 %v415, %v467
    %v484 = vmul.f32 %v417, %v468
    %v485 = vmul.f32 %v419, %v469
    %v486 = vmul.f32 %v421, %v470
    %v487 = vmul.f32 %v423, %v471
    %488 = vmatprep.subr.mxu0 0.0
    %489 = vmatpush1.xpose.msra.mxu0 %v487
    %490 = vmatprep.subr.mxu0 0.0
    %491 = vmatpush1.xpose.msra.mxu0 %v486
    %492 = vmatprep.subr.mxu0 0.0
    %493 = vmatpush1.xpose.msra.mxu0 %v485
    %494 = vmatprep.subr.mxu0 0.0
    %495 = vmatpush1.xpose.msra.mxu0 %v484
    %496 = vmatprep.subr.mxu0 0.0
    %497 = vmatpush1.xpose.msra.mxu0 %v483
    %498 = vmatprep.subr.mxu0 0.0
    %499 = vmatpush1.xpose.msra.mxu0 %v482
    %500 = vmatprep.subr.mxu0 0.0
    %501 = vmatpush1.xpose.msra.mxu0 %v481
    %502 = vmatprep.subr.mxu0 0.0
    %503 = vmatpush1.xpose.msra.mxu0 %v480
    %504 = vmatprep.subr.mxu0 0.0
    %505 = vmatpush1.xpose.msra.mxu0 %v479
    %506 = vmatprep.subr.mxu0 0.0
    %507 = vmatpush1.xpose.msra.mxu0 %v478
    %508 = vmatprep.subr.mxu0 0.0
    %509 = vmatpush1.xpose.msra.mxu0 %v477
    %510 = vmatprep.subr.mxu0 0.0
    %511 = vmatpush1.xpose.msra.mxu0 %v476
    %512 = vmatprep.subr.mxu0 0.0
    %513 = vmatpush1.xpose.msra.mxu0 %v475
    %514 = vmatprep.subr.mxu0 0.0
    %515 = vmatpush1.xpose.msra.mxu0 %v474
    %516 = vmatprep.subr.mxu0 0.0
    %517 = vmatpush1.xpose.msra.mxu0 %v473
    %518 = vmatprep.subr.mxu0 0.0
    %519 = vmatpush1.xpose.msra.mxu0 %v472
    %520 = vmatprep.subr.mxu0 0.0
    %521 = vmatpush2.xpose.msra.mxu0 0.0
    %522 = vmatprep.subr.mxu0 0.0
    %523 = vmatpush2.xpose.msra.mxu0 0.0
    %524 = vmatprep.subr.mxu0 0.0
    %525 = vmatpush2.xpose.msra.mxu0 0.0
    %526 = vmatprep.subr.mxu0 0.0
    %527 = vmatpush2.xpose.msra.mxu0 0.0
    %528 = vmatprep.subr.mxu0 0.0
    %529 = vmatpush2.xpose.msra.mxu0 0.0
    %530 = vmatprep.subr.mxu0 0.0
    %531 = vmatpush2.xpose.msra.mxu0 0.0
    %532 = vmatprep.subr.mxu0 0.0
    %533 = vmatpush2.xpose.msra.mxu0 0.0
    %534 = vmatprep.subr.mxu0 0.0
    %535 = vmatpush2.xpose.msra.mxu0 0.0
    %536 = vmatprep.subr.mxu0 0.0
    %537 = vmatpush2.xpose.msra.mxu0 0.0
    %538 = vmatprep.subr.mxu0 0.0
    %539 = vmatpush2.xpose.msra.mxu0 0.0
    %540 = vmatprep.subr.mxu0 0.0
    %541 = vmatpush2.xpose.msra.mxu0 0.0
    %542 = vmatprep.subr.mxu0 0.0
    %543 = vmatpush2.xpose.msra.mxu0 0.0
    %544 = vmatprep.subr.mxu0 0.0
    %545 = vmatpush2.xpose.msra.mxu0 0.0
    %546 = vmatprep.subr.mxu0 0.0
    %547 = vmatpush2.xpose.msra.mxu0 0.0
    %548 = vmatprep.subr.mxu0 0.0
    %549 = vmatpush2.xpose.msra.mxu0 0.0
    %550 = vmatprep.subr.mxu0 0.0
    %551 = vmatpush2.xpose.msra.mxu0 0.0
    %552 = vmatprep.mubr.f32.mxu0 0.0
    %553 = vmatmul.mubr.f32.gmra.mxu0 %v100
    %v554 = vpop.f32.mrf.mxu0
    %v555 = vadd.f32 0.0, %v554
    %v556 = vpop.f32.mrf.mxu0
    %557 = vdwg.mxu0
    %559 = vset.pattern.permute.xlu0 0
    %560 = vperm.xlu0 %559, %v81
    %v561 = vpop.permute.xlu0 %560
    %564 = vset.pattern.permute.xlu0 0
    %565 = vperm.xlu0 %564, %v82
    %v566 = vpop.permute.xlu0 %565
    %569 = vset.pattern.permute.xlu0 0
    %570 = vperm.xlu0 %569, %v83
    %v571 = vpop.permute.xlu0 %570
    %v574 = vsel %vm134, %v74, 0
    %v577 = vsel %vm134, %v75, 0
    %v580 = vsel %vm134, %v76, 0
    %582 = vmatprep.subr.mxu0 0.0
    %583 = vmatpush1.msra.mxu0 0.0
    %584 = vmatprep.subr.mxu0 0.0
    %585 = vmatpush1.msra.mxu0 0.0
    %586 = vmatprep.subr.mxu0 0.0
    %587 = vmatpush1.msra.mxu0 0.0
    %588 = vmatprep.subr.mxu0 0.0
    %589 = vmatpush1.msra.mxu0 0.0
    %590 = vmatprep.subr.mxu0 0.0
    %591 = vmatpush1.msra.mxu0 0.0
    %592 = vmatprep.subr.mxu0 0.0
    %593 = vmatpush1.msra.mxu0 0.0
    %594 = vmatprep.subr.mxu0 0.0
    %595 = vmatpush1.msra.mxu0 0.0
    %596 = vmatprep.subr.mxu0 0.0
    %597 = vmatpush1.msra.mxu0 0.0
    %598 = vmatprep.subr.mxu0 0.0
    %599 = vmatpush1.msra.mxu0 0.0
    %600 = vmatprep.subr.mxu0 0.0
    %601 = vmatpush1.msra.mxu0 0.0
    %602 = vmatprep.subr.mxu0 0.0
    %603 = vmatpush1.msra.mxu0 0.0
    %604 = vmatprep.subr.mxu0 0.0
    %605 = vmatpush1.msra.mxu0 0.0
    %606 = vmatprep.subr.mxu0 0.0
    %607 = vmatpush1.msra.mxu0 0.0
    %608 = vmatprep.subr.mxu0 0.0
    %609 = vmatpush1.msra.mxu0 0.0
    %610 = vmatprep.subr.mxu0 0.0
    %611 = vmatpush1.msra.mxu0 0.0
    %612 = vmatprep.subr.mxu0 0.0
    %613 = vmatpush1.msra.mxu0 %v100
    %614 = vmatprep.subr.mxu0 0.0
    %615 = vmatpush2.msra.mxu0 0.0
    %616 = vmatprep.subr.mxu0 0.0
    %617 = vmatpush2.msra.mxu0 0.0
    %618 = vmatprep.subr.mxu0 0.0
    %619 = vmatpush2.msra.mxu0 0.0
    %620 = vmatprep.subr.mxu0 0.0
    %621 = vmatpush2.msra.mxu0 0.0
    %622 = vmatprep.subr.mxu0 0.0
    %623 = vmatpush2.msra.mxu0 0.0
    %624 = vmatprep.subr.mxu0 0.0
    %625 = vmatpush2.msra.mxu0 0.0
    %626 = vmatprep.subr.mxu0 0.0
    %627 = vmatpush2.msra.mxu0 0.0
    %628 = vmatprep.subr.mxu0 0.0
    %629 = vmatpush2.msra.mxu0 0.0
    %630 = vmatprep.subr.mxu0 0.0
    %631 = vmatpush2.msra.mxu0 0.0
    %632 = vmatprep.subr.mxu0 0.0
    %633 = vmatpush2.msra.mxu0 0.0
    %634 = vmatprep.subr.mxu0 0.0
    %635 = vmatpush2.msra.mxu0 0.0
    %636 = vmatprep.subr.mxu0 0.0
    %637 = vmatpush2.msra.mxu0 0.0
    %638 = vmatprep.subr.mxu0 0.0
    %639 = vmatpush2.msra.mxu0 0.0
    %640 = vmatprep.subr.mxu0 0.0
    %641 = vmatpush2.msra.mxu0 0.0
    %642 = vmatprep.subr.mxu0 0.0
    %643 = vmatpush2.msra.mxu0 0.0
    %644 = vmatprep.subr.mxu0 0.0
    %645 = vmatpush2.msra.mxu0 0.0
    %646 = vmatprep.mubr.f32.mxu0 0.0
    %647 = vmatmul.mubr.f32.gmra.mxu0 %v574
    %v648 = vpop.f32.mrf.mxu0
    %v649 = vadd.f32 %v561, %v648
    %v650 = vpop.f32.mrf.mxu0
    %651 = vmatprep.mubr.f32.mxu0 0.0
    %652 = vmatmul.mubr.f32.gmra.mxu0 %v577
    %v653 = vpop.f32.mrf.mxu0
    %v654 = vadd.f32 %v566, %v653
    %v655 = vpop.f32.mrf.mxu0
    %656 = vmatprep.mubr.f32.mxu0 0.0
    %657 = vmatmul.mubr.f32.gmra.mxu0 %v580
    %v658 = vpop.f32.mrf.mxu0
    %v659 = vadd.f32 %v571, %v658
    %v660 = vpop.f32.mrf.mxu0
    %661 = vdwg.mxu0
    %v662 = vxor.u32 %v654, 2147483648
    %v663 = vmul.f32 %v662, 1.442695
    %v664 = vpow.pop %v663
    %v665 = vadd.f32 %v664, 1.0
    %v666 = vrcp.pop %v665
    %v667 = vmul.f32 1.0, %v666
    %v668 = vmul.f32 %v649, %v667
    %v669 = vmax.f32 %v659, 0.0
    %v670 = vstv %s66
    %v671 = vmul.f32 %v670, %v101
    %v672 = vstv %s67
    %v673 = vmul.f32 %v672, %v555
    %v674 = vadd.f32 %v671, %v673
    %v675 = vstv %s68
    %v676 = vmul.f32 %v675, %v668
    %v677 = vadd.f32 %v674, %v676
    %v678 = vstv %s69
    %v679 = vmul.f32 %v678, %v669
    %v680 = vadd.f32 %v677, %v679
    %v681 = vstv %s63
    %v682 = vmul.f32 %v681, %v94
    %v683 = vstv %s64
    %v684 = vmul.f32 %v683, %v95
    %v685 = vadd.f32 %v682, %v684
    %v686 = vstv %s65
    %v687 = vmul.f32 %v686, %v680
    %v688 = vadd.f32 %v685, %v687
    %v689 = vmul.f32 %v688, 2.0
    %690 = vxpose.xlu0.b32.start [1/16] %v688, 128
    %691 = vxpose.xlu0.b32.cont [2/16] 0.0, 128
    %692 = vxpose.xlu0.b32.cont [3/16] 0.0, 128
    %693 = vxpose.xlu0.b32.cont [4/16] 0.0, 128
    %694 = vxpose.xlu0.b32.cont [5/16] 0.0, 128
    %695 = vxpose.xlu0.b32.cont [6/16] 0.0, 128
    %696 = vxpose.xlu0.b32.cont [7/16] 0.0, 128
    %697 = vxpose.xlu0.b32.cont [8/16] 0.0, 128
    %698 = vxpose.xlu0.b32.cont [9/16] 0.0, 128
    %699 = vxpose.xlu0.b32.cont [10/16] 0.0, 128
    %700 = vxpose.xlu0.b32.cont [11/16] 0.0, 128
    %701 = vxpose.xlu0.b32.cont [12/16] 0.0, 128
    %702 = vxpose.xlu0.b32.cont [13/16] 0.0, 128
    %703 = vxpose.xlu0.b32.cont [14/16] 0.0, 128
    %704 = vxpose.xlu0.b32.cont [15/16] 0.0, 128
    %705 = vxpose.xlu0.b32.end [16/16] 0.0, 128
    %v706 = vpop.trf.xlu0
    %v707 = vpop.trf.xlu0
    %v708 = vpop.trf.xlu0
    %v709 = vpop.trf.xlu0
    %v710 = vpop.trf.xlu0
    %v711 = vpop.trf.xlu0
    %v712 = vpop.trf.xlu0
    %v713 = vpop.trf.xlu0
    %v714 = vpop.trf.xlu0
    %v715 = vpop.trf.xlu0
    %v716 = vpop.trf.xlu0
    %v717 = vpop.trf.xlu0
    %v718 = vpop.trf.xlu0
    %v719 = vpop.trf.xlu0
    %v720 = vpop.trf.xlu0
    %v721 = vpop.trf.xlu0
    %v723 = vsel %vm134, %v706, 0
    %v726 = vsel %vm134, %v707, 0
    %v729 = vsel %vm134, %v708, 0
    %v732 = vsel %vm134, %v709, 0
    %v735 = vsel %vm134, %v710, 0
    %v738 = vsel %vm134, %v711, 0
    %v741 = vsel %vm134, %v712, 0
    %v744 = vsel %vm134, %v713, 0
    %v747 = vsel %vm134, %v714, 0
    %v750 = vsel %vm134, %v715, 0
    %v753 = vsel %vm134, %v716, 0
    %v756 = vsel %vm134, %v717, 0
    %v759 = vsel %vm134, %v718, 0
    %v762 = vsel %vm134, %v719, 0
    %v765 = vsel %vm134, %v720, 0
    %v768 = vsel %vm134, %v721, 0
    %770 = vmatprep.subr.mxu0 0.0
    %771 = vmatpush1.msra.mxu0 0.0
    %772 = vmatprep.subr.mxu0 0.0
    %773 = vmatpush1.msra.mxu0 0.0
    %774 = vmatprep.subr.mxu0 0.0
    %775 = vmatpush1.msra.mxu0 0.0
    %776 = vmatprep.subr.mxu0 0.0
    %777 = vmatpush1.msra.mxu0 0.0
    %778 = vmatprep.subr.mxu0 0.0
    %779 = vmatpush1.msra.mxu0 0.0
    %780 = vmatprep.subr.mxu0 0.0
    %781 = vmatpush1.msra.mxu0 0.0
    %782 = vmatprep.subr.mxu0 0.0
    %783 = vmatpush1.msra.mxu0 0.0
    %784 = vmatprep.subr.mxu0 0.0
    %785 = vmatpush1.msra.mxu0 0.0
    %786 = vmatprep.subr.mxu0 0.0
    %787 = vmatpush1.msra.mxu0 0.0
    %788 = vmatprep.subr.mxu0 0.0
    %789 = vmatpush1.msra.mxu0 0.0
    %790 = vmatprep.subr.mxu0 0.0
    %791 = vmatpush1.msra.mxu0 0.0
    %792 = vmatprep.subr.mxu0 0.0
    %793 = vmatpush1.msra.mxu0 0.0
    %794 = vmatprep.subr.mxu0 0.0
    %795 = vmatpush1.msra.mxu0 0.0
    %796 = vmatprep.subr.mxu0 0.0
    %797 = vmatpush1.msra.mxu0 0.0
    %798 = vmatprep.subr.mxu0 0.0
    %799 = vmatpush1.msra.mxu0 0.0
    %800 = vmatprep.subr.mxu0 0.0
    %801 = vmatpush1.msra.mxu0 %v688
    %802 = vmatprep.subr.mxu0 0.0
    %803 = vmatpush2.msra.mxu0 0.0
    %804 = vmatprep.subr.mxu0 0.0
    %805 = vmatpush2.msra.mxu0 0.0
    %806 = vmatprep.subr.mxu0 0.0
    %807 = vmatpush2.msra.mxu0 0.0
    %808 = vmatprep.subr.mxu0 0.0
    %809 = vmatpush2.msra.mxu0 0.0
    %810 = vmatprep.subr.mxu0 0.0
    %811 = vmatpush2.msra.mxu0 0.0
    %812 = vmatprep.subr.mxu0 0.0
    %813 = vmatpush2.msra.mxu0 0.0
    %814 = vmatprep.subr.mxu0 0.0
    %815 = vmatpush2.msra.mxu0 0.0
    %816 = vmatprep.subr.mxu0 0.0
    %817 = vmatpush2.msra.mxu0 0.0
    %818 = vmatprep.subr.mxu0 0.0
    %819 = vmatpush2.msra.mxu0 0.0
    %820 = vmatprep.subr.mxu0 0.0
    %821 = vmatpush2.msra.mxu0 0.0
    %822 = vmatprep.subr.mxu0 0.0
    %823 = vmatpush2.msra.mxu0 0.0
    %824 = vmatprep.subr.mxu0 0.0
    %825 = vmatpush2.msra.mxu0 0.0
    %826 = vmatprep.subr.mxu0 0.0
    %827 = vmatpush2.msra.mxu0 0.0
    %828 = vmatprep.subr.mxu0 0.0
    %829 = vmatpush2.msra.mxu0 0.0
    %830 = vmatprep.subr.mxu0 0.0
    %831 = vmatpush2.msra.mxu0 0.0
    %832 = vmatprep.subr.mxu0 0.0
    %833 = vmatpush2.msra.mxu0 0.0
    %834 = vmatprep.mubr.f32.mxu0 0.0
    %835 = vmatmul.mubr.f32.gmra.mxu0 %v723
    %v836 = vpop.f32.mrf.mxu0
    %v837 = vadd.f32 0.0, %v836
    %v838 = vpop.f32.mrf.mxu0
    %839 = vmatprep.mubr.f32.mxu0 0.0
    %840 = vmatmul.mubr.f32.gmra.mxu0 %v726
    %v841 = vpop.f32.mrf.mxu0
    %v842 = vadd.f32 0.0, %v841
    %v843 = vpop.f32.mrf.mxu0
    %844 = vmatprep.mubr.f32.mxu0 0.0
    %845 = vmatmul.mubr.f32.gmra.mxu0 %v729
    %v846 = vpop.f32.mrf.mxu0
    %v847 = vadd.f32 0.0, %v846
    %v848 = vpop.f32.mrf.mxu0
    %849 = vmatprep.mubr.f32.mxu0 0.0
    %850 = vmatmul.mubr.f32.gmra.mxu0 %v732
    %v851 = vpop.f32.mrf.mxu0
    %v852 = vadd.f32 0.0, %v851
    %v853 = vpop.f32.mrf.mxu0
    %854 = vmatprep.mubr.f32.mxu0 0.0
    %855 = vmatmul.mubr.f32.gmra.mxu0 %v735
    %v856 = vpop.f32.mrf.mxu0
    %v857 = vadd.f32 0.0, %v856
    %v858 = vpop.f32.mrf.mxu0
    %859 = vmatprep.mubr.f32.mxu0 0.0
    %860 = vmatmul.mubr.f32.gmra.mxu0 %v738
    %v861 = vpop.f32.mrf.mxu0
    %v862 = vadd.f32 0.0, %v861
    %v863 = vpop.f32.mrf.mxu0
    %864 = vmatprep.mubr.f32.mxu0 0.0
    %865 = vmatmul.mubr.f32.gmra.mxu0 %v741
    %v866 = vpop.f32.mrf.mxu0
    %v867 = vadd.f32 0.0, %v866
    %v868 = vpop.f32.mrf.mxu0
    %869 = vmatprep.mubr.f32.mxu0 0.0
    %870 = vmatmul.mubr.f32.gmra.mxu0 %v744
    %v871 = vpop.f32.mrf.mxu0
    %v872 = vadd.f32 0.0, %v871
    %v873 = vpop.f32.mrf.mxu0
    %874 = vmatprep.mubr.f32.mxu0 0.0
    %875 = vmatmul.mubr.f32.gmra.mxu0 %v747
    %v876 = vpop.f32.mrf.mxu0
    %v877 = vadd.f32 0.0, %v876
    %v878 = vpop.f32.mrf.mxu0
    %879 = vmatprep.mubr.f32.mxu0 0.0
    %880 = vmatmul.mubr.f32.gmra.mxu0 %v750
    %v881 = vpop.f32.mrf.mxu0
    %v882 = vadd.f32 0.0, %v881
    %v883 = vpop.f32.mrf.mxu0
    %884 = vmatprep.mubr.f32.mxu0 0.0
    %885 = vmatmul.mubr.f32.gmra.mxu0 %v753
    %v886 = vpop.f32.mrf.mxu0
    %v887 = vadd.f32 0.0, %v886
    %v888 = vpop.f32.mrf.mxu0
    %889 = vmatprep.mubr.f32.mxu0 0.0
    %890 = vmatmul.mubr.f32.gmra.mxu0 %v756
    %v891 = vpop.f32.mrf.mxu0
    %v892 = vadd.f32 0.0, %v891
    %v893 = vpop.f32.mrf.mxu0
    %894 = vmatprep.mubr.f32.mxu0 0.0
    %895 = vmatmul.mubr.f32.gmra.mxu0 %v759
    %v896 = vpop.f32.mrf.mxu0
    %v897 = vadd.f32 0.0, %v896
    %v898 = vpop.f32.mrf.mxu0
    %899 = vmatprep.mubr.f32.mxu0 0.0
    %900 = vmatmul.mubr.f32.gmra.mxu0 %v762
    %v901 = vpop.f32.mrf.mxu0
    %v902 = vadd.f32 0.0, %v901
    %v903 = vpop.f32.mrf.mxu0
    %904 = vmatprep.mubr.f32.mxu0 0.0
    %905 = vmatmul.mubr.f32.gmra.mxu0 %v765
    %v906 = vpop.f32.mrf.mxu0
    %v907 = vadd.f32 0.0, %v906
    %v908 = vpop.f32.mrf.mxu0
    %909 = vmatprep.mubr.f32.mxu0 0.0
    %910 = vmatmul.mubr.f32.gmra.mxu0 %v768
    %v911 = vpop.f32.mrf.mxu0
    %v912 = vadd.f32 0.0, %v911
    %v913 = vpop.f32.mrf.mxu0
    %914 = vdwg.mxu0
    %v915 = vmul.f32 %v837, 0.35355338
    %v916 = vmul.f32 %v842, 0.35355338
    %v917 = vmul.f32 %v847, 0.35355338
    %v918 = vmul.f32 %v852, 0.35355338
    %v919 = vmul.f32 %v857, 0.35355338
    %v920 = vmul.f32 %v862, 0.35355338
    %v921 = vmul.f32 %v867, 0.35355338
    %v922 = vmul.f32 %v872, 0.35355338
    %v923 = vmul.f32 %v877, 0.35355338
    %v924 = vmul.f32 %v882, 0.35355338
    %v925 = vmul.f32 %v887, 0.35355338
    %v926 = vmul.f32 %v892, 0.35355338
    %v927 = vmul.f32 %v897, 0.35355338
    %v928 = vmul.f32 %v902, 0.35355338
    %v929 = vmul.f32 %v907, 0.35355338
    %v930 = vmul.f32 %v912, 0.35355338
    %931 = vmax.xlane.f32.xlu0 %v915
    %v932 = vpop.xlane.xlu0 %931
    %933 = vmax.xlane.f32.xlu0 %v916
    %v934 = vpop.xlane.xlu0 %933
    %935 = vmax.xlane.f32.xlu0 %v917
    %v936 = vpop.xlane.xlu0 %935
    %937 = vmax.xlane.f32.xlu0 %v918
    %v938 = vpop.xlane.xlu0 %937
    %939 = vmax.xlane.f32.xlu0 %v919
    %v940 = vpop.xlane.xlu0 %939
    %941 = vmax.xlane.f32.xlu0 %v920
    %v942 = vpop.xlane.xlu0 %941
    %943 = vmax.xlane.f32.xlu0 %v921
    %v944 = vpop.xlane.xlu0 %943
    %945 = vmax.xlane.f32.xlu0 %v922
    %v946 = vpop.xlane.xlu0 %945
    %947 = vmax.xlane.f32.xlu0 %v923
    %v948 = vpop.xlane.xlu0 %947
    %949 = vmax.xlane.f32.xlu0 %v924
    %v950 = vpop.xlane.xlu0 %949
    %951 = vmax.xlane.f32.xlu0 %v925
    %v952 = vpop.xlane.xlu0 %951
    %953 = vmax.xlane.f32.xlu0 %v926
    %v954 = vpop.xlane.xlu0 %953
    %955 = vmax.xlane.f32.xlu0 %v927
    %v956 = vpop.xlane.xlu0 %955
    %957 = vmax.xlane.f32.xlu0 %v928
    %v958 = vpop.xlane.xlu0 %957
    %959 = vmax.xlane.f32.xlu0 %v929
    %v960 = vpop.xlane.xlu0 %959
    %961 = vmax.xlane.f32.xlu0 %v930
    %v962 = vpop.xlane.xlu0 %961
    %v963 = vsub.f32 %v915, %v932
    %v964 = vsub.f32 %v916, %v934
    %v965 = vsub.f32 %v917, %v936
    %v966 = vsub.f32 %v918, %v938
    %v967 = vsub.f32 %v919, %v940
    %v968 = vsub.f32 %v920, %v942
    %v969 = vsub.f32 %v921, %v944
    %v970 = vsub.f32 %v922, %v946
    %v971 = vsub.f32 %v923, %v948
    %v972 = vsub.f32 %v924, %v950
    %v973 = vsub.f32 %v925, %v952
    %v974 = vsub.f32 %v926, %v954
    %v975 = vsub.f32 %v927, %v956
    %v976 = vsub.f32 %v928, %v958
    %v977 = vsub.f32 %v929, %v960
    %v978 = vsub.f32 %v930, %v962
    %v979 = vmul.f32 %v963, 1.442695
    %v980 = vpow.pop %v979
    %v981 = vmul.f32 %v964, 1.442695
    %v982 = vpow.pop %v981
    %v983 = vmul.f32 %v965, 1.442695
    %v984 = vpow.pop %v983
    %v985 = vmul.f32 %v966, 1.442695
    %v986 = vpow.pop %v985
    %v987 = vmul.f32 %v967, 1.442695
    %v988 = vpow.pop %v987
    %v989 = vmul.f32 %v968, 1.442695
    %v990 = vpow.pop %v989
    %v991 = vmul.f32 %v969, 1.442695
    %v992 = vpow.pop %v991
    %v993 = vmul.f32 %v970, 1.442695
    %v994 = vpow.pop %v993
    %v995 = vmul.f32 %v971, 1.442695
    %v996 = vpow.pop %v995
    %v997 = vmul.f32 %v972, 1.442695
    %v998 = vpow.pop %v997
    %v999 = vmul.f32 %v973, 1.442695
    %v1000 = vpow.pop %v999
    %v1001 = vmul.f32 %v974, 1.442695
    %v1002 = vpow.pop %v1001
    %v1003 = vmul.f32 %v975, 1.442695
    %v1004 = vpow.pop %v1003
    %v1005 = vmul.f32 %v976, 1.442695
    %v1006 = vpow.pop %v1005
    %v1007 = vmul.f32 %v977, 1.442695
    %v1008 = vpow.pop %v1007
    %v1009 = vmul.f32 %v978, 1.442695
    %v1010 = vpow.pop %v1009
    %1011 = vadd.xlane.f32.xlu0 %v980
    %v1012 = vpop.xlane.xlu0 %1011
    %1013 = vadd.xlane.f32.xlu0 %v982
    %v1014 = vpop.xlane.xlu0 %1013
    %1015 = vadd.xlane.f32.xlu0 %v984
    %v1016 = vpop.xlane.xlu0 %1015
    %1017 = vadd.xlane.f32.xlu0 %v986
    %v1018 = vpop.xlane.xlu0 %1017
    %1019 = vadd.xlane.f32.xlu0 %v988
    %v1020 = vpop.xlane.xlu0 %1019
    %1021 = vadd.xlane.f32.xlu0 %v990
    %v1022 = vpop.xlane.xlu0 %1021
    %1023 = vadd.xlane.f32.xlu0 %v992
    %v1024 = vpop.xlane.xlu0 %1023
    %1025 = vadd.xlane.f32.xlu0 %v994
    %v1026 = vpop.xlane.xlu0 %1025
    %1027 = vadd.xlane.f32.xlu0 %v996
    %v1028 = vpop.xlane.xlu0 %1027
    %1029 = vadd.xlane.f32.xlu0 %v998
    %v1030 = vpop.xlane.xlu0 %1029
    %1031 = vadd.xlane.f32.xlu0 %v1000
    %v1032 = vpop.xlane.xlu0 %1031
    %1033 = vadd.xlane.f32.xlu0 %v1002
    %v1034 = vpop.xlane.xlu0 %1033
    %1035 = vadd.xlane.f32.xlu0 %v1004
    %v1036 = vpop.xlane.xlu0 %1035
    %1037 = vadd.xlane.f32.xlu0 %v1006
    %v1038 = vpop.xlane.xlu0 %1037
    %1039 = vadd.xlane.f32.xlu0 %v1008
    %v1040 = vpop.xlane.xlu0 %1039
    %1041 = vadd.xlane.f32.xlu0 %v1010
    %v1042 = vpop.xlane.xlu0 %1041
    %v1043 = vrcp.pop %v1012
    %v1044 = vrcp.pop %v1014
    %v1045 = vrcp.pop %v1016
    %v1046 = vrcp.pop %v1018
    %v1047 = vrcp.pop %v1020
    %v1048 = vrcp.pop %v1022
    %v1049 = vrcp.pop %v1024
    %v1050 = vrcp.pop %v1026
    %v1051 = vrcp.pop %v1028
    %v1052 = vrcp.pop %v1030
    %v1053 = vrcp.pop %v1032
    %v1054 = vrcp.pop %v1034
    %v1055 = vrcp.pop %v1036
    %v1056 = vrcp.pop %v1038
    %v1057 = vrcp.pop %v1040
    %v1058 = vrcp.pop %v1042
    %v1059 = vmul.f32 %v980, %v1043
    %v1060 = vmul.f32 %v982, %v1044
    %v1061 = vmul.f32 %v984, %v1045
    %v1062 = vmul.f32 %v986, %v1046
    %v1063 = vmul.f32 %v988, %v1047
    %v1064 = vmul.f32 %v990, %v1048
    %v1065 = vmul.f32 %v992, %v1049
    %v1066 = vmul.f32 %v994, %v1050
    %v1067 = vmul.f32 %v996, %v1051
    %v1068 = vmul.f32 %v998, %v1052
    %v1069 = vmul.f32 %v1000, %v1053
    %v1070 = vmul.f32 %v1002, %v1054
    %v1071 = vmul.f32 %v1004, %v1055
    %v1072 = vmul.f32 %v1006, %v1056
    %v1073 = vmul.f32 %v1008, %v1057
    %v1074 = vmul.f32 %v1010, %v1058
    %1075 = vmatprep.subr.mxu0 0.0
    %1076 = vmatpush1.xpose.msra.mxu0 %v1074
    %1077 = vmatprep.subr.mxu0 0.0
    %1078 = vmatpush1.xpose.msra.mxu0 %v1073
    %1079 = vmatprep.subr.mxu0 0.0
    %1080 = vmatpush1.xpose.msra.mxu0 %v1072
    %1081 = vmatprep.subr.mxu0 0.0
    %1082 = vmatpush1.xpose.msra.mxu0 %v1071
    %1083 = vmatprep.subr.mxu0 0.0
    %1084 = vmatpush1.xpose.msra.mxu0 %v1070
    %1085 = vmatprep.subr.mxu0 0.0
    %1086 = vmatpush1.xpose.msra.mxu0 %v1069
    %1087 = vmatprep.subr.mxu0 0.0
    %1088 = vmatpush1.xpose.msra.mxu0 %v1068
    %1089 = vmatprep.subr.mxu0 0.0
    %1090 = vmatpush1.xpose.msra.mxu0 %v1067
    %1091 = vmatprep.subr.mxu0 0.0
    %1092 = vmatpush1.xpose.msra.mxu0 %v1066
    %1093 = vmatprep.subr.mxu0 0.0
    %1094 = vmatpush1.xpose.msra.mxu0 %v1065
    %1095 = vmatprep.subr.mxu0 0.0
    %1096 = vmatpush1.xpose.msra.mxu0 %v1064
    %1097 = vmatprep.subr.mxu0 0.0
    %1098 = vmatpush1.xpose.msra.mxu0 %v1063
    %1099 = vmatprep.subr.mxu0 0.0
    %1100 = vmatpush1.xpose.msra.mxu0 %v1062
    %1101 = vmatprep.subr.mxu0 0.0
    %1102 = vmatpush1.xpose.msra.mxu0 %v1061
    %1103 = vmatprep.subr.mxu0 0.0
    %1104 = vmatpush1.xpose.msra.mxu0 %v1060
    %1105 = vmatprep.subr.mxu0 0.0
    %1106 = vmatpush1.xpose.msra.mxu0 %v1059
    %1107 = vmatprep.subr.mxu0 0.0
    %1108 = vmatpush2.xpose.msra.mxu0 0.0
    %1109 = vmatprep.subr.mxu0 0.0
    %1110 = vmatpush2.xpose.msra.mxu0 0.0
    %1111 = vmatprep.subr.mxu0 0.0
    %1112 = vmatpush2.xpose.msra.mxu0 0.0
    %1113 = vmatprep.subr.mxu0 0.0
    %1114 = vmatpush2.xpose.msra.mxu0 0.0
    %1115 = vmatprep.subr.mxu0 0.0
    %1116 = vmatpush2.xpose.msra.mxu0 0.0
    %1117 = vmatprep.subr.mxu0 0.0
    %1118 = vmatpush2.xpose.msra.mxu0 0.0
    %1119 = vmatprep.subr.mxu0 0.0
    %1120 = vmatpush2.xpose.msra.mxu0 0.0
    %1121 = vmatprep.subr.mxu0 0.0
    %1122 = vmatpush2.xpose.msra.mxu0 0.0
    %1123 = vmatprep.subr.mxu0 0.0
    %1124 = vmatpush2.xpose.msra.mxu0 0.0
    %1125 = vmatprep.subr.mxu0 0.0
    %1126 = vmatpush2.xpose.msra.mxu0 0.0
    %1127 = vmatprep.subr.mxu0 0.0
    %1128 = vmatpush2.xpose.msra.mxu0 0.0
    %1129 = vmatprep.subr.mxu0 0.0
    %1130 = vmatpush2.xpose.msra.mxu0 0.0
    %1131 = vmatprep.subr.mxu0 0.0
    %1132 = vmatpush2.xpose.msra.mxu0 0.0
    %1133 = vmatprep.subr.mxu0 0.0
    %1134 = vmatpush2.xpose.msra.mxu0 0.0
    %1135 = vmatprep.subr.mxu0 0.0
    %1136 = vmatpush2.xpose.msra.mxu0 0.0
    %1137 = vmatprep.subr.mxu0 0.0
    %1138 = vmatpush2.xpose.msra.mxu0 0.0
    %1139 = vmatprep.mubr.f32.mxu0 0.0
    %1140 = vmatmul.mubr.f32.gmra.mxu0 %v688
    %v1141 = vpop.f32.mrf.mxu0
    %v1142 = vadd.f32 0.0, %v1141
    %v1143 = vpop.f32.mrf.mxu0
    %1144 = vdwg.mxu0
    %1146 = vset.pattern.permute.xlu0 0
    %1147 = vperm.xlu0 %1146, %v85
    %v1148 = vpop.permute.xlu0 %1147
    %1151 = vset.pattern.permute.xlu0 0
    %1152 = vperm.xlu0 %1151, %v86
    %v1153 = vpop.permute.xlu0 %1152
    %1156 = vset.pattern.permute.xlu0 0
    %1157 = vperm.xlu0 %1156, %v87
    %v1158 = vpop.permute.xlu0 %1157
    %v1161 = vsel %vm134, %v78, 0
    %v1164 = vsel %vm134, %v79, 0
    %v1167 = vsel %vm134, %v80, 0
    %1169 = vmatprep.subr.mxu0 0.0
    %1170 = vmatpush1.msra.mxu0 0.0
    %1171 = vmatprep.subr.mxu0 0.0
    %1172 = vmatpush1.msra.mxu0 0.0
    %1173 = vmatprep.subr.mxu0 0.0
    %1174 = vmatpush1.msra.mxu0 0.0
    %1175 = vmatprep.subr.mxu0 0.0
    %1176 = vmatpush1.msra.mxu0 0.0
    %1177 = vmatprep.subr.mxu0 0.0
    %1178 = vmatpush1.msra.mxu0 0.0
    %1179 = vmatprep.subr.mxu0 0.0
    %1180 = vmatpush1.msra.mxu0 0.0
    %1181 = vmatprep.subr.mxu0 0.0
    %1182 = vmatpush1.msra.mxu0 0.0
    %1183 = vmatprep.subr.mxu0 0.0
    %1184 = vmatpush1.msra.mxu0 0.0
    %1185 = vmatprep.subr.mxu0 0.0
    %1186 = vmatpush1.msra.mxu0 0.0
    %1187 = vmatprep.subr.mxu0 0.0
    %1188 = vmatpush1.msra.mxu0 0.0
    %1189 = vmatprep.subr.mxu0 0.0
    %1190 = vmatpush1.msra.mxu0 0.0
    %1191 = vmatprep.subr.mxu0 0.0
    %1192 = vmatpush1.msra.mxu0 0.0
    %1193 = vmatprep.subr.mxu0 0.0
    %1194 = vmatpush1.msra.mxu0 0.0
    %1195 = vmatprep.subr.mxu0 0.0
    %1196 = vmatpush1.msra.mxu0 0.0
    %1197 = vmatprep.subr.mxu0 0.0
    %1198 = vmatpush1.msra.mxu0 0.0
    %1199 = vmatprep.subr.mxu0 0.0
    %1200 = vmatpush1.msra.mxu0 %v688
    %1201 = vmatprep.subr.mxu0 0.0
    %1202 = vmatpush2.msra.mxu0 0.0
    %1203 = vmatprep.subr.mxu0 0.0
    %1204 = vmatpush2.msra.mxu0 0.0
    %1205 = vmatprep.subr.mxu0 0.0
    %1206 = vmatpush2.msra.mxu0 0.0
    %1207 = vmatprep.subr.mxu0 0.0
    %1208 = vmatpush2.msra.mxu0 0.0
    %1209 = vmatprep.subr.mxu0 0.0
    %1210 = vmatpush2.msra.mxu0 0.0
    %1211 = vmatprep.subr.mxu0 0.0
    %1212 = vmatpush2.msra.mxu0 0.0
    %1213 = vmatprep.subr.mxu0 0.0
    %1214 = vmatpush2.msra.mxu0 0.0
    %1215 = vmatprep.subr.mxu0 0.0
    %1216 = vmatpush2.msra.mxu0 0.0
    %1217 = vmatprep.subr.mxu0 0.0
    %1218 = vmatpush2.msra.mxu0 0.0
    %1219 = vmatprep.subr.mxu0 0.0
    %1220 = vmatpush2.msra.mxu0 0.0
    %1221 = vmatprep.subr.mxu0 0.0
    %1222 = vmatpush2.msra.mxu0 0.0
    %1223 = vmatprep.subr.mxu0 0.0
    %1224 = vmatpush2.msra.mxu0 0.0
    %1225 = vmatprep.subr.mxu0 0.0
    %1226 = vmatpush2.msra.mxu0 0.0
    %1227 = vmatprep.subr.mxu0 0.0
    %1228 = vmatpush2.msra.mxu0 0.0
    %1229 = vmatprep.subr.mxu0 0.0
    %1230 = vmatpush2.msra.mxu0 0.0
    %1231 = vmatprep.subr.mxu0 0.0
    %1232 = vmatpush2.msra.mxu0 0.0
    %1233 = vmatprep.mubr.f32.mxu0 0.0
    %1234 = vmatmul.mubr.f32.gmra.mxu0 %v1161
    %v1235 = vpop.f32.mrf.mxu0
    %v1236 = vadd.f32 %v1148, %v1235
    %v1237 = vpop.f32.mrf.mxu0
    %1238 = vmatprep.mubr.f32.mxu0 0.0
    %1239 = vmatmul.mubr.f32.gmra.mxu0 %v1164
    %v1240 = vpop.f32.mrf.mxu0
    %v1241 = vadd.f32 %v1153, %v1240
    %v1242 = vpop.f32.mrf.mxu0
    %1243 = vmatprep.mubr.f32.mxu0 0.0
    %1244 = vmatmul.mubr.f32.gmra.mxu0 %v1167
    %v1245 = vpop.f32.mrf.mxu0
    %v1246 = vadd.f32 %v1158, %v1245
    %v1247 = vpop.f32.mrf.mxu0
    %1248 = vdwg.mxu0
    %v1249 = vxor.u32 %v1241, 2147483648
    %v1250 = vmul.f32 %v1249, 1.442695
    %v1251 = vpow.pop %v1250
    %v1252 = vadd.f32 %v1251, 1.0
    %v1253 = vrcp.pop %v1252
    %v1254 = vmul.f32 1.0, %v1253
    %v1255 = vmul.f32 %v1236, %v1254
    %v1256 = vmax.f32 %v1246, 0.0
    %v1257 = vstv %s70
    %v1258 = vmul.f32 %v1257, %v689
    %v1259 = vstv %s71
    %v1260 = vmul.f32 %v1259, %v1142
    %v1261 = vadd.f32 %v1258, %v1260
    %v1262 = vstv %s72
    %v1263 = vmul.f32 %v1262, %v1255
    %v1264 = vadd.f32 %v1261, %v1263
    %v1265 = vstv %s73
    %v1266 = vmul.f32 %v1265, %v1256
    %v1267 = vadd.f32 %v1264, %v1266
    %v1269 = vsel %vm134, %v88, 0
    %1271 = vmatprep.subr.mxu0 0.0
    %1272 = vmatpush1.msra.mxu0 0.0
    %1273 = vmatprep.subr.mxu0 0.0
    %1274 = vmatpush1.msra.mxu0 0.0
    %1275 = vmatprep.subr.mxu0 0.0
    %1276 = vmatpush1.msra.mxu0 0.0
    %1277 = vmatprep.subr.mxu0 0.0
    %1278 = vmatpush1.msra.mxu0 0.0
    %1279 = vmatprep.subr.mxu0 0.0
    %1280 = vmatpush1.msra.mxu0 0.0
    %1281 = vmatprep.subr.mxu0 0.0
    %1282 = vmatpush1.msra.mxu0 0.0
    %1283 = vmatprep.subr.mxu0 0.0
    %1284 = vmatpush1.msra.mxu0 0.0
    %1285 = vmatprep.subr.mxu0 0.0
    %1286 = vmatpush1.msra.mxu0 0.0
    %1287 = vmatprep.subr.mxu0 0.0
    %1288 = vmatpush1.msra.mxu0 0.0
    %1289 = vmatprep.subr.mxu0 0.0
    %1290 = vmatpush1.msra.mxu0 0.0
    %1291 = vmatprep.subr.mxu0 0.0
    %1292 = vmatpush1.msra.mxu0 0.0
    %1293 = vmatprep.subr.mxu0 0.0
    %1294 = vmatpush1.msra.mxu0 0.0
    %1295 = vmatprep.subr.mxu0 0.0
    %1296 = vmatpush1.msra.mxu0 0.0
    %1297 = vmatprep.subr.mxu0 0.0
    %1298 = vmatpush1.msra.mxu0 0.0
    %1299 = vmatprep.subr.mxu0 0.0
    %1300 = vmatpush1.msra.mxu0 0.0
    %1301 = vmatprep.subr.mxu0 0.0
    %1302 = vmatpush1.msra.mxu0 %v680
    %1303 = vmatprep.subr.mxu0 0.0
    %1304 = vmatpush2.msra.mxu0 0.0
    %1305 = vmatprep.subr.mxu0 0.0
    %1306 = vmatpush2.msra.mxu0 0.0
    %1307 = vmatprep.subr.mxu0 0.0
    %1308 = vmatpush2.msra.mxu0 0.0
    %1309 = vmatprep.subr.mxu0 0.0
    %1310 = vmatpush2.msra.mxu0 0.0
    %1311 = vmatprep.subr.mxu0 0.0
    %1312 = vmatpush2.msra.mxu0 0.0
    %1313 = vmatprep.subr.mxu0 0.0
    %1314 = vmatpush2.msra.mxu0 0.0
    %1315 = vmatprep.subr.mxu0 0.0
    %1316 = vmatpush2.msra.mxu0 0.0
    %1317 = vmatprep.subr.mxu0 0.0
    %1318 = vmatpush2.msra.mxu0 0.0
    %1319 = vmatprep.subr.mxu0 0.0
    %1320 = vmatpush2.msra.mxu0 0.0
    %1321 = vmatprep.subr.mxu0 0.0
    %1322 = vmatpush2.msra.mxu0 0.0
    %1323 = vmatprep.subr.mxu0 0.0
    %1324 = vmatpush2.msra.mxu0 0.0
    %1325 = vmatprep.subr.mxu0 0.0
    %1326 = vmatpush2.msra.mxu0 0.0
    %1327 = vmatprep.subr.mxu0 0.0
    %1328 = vmatpush2.msra.mxu0 0.0
    %1329 = vmatprep.subr.mxu0 0.0
    %1330 = vmatpush2.msra.mxu0 0.0
    %1331 = vmatprep.subr.mxu0 0.0
    %1332 = vmatpush2.msra.mxu0 0.0
    %1333 = vmatprep.subr.mxu0 0.0
    %1334 = vmatpush2.msra.mxu0 0.0
    %1335 = vmatprep.mubr.f32.mxu0 0.0
    %1336 = vmatmul.mubr.f32.gmra.mxu0 %v1269
    %v1337 = vpop.f32.mrf.mxu0
    %v1338 = vadd.f32 0.0, %v1337
    %v1339 = vpop.f32.mrf.mxu0
    %1340 = vdwg.mxu0
    %1342 = vset.pattern.permute.xlu0 0
    %1343 = vperm.xlu0 %1342, %v91
    %v1344 = vpop.permute.xlu0 %1343
    %v1346 = vadd.f32 %v1344, %v1338
    %v1348 = vsel %vm134, %v90, 0
    %1350 = vmatprep.subr.mxu0 0.0
    %1351 = vmatpush1.msra.mxu0 0.0
    %1352 = vmatprep.subr.mxu0 0.0
    %1353 = vmatpush1.msra.mxu0 0.0
    %1354 = vmatprep.subr.mxu0 0.0
    %1355 = vmatpush1.msra.mxu0 0.0
    %1356 = vmatprep.subr.mxu0 0.0
    %1357 = vmatpush1.msra.mxu0 0.0
    %1358 = vmatprep.subr.mxu0 0.0
    %1359 = vmatpush1.msra.mxu0 0.0
    %1360 = vmatprep.subr.mxu0 0.0
    %1361 = vmatpush1.msra.mxu0 0.0
    %1362 = vmatprep.subr.mxu0 0.0
    %1363 = vmatpush1.msra.mxu0 0.0
    %1364 = vmatprep.subr.mxu0 0.0
    %1365 = vmatpush1.msra.mxu0 0.0
    %1366 = vmatprep.subr.mxu0 0.0
    %1367 = vmatpush1.msra.mxu0 0.0
    %1368 = vmatprep.subr.mxu0 0.0
    %1369 = vmatpush1.msra.mxu0 0.0
    %1370 = vmatprep.subr.mxu0 0.0
    %1371 = vmatpush1.msra.mxu0 0.0
    %1372 = vmatprep.subr.mxu0 0.0
    %1373 = vmatpush1.msra.mxu0 0.0
    %1374 = vmatprep.subr.mxu0 0.0
    %1375 = vmatpush1.msra.mxu0 0.0
    %1376 = vmatprep.subr.mxu0 0.0
    %1377 = vmatpush1.msra.mxu0 0.0
    %1378 = vmatprep.subr.mxu0 0.0
    %1379 = vmatpush1.msra.mxu0 0.0
    %1380 = vmatprep.subr.mxu0 0.0
    %1381 = vmatpush1.msra.mxu0 %v1267
    %1382 = vmatprep.subr.mxu0 0.0
    %1383 = vmatpush2.msra.mxu0 0.0
    %1384 = vmatprep.subr.mxu0 0.0
    %1385 = vmatpush2.msra.mxu0 0.0
    %1386 = vmatprep.subr.mxu0 0.0
    %1387 = vmatpush2.msra.mxu0 0.0
    %1388 = vmatprep.subr.mxu0 0.0
    %1389 = vmatpush2.msra.mxu0 0.0
    %1390 = vmatprep.subr.mxu0 0.0
    %1391 = vmatpush2.msra.mxu0 0.0
    %1392 = vmatprep.subr.mxu0 0.0
    %1393 = vmatpush2.msra.mxu0 0.0
    %1394 = vmatprep.subr.mxu0 0.0
    %1395 = vmatpush2.msra.mxu0 0.0
    %1396 = vmatprep.subr.mxu0 0.0
    %1397 = vmatpush2.msra.mxu0 0.0
    %1398 = vmatprep.subr.mxu0 0.0
    %1399 = vmatpush2.msra.mxu0 0.0
    %1400 = vmatprep.subr.mxu0 0.0
    %1401 = vmatpush2.msra.mxu0 0.0
    %1402 = vmatprep.subr.mxu0 0.0
    %1403 = vmatpush2.msra.mxu0 0.0
    %1404 = vmatprep.subr.mxu0 0.0
    %1405 = vmatpush2.msra.mxu0 0.0
    %1406 = vmatprep.subr.mxu0 0.0
    %1407 = vmatpush2.msra.mxu0 0.0
    %1408 = vmatprep.subr.mxu0 0.0
    %1409 = vmatpush2.msra.mxu0 0.0
    %1410 = vmatprep.subr.mxu0 0.0
    %1411 = vmatpush2.msra.mxu0 0.0
    %1412 = vmatprep.subr.mxu0 0.0
    %1413 = vmatpush2.msra.mxu0 0.0
    %1414 = vmatprep.mubr.f32.mxu0 0.0
    %1415 = vmatmul.mubr.f32.gmra.mxu0 %v1348
    %v1416 = vpop.f32.mrf.mxu0
    %v1417 = vadd.f32 0.0, %v1416
    %v1418 = vpop.f32.mrf.mxu0
    %1419 = vdwg.mxu0
    %v1420 = vadd.f32 %v1346, %v1417
    %v1421 = vmax.f32 %v1420, 0.0
    %v1422 = vadd.f32 %v1421, %v94
    %1423 = vadd.xlane.f32.xlu0 %v1422
    %v1424 = vpop.xlane.xlu0 %1423
    %v1425 = vrot.slane %v1424, 4
    %v1426 = vadd.f32 %v1424, %v1425
    %v1427 = vrot.slane %v1426, 2
    %v1428 = vadd.f32 %v1426, %v1427
    %v1429 = vrot.slane %v1428, 1
    %v1430 = vadd.f32 %v1428, %v1429
    %s1431 = vtos %v1430
    %v1432 = vstv %s1431
    %v1433 = vmul.f32 %v1432, 0.0009765625
    %v1434 = vmul.f32 %v1422, %v1422
    %1435 = vadd.xlane.f32.xlu0 %v1434
    %v1436 = vpop.xlane.xlu0 %1435
    %v1437 = vrot.slane %v1436, 4
    %v1438 = vadd.f32 %v1436, %v1437
    %v1439 = vrot.slane %v1438, 2
    %v1440 = vadd.f32 %v1438, %v1439
    %v1441 = vrot.slane %v1440, 1
    %v1442 = vadd.f32 %v1440, %v1441
    %s1443 = vtos %v1442
    %v1444 = vstv %s1443
    %v1445 = vmul.f32 %v1444, 0.0009765625
    %v1446 = vmul.f32 %v1433, %v1433
    %v1447 = vsub.f32 %v1445, %v1446
    %v1448 = vsub.f32 %v1422, %v1433
    %v1449 = vadd.f32 %v1447, 1e-05
    %v1450 = vrsqrt.pop %v1449
    %v1451 = vmul.f32 %v1448, %v1450
    %v1452 = vmul.f32 %v1451, %v92
    %v1453 = vadd.f32 %v1452, %v93
    %1454 = vst [vmem:[#allocation7] sm:$0xff] %v1453
    %s1455 = scalar_lea.vmem %s0, 8
    %v1456 = vld [vmem:[%s1455] sm:$0xff]
    %s1457 = scalar_lea.vmem %s1, 8
    %v1458 = vld [vmem:[%s1457] sm:$0xff]
    %v1459 = vmul.f32 %v96, %v1456
    %v1460 = vmul.f32 %v98, %v1458
    %v1461 = vadd.f32 %v1459, %v1460
    %v1462 = vmul.f32 %v1461, 2.0
    %1463 = vxpose.xlu0.b32.start [1/16] %v1461, 128
    %1464 = vxpose.xlu0.b32.cont [2/16] 0.0, 128
    %1465 = vxpose.xlu0.b32.cont [3/16] 0.0, 128
    %1466 = vxpose.xlu0.b32.cont [4/16] 0.0, 128
    %1467 = vxpose.xlu0.b32.cont [5/16] 0.0, 128
    %1468 = vxpose.xlu0.b32.cont [6/16] 0.0, 128
    %1469 = vxpose.xlu0.b32.cont [7/16] 0.0, 128
    %1470 = vxpose.xlu0.b32.cont [8/16] 0.0, 128
    %1471 = vxpose.xlu0.b32.cont [9/16] 0.0, 128
    %1472 = vxpose.xlu0.b32.cont [10/16] 0.0, 128
    %1473 = vxpose.xlu0.b32.cont [11/16] 0.0, 128
    %1474 = vxpose.xlu0.b32.cont [12/16] 0.0, 128
    %1475 = vxpose.xlu0.b32.cont [13/16] 0.0, 128
    %1476 = vxpose.xlu0.b32.cont [14/16] 0.0, 128
    %1477 = vxpose.xlu0.b32.cont [15/16] 0.0, 128
    %1478 = vxpose.xlu0.b32.end [16/16] 0.0, 128
    %v1479 = vpop.trf.xlu0
    %v1480 = vpop.trf.xlu0
    %v1481 = vpop.trf.xlu0
    %v1482 = vpop.trf.xlu0
    %v1483 = vpop.trf.xlu0
    %v1484 = vpop.trf.xlu0
    %v1485 = vpop.trf.xlu0
    %v1486 = vpop.trf.xlu0
    %v1487 = vpop.trf.xlu0
    %v1488 = vpop.trf.xlu0
    %v1489 = vpop.trf.xlu0
    %v1490 = vpop.trf.xlu0
    %v1491 = vpop.trf.xlu0
    %v1492 = vpop.trf.xlu0
    %v1493 = vpop.trf.xlu0
    %v1494 = vpop.trf.xlu0
    %v1496 = vsel %vm134, %v1479, 0
    %v1499 = vsel %vm134, %v1480, 0
    %v1502 = vsel %vm134, %v1481, 0
    %v1505 = vsel %vm134, %v1482, 0
    %v1508 = vsel %vm134, %v1483, 0
    %v1511 = vsel %vm134, %v1484, 0
    %v1514 = vsel %vm134, %v1485, 0
    %v1517 = vsel %vm134, %v1486, 0
    %v1520 = vsel %vm134, %v1487, 0
    %v1523 = vsel %vm134, %v1488, 0
    %v1526 = vsel %vm134, %v1489, 0
    %v1529 = vsel %vm134, %v1490, 0
    %v1532 = vsel %vm134, %v1491, 0
    %v1535 = vsel %vm134, %v1492, 0
    %v1538 = vsel %vm134, %v1493, 0
    %v1541 = vsel %vm134, %v1494, 0
    %1543 = vmatprep.subr.mxu0 0.0
    %1544 = vmatpush1.msra.mxu0 0.0
    %1545 = vmatprep.subr.mxu0 0.0
    %1546 = vmatpush1.msra.mxu0 0.0
    %1547 = vmatprep.subr.mxu0 0.0
    %1548 = vmatpush1.msra.mxu0 0.0
    %1549 = vmatprep.subr.mxu0 0.0
    %1550 = vmatpush1.msra.mxu0 0.0
    %1551 = vmatprep.subr.mxu0 0.0
    %1552 = vmatpush1.msra.mxu0 0.0
    %1553 = vmatprep.subr.mxu0 0.0
    %1554 = vmatpush1.msra.mxu0 0.0
    %1555 = vmatprep.subr.mxu0 0.0
    %1556 = vmatpush1.msra.mxu0 0.0
    %1557 = vmatprep.subr.mxu0 0.0
    %1558 = vmatpush1.msra.mxu0 0.0
    %1559 = vmatprep.subr.mxu0 0.0
    %1560 = vmatpush1.msra.mxu0 0.0
    %1561 = vmatprep.subr.mxu0 0.0
    %1562 = vmatpush1.msra.mxu0 0.0
    %1563 = vmatprep.subr.mxu0 0.0
    %1564 = vmatpush1.msra.mxu0 0.0
    %1565 = vmatprep.subr.mxu0 0.0
    %1566 = vmatpush1.msra.mxu0 0.0
    %1567 = vmatprep.subr.mxu0 0.0
    %1568 = vmatpush1.msra.mxu0 0.0
    %1569 = vmatprep.subr.mxu0 0.0
    %1570 = vmatpush1.msra.mxu0 0.0
    %1571 = vmatprep.subr.mxu0 0.0
    %1572 = vmatpush1.msra.mxu0 0.0
    %1573 = vmatprep.subr.mxu0 0.0
    %1574 = vmatpush1.msra.mxu0 %v1461
    %1575 = vmatprep.subr.mxu0 0.0
    %1576 = vmatpush2.msra.mxu0 0.0
    %1577 = vmatprep.subr.mxu0 0.0
    %1578 = vmatpush2.msra.mxu0 0.0
    %1579 = vmatprep.subr.mxu0 0.0
    %1580 = vmatpush2.msra.mxu0 0.0
    %1581 = vmatprep.subr.mxu0 0.0
    %1582 = vmatpush2.msra.mxu0 0.0
    %1583 = vmatprep.subr.mxu0 0.0
    %1584 = vmatpush2.msra.mxu0 0.0
    %1585 = vmatprep.subr.mxu0 0.0
    %1586 = vmatpush2.msra.mxu0 0.0
    %1587 = vmatprep.subr.mxu0 0.0
    %1588 = vmatpush2.msra.mxu0 0.0
    %1589 = vmatprep.subr.mxu0 0.0
    %1590 = vmatpush2.msra.mxu0 0.0
    %1591 = vmatprep.subr.mxu0 0.0
    %1592 = vmatpush2.msra.mxu0 0.0
    %1593 = vmatprep.subr.mxu0 0.0
    %1594 = vmatpush2.msra.mxu0 0.0
    %1595 = vmatprep.subr.mxu0 0.0
    %1596 = vmatpush2.msra.mxu0 0.0
    %1597 = vmatprep.subr.mxu0 0.0
    %1598 = vmatpush2.msra.mxu0 0.0
    %1599 = vmatprep.subr.mxu0 0.0
    %1600 = vmatpush2.msra.mxu0 0.0
    %1601 = vmatprep.subr.mxu0 0.0
    %1602 = vmatpush2.msra.mxu0 0.0
    %1603 = vmatprep.subr.mxu0 0.0
    %1604 = vmatpush2.msra.mxu0 0.0
    %1605 = vmatprep.subr.mxu0 0.0
    %1606 = vmatpush2.msra.mxu0 0.0
    %1607 = vmatprep.mubr.f32.mxu0 0.0
    %1608 = vmatmul.mubr.f32.gmra.mxu0 %v1496
    %v1609 = vpop.f32.mrf.mxu0
    %v1610 = vadd.f32 0.0, %v1609
    %v1611 = vpop.f32.mrf.mxu0
    %1612 = vmatprep.mubr.f32.mxu0 0.0
    %1613 = vmatmul.mubr.f32.gmra.mxu0 %v1499
    %v1614 = vpop.f32.mrf.mxu0
    %v1615 = vadd.f32 0.0, %v1614
    %v1616 = vpop.f32.mrf.mxu0
    %1617 = vmatprep.mubr.f32.mxu0 0.0
    %1618 = vmatmul.mubr.f32.gmra.mxu0 %v1502
    %v1619 = vpop.f32.mrf.mxu0
    %v1620 = vadd.f32 0.0, %v1619
    %v1621 = vpop.f32.mrf.mxu0
    %1622 = vmatprep.mubr.f32.mxu0 0.0
    %1623 = vmatmul.mubr.f32.gmra.mxu0 %v1505
    %v1624 = vpop.f32.mrf.mxu0
    %v1625 = vadd.f32 0.0, %v1624
    %v1626 = vpop.f32.mrf.mxu0
    %1627 = vmatprep.mubr.f32.mxu0 0.0
    %1628 = vmatmul.mubr.f32.gmra.mxu0 %v1508
    %v1629 = vpop.f32.mrf.mxu0
    %v1630 = vadd.f32 0.0, %v1629
    %v1631 = vpop.f32.mrf.mxu0
    %1632 = vmatprep.mubr.f32.mxu0 0.0
    %1633 = vmatmul.mubr.f32.gmra.mxu0 %v1511
    %v1634 = vpop.f32.mrf.mxu0
    %v1635 = vadd.f32 0.0, %v1634
    %v1636 = vpop.f32.mrf.mxu0
    %1637 = vmatprep.mubr.f32.mxu0 0.0
    %1638 = vmatmul.mubr.f32.gmra.mxu0 %v1514
    %v1639 = vpop.f32.mrf.mxu0
    %v1640 = vadd.f32 0.0, %v1639
    %v1641 = vpop.f32.mrf.mxu0
    %1642 = vmatprep.mubr.f32.mxu0 0.0
    %1643 = vmatmul.mubr.f32.gmra.mxu0 %v1517
    %v1644 = vpop.f32.mrf.mxu0
    %v1645 = vadd.f32 0.0, %v1644
    %v1646 = vpop.f32.mrf.mxu0
    %1647 = vmatprep.mubr.f32.mxu0 0.0
    %1648 = vmatmul.mubr.f32.gmra.mxu0 %v1520
    %v1649 = vpop.f32.mrf.mxu0
    %v1650 = vadd.f32 0.0, %v1649
    %v1651 = vpop.f32.mrf.mxu0
    %1652 = vmatprep.mubr.f32.mxu0 0.0
    %1653 = vmatmul.mubr.f32.gmra.mxu0 %v1523
    %v1654 = vpop.f32.mrf.mxu0
    %v1655 = vadd.f32 0.0, %v1654
    %v1656 = vpop.f32.mrf.mxu0
    %1657 = vmatprep.mubr.f32.mxu0 0.0
    %1658 = vmatmul.mubr.f32.gmra.mxu0 %v1526
    %v1659 = vpop.f32.mrf.mxu0
    %v1660 = vadd.f32 0.0, %v1659
    %v1661 = vpop.f32.mrf.mxu0
    %1662 = vmatprep.mubr.f32.mxu0 0.0
    %1663 = vmatmul.mubr.f32.gmra.mxu0 %v1529
    %v1664 = vpop.f32.mrf.mxu0
    %v1665 = vadd.f32 0.0, %v1664
    %v1666 = vpop.f32.mrf.mxu0
    %1667 = vmatprep.mubr.f32.mxu0 0.0
    %1668 = vmatmul.mubr.f32.gmra.mxu0 %v1532
    %v1669 = vpop.f32.mrf.mxu0
    %v1670 = vadd.f32 0.0, %v1669
    %v1671 = vpop.f32.mrf.mxu0
    %1672 = vmatprep.mubr.f32.mxu0 0.0
    %1673 = vmatmul.mubr.f32.gmra.mxu0 %v1535
    %v1674 = vpop.f32.mrf.mxu0
    %v1675 = vadd.f32 0.0, %v1674
    %v1676 = vpop.f32.mrf.mxu0
    %1677 = vmatprep.mubr.f32.mxu0 0.0
    %1678 = vmatmul.mubr.f32.gmra.mxu0 %v1538
    %v1679 = vpop.f32.mrf.mxu0
    %v1680 = vadd.f32 0.0, %v1679
    %v1681 = vpop.f32.mrf.mxu0
    %1682 = vmatprep.mubr.f32.mxu0 0.0
    %1683 = vmatmul.mubr.f32.gmra.mxu0 %v1541
    %v1684 = vpop.f32.mrf.mxu0
    %v1685 = vadd.f32 0.0, %v1684
    %v1686 = vpop.f32.mrf.mxu0
    %1687 = vdwg.mxu0
    %v1688 = vmul.f32 %v1610, 0.35355338
    %v1689 = vmul.f32 %v1615, 0.35355338
    %v1690 = vmul.f32 %v1620, 0.35355338
    %v1691 = vmul.f32 %v1625, 0.35355338
    %v1692 = vmul.f32 %v1630, 0.35355338
    %v1693 = vmul.f32 %v1635, 0.35355338
    %v1694 = vmul.f32 %v1640, 0.35355338
    %v1695 = vmul.f32 %v1645, 0.35355338
    %v1696 = vmul.f32 %v1650, 0.35355338
    %v1697 = vmul.f32 %v1655, 0.35355338
    %v1698 = vmul.f32 %v1660, 0.35355338
    %v1699 = vmul.f32 %v1665, 0.35355338
    %v1700 = vmul.f32 %v1670, 0.35355338
    %v1701 = vmul.f32 %v1675, 0.35355338
    %v1702 = vmul.f32 %v1680, 0.35355338
    %v1703 = vmul.f32 %v1685, 0.35355338
    %1704 = vmax.xlane.f32.xlu0 %v1688
    %v1705 = vpop.xlane.xlu0 %1704
    %1706 = vmax.xlane.f32.xlu0 %v1689
    %v1707 = vpop.xlane.xlu0 %1706
    %1708 = vmax.xlane.f32.xlu0 %v1690
    %v1709 = vpop.xlane.xlu0 %1708
    %1710 = vmax.xlane.f32.xlu0 %v1691
    %v1711 = vpop.xlane.xlu0 %1710
    %1712 = vmax.xlane.f32.xlu0 %v1692
    %v1713 = vpop.xlane.xlu0 %1712
    %1714 = vmax.xlane.f32.xlu0 %v1693
    %v1715 = vpop.xlane.xlu0 %1714
    %1716 = vmax.xlane.f32.xlu0 %v1694
    %v1717 = vpop.xlane.xlu0 %1716
    %1718 = vmax.xlane.f32.xlu0 %v1695
    %v1719 = vpop.xlane.xlu0 %1718
    %1720 = vmax.xlane.f32.xlu0 %v1696
    %v1721 = vpop.xlane.xlu0 %1720
    %1722 = vmax.xlane.f32.xlu0 %v1697
    %v1723 = vpop.xlane.xlu0 %1722
    %1724 = vmax.xlane.f32.xlu0 %v1698
    %v1725 = vpop.xlane.xlu0 %1724
    %1726 = vmax.xlane.f32.xlu0 %v1699
    %v1727 = vpop.xlane.xlu0 %1726
    %1728 = vmax.xlane.f32.xlu0 %v1700
    %v1729 = vpop.xlane.xlu0 %1728
    %1730 = vmax.xlane.f32.xlu0 %v1701
    %v1731 = vpop.xlane.xlu0 %1730
    %1732 = vmax.xlane.f32.xlu0 %v1702
    %v1733 = vpop.xlane.xlu0 %1732
    %1734 = vmax.xlane.f32.xlu0 %v1703
    %v1735 = vpop.xlane.xlu0 %1734
    %v1736 = vsub.f32 %v1688, %v1705
    %v1737 = vsub.f32 %v1689, %v1707
    %v1738 = vsub.f32 %v1690, %v1709
    %v1739 = vsub.f32 %v1691, %v1711
    %v1740 = vsub.f32 %v1692, %v1713
    %v1741 = vsub.f32 %v1693, %v1715
    %v1742 = vsub.f32 %v1694, %v1717
    %v1743 = vsub.f32 %v1695, %v1719
    %v1744 = vsub.f32 %v1696, %v1721
    %v1745 = vsub.f32 %v1697, %v1723
    %v1746 = vsub.f32 %v1698, %v1725
    %v1747 = vsub.f32 %v1699, %v1727
    %v1748 = vsub.f32 %v1700, %v1729
    %v1749 = vsub.f32 %v1701, %v1731
    %v1750 = vsub.f32 %v1702, %v1733
    %v1751 = vsub.f32 %v1703, %v1735
    %v1752 = vmul.f32 %v1736, 1.442695
    %v1753 = vpow.pop %v1752
    %v1754 = vmul.f32 %v1737, 1.442695
    %v1755 = vpow.pop %v1754
    %v1756 = vmul.f32 %v1738, 1.442695
    %v1757 = vpow.pop %v1756
    %v1758 = vmul.f32 %v1739, 1.442695
    %v1759 = vpow.pop %v1758
    %v1760 = vmul.f32 %v1740, 1.442695
    %v1761 = vpow.pop %v1760
    %v1762 = vmul.f32 %v1741, 1.442695
    %v1763 = vpow.pop %v1762
    %v1764 = vmul.f32 %v1742, 1.442695
    %v1765 = vpow.pop %v1764
    %v1766 = vmul.f32 %v1743, 1.442695
    %v1767 = vpow.pop %v1766
    %v1768 = vmul.f32 %v1744, 1.442695
    %v1769 = vpow.pop %v1768
    %v1770 = vmul.f32 %v1745, 1.442695
    %v1771 = vpow.pop %v1770
    %v1772 = vmul.f32 %v1746, 1.442695
    %v1773 = vpow.pop %v1772
    %v1774 = vmul.f32 %v1747, 1.442695
    %v1775 = vpow.pop %v1774
    %v1776 = vmul.f32 %v1748, 1.442695
    %v1777 = vpow.pop %v1776
    %v1778 = vmul.f32 %v1749, 1.442695
    %v1779 = vpow.pop %v1778
    %v1780 = vmul.f32 %v1750, 1.442695
    %v1781 = vpow.pop %v1780
    %v1782 = vmul.f32 %v1751, 1.442695
    %v1783 = vpow.pop %v1782
    %1784 = vadd.xlane.f32.xlu0 %v1753
    %v1785 = vpop.xlane.xlu0 %1784
    %1786 = vadd.xlane.f32.xlu0 %v1755
    %v1787 = vpop.xlane.xlu0 %1786
    %1788 = vadd.xlane.f32.xlu0 %v1757
    %v1789 = vpop.xlane.xlu0 %1788
    %1790 = vadd.xlane.f32.xlu0 %v1759
    %v1791 = vpop.xlane.xlu0 %1790
    %1792 = vadd.xlane.f32.xlu0 %v1761
    %v1793 = vpop.xlane.xlu0 %1792
    %1794 = vadd.xlane.f32.xlu0 %v1763
    %v1795 = vpop.xlane.xlu0 %1794
    %1796 = vadd.xlane.f32.xlu0 %v1765
    %v1797 = vpop.xlane.xlu0 %1796
    %1798 = vadd.xlane.f32.xlu0 %v1767
    %v1799 = vpop.xlane.xlu0 %1798
    %1800 = vadd.xlane.f32.xlu0 %v1769
    %v1801 = vpop.xlane.xlu0 %1800
    %1802 = vadd.xlane.f32.xlu0 %v1771
    %v1803 = vpop.xlane.xlu0 %1802
    %1804 = vadd.xlane.f32.xlu0 %v1773
    %v1805 = vpop.xlane.xlu0 %1804
    %1806 = vadd.xlane.f32.xlu0 %v1775
    %v1807 = vpop.xlane.xlu0 %1806
    %1808 = vadd.xlane.f32.xlu0 %v1777
    %v1809 = vpop.xlane.xlu0 %1808
    %1810 = vadd.xlane.f32.xlu0 %v1779
    %v1811 = vpop.xlane.xlu0 %1810
    %1812 = vadd.xlane.f32.xlu0 %v1781
    %v1813 = vpop.xlane.xlu0 %1812
    %1814 = vadd.xlane.f32.xlu0 %v1783
    %v1815 = vpop.xlane.xlu0 %1814
    %v1816 = vrcp.pop %v1785
    %v1817 = vrcp.pop %v1787
    %v1818 = vrcp.pop %v1789
    %v1819 = vrcp.pop %v1791
    %v1820 = vrcp.pop %v1793
    %v1821 = vrcp.pop %v1795
    %v1822 = vrcp.pop %v1797
    %v1823 = vrcp.pop %v1799
    %v1824 = vrcp.pop %v1801
    %v1825 = vrcp.pop %v1803
    %v1826 = vrcp.pop %v1805
    %v1827 = vrcp.pop %v1807
    %v1828 = vrcp.pop %v1809
    %v1829 = vrcp.pop %v1811
    %v1830 = vrcp.pop %v1813
    %v1831 = vrcp.pop %v1815
    %v1832 = vmul.f32 %v1753, %v1816
    %v1833 = vmul.f32 %v1755, %v1817
    %v1834 = vmul.f32 %v1757, %v1818
    %v1835 = vmul.f32 %v1759, %v1819
    %v1836 = vmul.f32 %v1761, %v1820
    %v1837 = vmul.f32 %v1763, %v1821
    %v1838 = vmul.f32 %v1765, %v1822
    %v1839 = vmul.f32 %v1767, %v1823
    %v1840 = vmul.f32 %v1769, %v1824
    %v1841 = vmul.f32 %v1771, %v1825
    %v1842 = vmul.f32 %v1773, %v1826
    %v1843 = vmul.f32 %v1775, %v1827
    %v1844 = vmul.f32 %v1777, %v1828
    %v1845 = vmul.f32 %v1779, %v1829
    %v1846 = vmul.f32 %v1781, %v1830
    %v1847 = vmul.f32 %v1783, %v1831
    %1848 = vmatprep.subr.mxu0 0.0
    %1849 = vmatpush1.xpose.msra.mxu0 %v1847
    %1850 = vmatprep.subr.mxu0 0.0
    %1851 = vmatpush1.xpose.msra.mxu0 %v1846
    %1852 = vmatprep.subr.mxu0 0.0
    %1853 = vmatpush1.xpose.msra.mxu0 %v1845
    %1854 = vmatprep.subr.mxu0 0.0
    %1855 = vmatpush1.xpose.msra.mxu0 %v1844
    %1856 = vmatprep.subr.mxu0 0.0
    %1857 = vmatpush1.xpose.msra.mxu0 %v1843
    %1858 = vmatprep.subr.mxu0 0.0
    %1859 = vmatpush1.xpose.msra.mxu0 %v1842
    %1860 = vmatprep.subr.mxu0 0.0
    %1861 = vmatpush1.xpose.msra.mxu0 %v1841
    %1862 = vmatprep.subr.mxu0 0.0
    %1863 = vmatpush1.xpose.msra.mxu0 %v1840
    %1864 = vmatprep.subr.mxu0 0.0
    %1865 = vmatpush1.xpose.msra.mxu0 %v1839
    %1866 = vmatprep.subr.mxu0 0.0
    %1867 = vmatpush1.xpose.msra.mxu0 %v1838
    %1868 = vmatprep.subr.mxu0 0.0
    %1869 = vmatpush1.xpose.msra.mxu0 %v1837
    %1870 = vmatprep.subr.mxu0 0.0
    %1871 = vmatpush1.xpose.msra.mxu0 %v1836
    %1872 = vmatprep.subr.mxu0 0.0
    %1873 = vmatpush1.xpose.msra.mxu0 %v1835
    %1874 = vmatprep.subr.mxu0 0.0
    %1875 = vmatpush1.xpose.msra.mxu0 %v1834
    %1876 = vmatprep.subr.mxu0 0.0
    %1877 = vmatpush1.xpose.msra.mxu0 %v1833
    %1878 = vmatprep.subr.mxu0 0.0
    %1879 = vmatpush1.xpose.msra.mxu0 %v1832
    %1880 = vmatprep.subr.mxu0 0.0
    %1881 = vmatpush2.xpose.msra.mxu0 0.0
    %1882 = vmatprep.subr.mxu0 0.0
    %1883 = vmatpush2.xpose.msra.mxu0 0.0
    %1884 = vmatprep.subr.mxu0 0.0
    %1885 = vmatpush2.xpose.msra.mxu0 0.0
    %1886 = vmatprep.subr.mxu0 0.0
    %1887 = vmatpush2.xpose.msra.mxu0 0.0
    %1888 = vmatprep.subr.mxu0 0.0
    %1889 = vmatpush2.xpose.msra.mxu0 0.0
    %1890 = vmatprep.subr.mxu0 0.0
    %1891 = vmatpush2.xpose.msra.mxu0 0.0
    %1892 = vmatprep.subr.mxu0 0.0
    %1893 = vmatpush2.xpose.msra.mxu0 0.0
    %1894 = vmatprep.subr.mxu0 0.0
    %1895 = vmatpush2.xpose.msra.mxu0 0.0
    %1896 = vmatprep.subr.mxu0 0.0
    %1897 = vmatpush2.xpose.msra.mxu0 0.0
    %1898 = vmatprep.subr.mxu0 0.0
    %1899 = vmatpush2.xpose.msra.mxu0 0.0
    %1900 = vmatprep.subr.mxu0 0.0
    %1901 = vmatpush2.xpose.msra.mxu0 0.0
    %1902 = vmatprep.subr.mxu0 0.0
    %1903 = vmatpush2.xpose.msra.mxu0 0.0
    %1904 = vmatprep.subr.mxu0 0.0
    %1905 = vmatpush2.xpose.msra.mxu0 0.0
    %1906 = vmatprep.subr.mxu0 0.0
    %1907 = vmatpush2.xpose.msra.mxu0 0.0
    %1908 = vmatprep.subr.mxu0 0.0
    %1909 = vmatpush2.xpose.msra.mxu0 0.0
    %1910 = vmatprep.subr.mxu0 0.0
    %1911 = vmatpush2.xpose.msra.mxu0 0.0
    %1912 = vmatprep.mubr.f32.mxu0 0.0
    %1913 = vmatmul.mubr.f32.gmra.mxu0 %v1461
    %v1914 = vpop.f32.mrf.mxu0
    %v1915 = vadd.f32 0.0, %v1914
    %v1916 = vpop.f32.mrf.mxu0
    %1917 = vdwg.mxu0
    %1918 = vmatprep.subr.mxu0 0.0
    %1919 = vmatpush1.msra.mxu0 0.0
    %1920 = vmatprep.subr.mxu0 0.0
    %1921 = vmatpush1.msra.mxu0 0.0
    %1922 = vmatprep.subr.mxu0 0.0
    %1923 = vmatpush1.msra.mxu0 0.0
    %1924 = vmatprep.subr.mxu0 0.0
    %1925 = vmatpush1.msra.mxu0 0.0
    %1926 = vmatprep.subr.mxu0 0.0
    %1927 = vmatpush1.msra.mxu0 0.0
    %1928 = vmatprep.subr.mxu0 0.0
    %1929 = vmatpush1.msra.mxu0 0.0
    %1930 = vmatprep.subr.mxu0 0.0
    %1931 = vmatpush1.msra.mxu0 0.0
    %1932 = vmatprep.subr.mxu0 0.0
    %1933 = vmatpush1.msra.mxu0 0.0
    %1934 = vmatprep.subr.mxu0 0.0
    %1935 = vmatpush1.msra.mxu0 0.0
    %1936 = vmatprep.subr.mxu0 0.0
    %1937 = vmatpush1.msra.mxu0 0.0
    %1938 = vmatprep.subr.mxu0 0.0
    %1939 = vmatpush1.msra.mxu0 0.0
    %1940 = vmatprep.subr.mxu0 0.0
    %1941 = vmatpush1.msra.mxu0 0.0
    %1942 = vmatprep.subr.mxu0 0.0
    %1943 = vmatpush1.msra.mxu0 0.0
    %1944 = vmatprep.subr.mxu0 0.0
    %1945 = vmatpush1.msra.mxu0 0.0
    %1946 = vmatprep.subr.mxu0 0.0
    %1947 = vmatpush1.msra.mxu0 0.0
    %1948 = vmatprep.subr.mxu0 0.0
    %1949 = vmatpush1.msra.mxu0 %v1461
    %1950 = vmatprep.subr.mxu0 0.0
    %1951 = vmatpush2.msra.mxu0 0.0
    %1952 = vmatprep.subr.mxu0 0.0
    %1953 = vmatpush2.msra.mxu0 0.0
    %1954 = vmatprep.subr.mxu0 0.0
    %1955 = vmatpush2.msra.mxu0 0.0
    %1956 = vmatprep.subr.mxu0 0.0
    %1957 = vmatpush2.msra.mxu0 0.0
    %1958 = vmatprep.subr.mxu0 0.0
    %1959 = vmatpush2.msra.mxu0 0.0
    %1960 = vmatprep.subr.mxu0 0.0
    %1961 = vmatpush2.msra.mxu0 0.0
    %1962 = vmatprep.subr.mxu0 0.0
    %1963 = vmatpush2.msra.mxu0 0.0
    %1964 = vmatprep.subr.mxu0 0.0
    %1965 = vmatpush2.msra.mxu0 0.0
    %1966 = vmatprep.subr.mxu0 0.0
    %1967 = vmatpush2.msra.mxu0 0.0
    %1968 = vmatprep.subr.mxu0 0.0
    %1969 = vmatpush2.msra.mxu0 0.0
    %1970 = vmatprep.subr.mxu0 0.0
    %1971 = vmatpush2.msra.mxu0 0.0
    %1972 = vmatprep.subr.mxu0 0.0
    %1973 = vmatpush2.msra.mxu0 0.0
    %1974 = vmatprep.subr.mxu0 0.0
    %1975 = vmatpush2.msra.mxu0 0.0
    %1976 = vmatprep.subr.mxu0 0.0
    %1977 = vmatpush2.msra.mxu0 0.0
    %1978 = vmatprep.subr.mxu0 0.0
    %1979 = vmatpush2.msra.mxu0 0.0
    %1980 = vmatprep.subr.mxu0 0.0
    %1981 = vmatpush2.msra.mxu0 0.0
    %1982 = vmatprep.mubr.f32.mxu0 0.0
    %1983 = vmatmul.mubr.f32.gmra.mxu0 %v574
    %v1984 = vpop.f32.mrf.mxu0
    %v1985 = vadd.f32 %v561, %v1984
    %v1986 = vpop.f32.mrf.mxu0
    %1987 = vmatprep.mubr.f32.mxu0 0.0
    %1988 = vmatmul.mubr.f32.gmra.mxu0 %v577
    %v1989 = vpop.f32.mrf.mxu0
    %v1990 = vadd.f32 %v566, %v1989
    %v1991 = vpop.f32.mrf.mxu0
    %1992 = vmatprep.mubr.f32.mxu0 0.0
    %1993 = vmatmul.mubr.f32.gmra.mxu0 %v580
    %v1994 = vpop.f32.mrf.mxu0
    %v1995 = vadd.f32 %v571, %v1994
    %v1996 = vpop.f32.mrf.mxu0
    %1997 = vdwg.mxu0
    %v1998 = vxor.u32 %v1990, 2147483648
    %v1999 = vmul.f32 %v1998, 1.442695
    %v2000 = vpow.pop %v1999
    %v2001 = vadd.f32 %v2000, 1.0
    %v2002 = vrcp.pop %v2001
    %v2003 = vmul.f32 1.0, %v2002
    %v2004 = vmul.f32 %v1985, %v2003
    %v2005 = vmax.f32 %v1995, 0.0
    %v2006 = vmul.f32 %v670, %v1462
    %v2007 = vmul.f32 %v672, %v1915
    %v2008 = vadd.f32 %v2006, %v2007
    %v2009 = vmul.f32 %v675, %v2004
    %v2010 = vadd.f32 %v2008, %v2009
    %v2011 = vmul.f32 %v678, %v2005
    %v2012 = vadd.f32 %v2010, %v2011
    %v2013 = vmul.f32 %v681, %v1456
    %v2014 = vmul.f32 %v683, %v1458
    %v2015 = vadd.f32 %v2013, %v2014
    %v2016 = vmul.f32 %v686, %v2012
    %v2017 = vadd.f32 %v2015, %v2016
    %v2018 = vmul.f32 %v2017, 2.0
    %2019 = vxpose.xlu0.b32.start [1/16] %v2017, 128
    %2020 = vxpose.xlu0.b32.cont [2/16] 0.0, 128
    %2021 = vxpose.xlu0.b32.cont [3/16] 0.0, 128
    %2022 = vxpose.xlu0.b32.cont [4/16] 0.0, 128
    %2023 = vxpose.xlu0.b32.cont [5/16] 0.0, 128
    %2024 = vxpose.xlu0.b32.cont [6/16] 0.0, 128
    %2025 = vxpose.xlu0.b32.cont [7/16] 0.0, 128
    %2026 = vxpose.xlu0.b32.cont [8/16] 0.0, 128
    %2027 = vxpose.xlu0.b32.cont [9/16] 0.0, 128
    %2028 = vxpose.xlu0.b32.cont [10/16] 0.0, 128
    %2029 = vxpose.xlu0.b32.cont [11/16] 0.0, 128
    %2030 = vxpose.xlu0.b32.cont [12/16] 0.0, 128
    %2031 = vxpose.xlu0.b32.cont [13/16] 0.0, 128
    %2032 = vxpose.xlu0.b32.cont [14/16] 0.0, 128
    %2033 = vxpose.xlu0.b32.cont [15/16] 0.0, 128
    %2034 = vxpose.xlu0.b32.end [16/16] 0.0, 128
    %v2035 = vpop.trf.xlu0
    %v2036 = vpop.trf.xlu0
    %v2037 = vpop.trf.xlu0
    %v2038 = vpop.trf.xlu0
    %v2039 = vpop.trf.xlu0
    %v2040 = vpop.trf.xlu0
    %v2041 = vpop.trf.xlu0
    %v2042 = vpop.trf.xlu0
    %v2043 = vpop.trf.xlu0
    %v2044 = vpop.trf.xlu0
    %v2045 = vpop.trf.xlu0
    %v2046 = vpop.trf.xlu0
    %v2047 = vpop.trf.xlu0
    %v2048 = vpop.trf.xlu0
    %v2049 = vpop.trf.xlu0
    %v2050 = vpop.trf.xlu0
    %v2052 = vsel %vm134, %v2035, 0
    %v2055 = vsel %vm134, %v2036, 0
    %v2058 = vsel %vm134, %v2037, 0
    %v2061 = vsel %vm134, %v2038, 0
    %v2064 = vsel %vm134, %v2039, 0
    %v2067 = vsel %vm134, %v2040, 0
    %v2070 = vsel %vm134, %v2041, 0
    %v2073 = vsel %vm134, %v2042, 0
    %v2076 = vsel %vm134, %v2043, 0
    %v2079 = vsel %vm134, %v2044, 0
    %v2082 = vsel %vm134, %v2045, 0
    %v2085 = vsel %vm134, %v2046, 0
    %v2088 = vsel %vm134, %v2047, 0
    %v2091 = vsel %vm134, %v2048, 0
    %v2094 = vsel %vm134, %v2049, 0
    %v2097 = vsel %vm134, %v2050, 0
    %2099 = vmatprep.subr.mxu0 0.0
    %2100 = vmatpush1.msra.mxu0 0.0
    %2101 = vmatprep.subr.mxu0 0.0
    %2102 = vmatpush1.msra.mxu0 0.0
    %2103 = vmatprep.subr.mxu0 0.0
    %2104 = vmatpush1.msra.mxu0 0.0
    %2105 = vmatprep.subr.mxu0 0.0
    %2106 = vmatpush1.msra.mxu0 0.0
    %2107 = vmatprep.subr.mxu0 0.0
    %2108 = vmatpush1.msra.mxu0 0.0
    %2109 = vmatprep.subr.mxu0 0.0
    %2110 = vmatpush1.msra.mxu0 0.0
    %2111 = vmatprep.subr.mxu0 0.0
    %2112 = vmatpush1.msra.mxu0 0.0
    %2113 = vmatprep.subr.mxu0 0.0
    %2114 = vmatpush1.msra.mxu0 0.0
    %2115 = vmatprep.subr.mxu0 0.0
    %2116 = vmatpush1.msra.mxu0 0.0
    %2117 = vmatprep.subr.mxu0 0.0
    %2118 = vmatpush1.msra.mxu0 0.0
    %2119 = vmatprep.subr.mxu0 0.0
    %2120 = vmatpush1.msra.mxu0 0.0
    %2121 = vmatprep.subr.mxu0 0.0
    %2122 = vmatpush1.msra.mxu0 0.0
    %2123 = vmatprep.subr.mxu0 0.0
    %2124 = vmatpush1.msra.mxu0 0.0
    %2125 = vmatprep.subr.mxu0 0.0
    %2126 = vmatpush1.msra.mxu0 0.0
    %2127 = vmatprep.subr.mxu0 0.0
    %2128 = vmatpush1.msra.mxu0 0.0
    %2129 = vmatprep.subr.mxu0 0.0
    %2130 = vmatpush1.msra.mxu0 %v2017
    %2131 = vmatprep.subr.mxu0 0.0
    %2132 = vmatpush2.msra.mxu0 0.0
    %2133 = vmatprep.subr.mxu0 0.0
    %2134 = vmatpush2.msra.mxu0 0.0
    %2135 = vmatprep.subr.mxu0 0.0
    %2136 = vmatpush2.msra.mxu0 0.0
    %2137 = vmatprep.subr.mxu0 0.0
    %2138 = vmatpush2.msra.mxu0 0.0
    %2139 = vmatprep.subr.mxu0 0.0
    %2140 = vmatpush2.msra.mxu0 0.0
    %2141 = vmatprep.subr.mxu0 0.0
    %2142 = vmatpush2.msra.mxu0 0.0
    %2143 = vmatprep.subr.mxu0 0.0
    %2144 = vmatpush2.msra.mxu0 0.0
    %2145 = vmatprep.subr.mxu0 0.0
    %2146 = vmatpush2.msra.mxu0 0.0
    %2147 = vmatprep.subr.mxu0 0.0
    %2148 = vmatpush2.msra.mxu0 0.0
    %2149 = vmatprep.subr.mxu0 0.0
    %2150 = vmatpush2.msra.mxu0 0.0
    %2151 = vmatprep.subr.mxu0 0.0
    %2152 = vmatpush2.msra.mxu0 0.0
    %2153 = vmatprep.subr.mxu0 0.0
    %2154 = vmatpush2.msra.mxu0 0.0
    %2155 = vmatprep.subr.mxu0 0.0
    %2156 = vmatpush2.msra.mxu0 0.0
    %2157 = vmatprep.subr.mxu0 0.0
    %2158 = vmatpush2.msra.mxu0 0.0
    %2159 = vmatprep.subr.mxu0 0.0
    %2160 = vmatpush2.msra.mxu0 0.0
    %2161 = vmatprep.subr.mxu0 0.0
    %2162 = vmatpush2.msra.mxu0 0.0
    %2163 = vmatprep.mubr.f32.mxu0 0.0
    %2164 = vmatmul.mubr.f32.gmra.mxu0 %v2052
    %v2165 = vpop.f32.mrf.mxu0
    %v2166 = vadd.f32 0.0, %v2165
    %v2167 = vpop.f32.mrf.mxu0
    %2168 = vmatprep.mubr.f32.mxu0 0.0
    %2169 = vmatmul.mubr.f32.gmra.mxu0 %v2055
    %v2170 = vpop.f32.mrf.mxu0
    %v2171 = vadd.f32 0.0, %v2170
    %v2172 = vpop.f32.mrf.mxu0
    %2173 = vmatprep.mubr.f32.mxu0 0.0
    %2174 = vmatmul.mubr.f32.gmra.mxu0 %v2058
    %v2175 = vpop.f32.mrf.mxu0
    %v2176 = vadd.f32 0.0, %v2175
    %v2177 = vpop.f32.mrf.mxu0
    %2178 = vmatprep.mubr.f32.mxu0 0.0
    %2179 = vmatmul.mubr.f32.gmra.mxu0 %v2061
    %v2180 = vpop.f32.mrf.mxu0
    %v2181 = vadd.f32 0.0, %v2180
    %v2182 = vpop.f32.mrf.mxu0
    %2183 = vmatprep.mubr.f32.mxu0 0.0
    %2184 = vmatmul.mubr.f32.gmra.mxu0 %v2064
    %v2185 = vpop.f32.mrf.mxu0
    %v2186 = vadd.f32 0.0, %v2185
    %v2187 = vpop.f32.mrf.mxu0
    %2188 = vmatprep.mubr.f32.mxu0 0.0
    %2189 = vmatmul.mubr.f32.gmra.mxu0 %v2067
    %v2190 = vpop.f32.mrf.mxu0
    %v2191 = vadd.f32 0.0, %v2190
    %v2192 = vpop.f32.mrf.mxu0
    %2193 = vmatprep.mubr.f32.mxu0 0.0
    %2194 = vmatmul.mubr.f32.gmra.mxu0 %v2070
    %v2195 = vpop.f32.mrf.mxu0
    %v2196 = vadd.f32 0.0, %v2195
    %v2197 = vpop.f32.mrf.mxu0
    %2198 = vmatprep.mubr.f32.mxu0 0.0
    %2199 = vmatmul.mubr.f32.gmra.mxu0 %v2073
    %v2200 = vpop.f32.mrf.mxu0
    %v2201 = vadd.f32 0.0, %v2200
    %v2202 = vpop.f32.mrf.mxu0
    %2203 = vmatprep.mubr.f32.mxu0 0.0
    %2204 = vmatmul.mubr.f32.gmra.mxu0 %v2076
    %v2205 = vpop.f32.mrf.mxu0
    %v2206 = vadd.f32 0.0, %v2205
    %v2207 = vpop.f32.mrf.mxu0
    %2208 = vmatprep.mubr.f32.mxu0 0.0
    %2209 = vmatmul.mubr.f32.gmra.mxu0 %v2079
    %v2210 = vpop.f32.mrf.mxu0
    %v2211 = vadd.f32 0.0, %v2210
    %v2212 = vpop.f32.mrf.mxu0
    %2213 = vmatprep.mubr.f32.mxu0 0.0
    %2214 = vmatmul.mubr.f32.gmra.mxu0 %v2082
    %v2215 = vpop.f32.mrf.mxu0
    %v2216 = vadd.f32 0.0, %v2215
    %v2217 = vpop.f32.mrf.mxu0
    %2218 = vmatprep.mubr.f32.mxu0 0.0
    %2219 = vmatmul.mubr.f32.gmra.mxu0 %v2085
    %v2220 = vpop.f32.mrf.mxu0
    %v2221 = vadd.f32 0.0, %v2220
    %v2222 = vpop.f32.mrf.mxu0
    %2223 = vmatprep.mubr.f32.mxu0 0.0
    %2224 = vmatmul.mubr.f32.gmra.mxu0 %v2088
    %v2225 = vpop.f32.mrf.mxu0
    %v2226 = vadd.f32 0.0, %v2225
    %v2227 = vpop.f32.mrf.mxu0
    %2228 = vmatprep.mubr.f32.mxu0 0.0
    %2229 = vmatmul.mubr.f32.gmra.mxu0 %v2091
    %v2230 = vpop.f32.mrf.mxu0
    %v2231 = vadd.f32 0.0, %v2230
    %v2232 = vpop.f32.mrf.mxu0
    %2233 = vmatprep.mubr.f32.mxu0 0.0
    %2234 = vmatmul.mubr.f32.gmra.mxu0 %v2094
    %v2235 = vpop.f32.mrf.mxu0
    %v2236 = vadd.f32 0.0, %v2235
    %v2237 = vpop.f32.mrf.mxu0
    %2238 = vmatprep.mubr.f32.mxu0 0.0
    %2239 = vmatmul.mubr.f32.gmra.mxu0 %v2097
    %v2240 = vpop.f32.mrf.mxu0
    %v2241 = vadd.f32 0.0, %v2240
    %v2242 = vpop.f32.mrf.mxu0
    %2243 = vdwg.mxu0
    %v2244 = vmul.f32 %v2166, 0.35355338
    %v2245 = vmul.f32 %v2171, 0.35355338
    %v2246 = vmul.f32 %v2176, 0.35355338
    %v2247 = vmul.f32 %v2181, 0.35355338
    %v2248 = vmul.f32 %v2186, 0.35355338
    %v2249 = vmul.f32 %v2191, 0.35355338
    %v2250 = vmul.f32 %v2196, 0.35355338
    %v2251 = vmul.f32 %v2201, 0.35355338
    %v2252 = vmul.f32 %v2206, 0.35355338
    %v2253 = vmul.f32 %v2211, 0.35355338
    %v2254 = vmul.f32 %v2216, 0.35355338
    %v2255 = vmul.f32 %v2221, 0.35355338
    %v2256 = vmul.f32 %v2226, 0.35355338
    %v2257 = vmul.f32 %v2231, 0.35355338
    %v2258 = vmul.f32 %v2236, 0.35355338
    %v2259 = vmul.f32 %v2241, 0.35355338
    %2260 = vmax.xlane.f32.xlu0 %v2244
    %v2261 = vpop.xlane.xlu0 %2260
    %2262 = vmax.xlane.f32.xlu0 %v2245
    %v2263 = vpop.xlane.xlu0 %2262
    %2264 = vmax.xlane.f32.xlu0 %v2246
    %v2265 = vpop.xlane.xlu0 %2264
    %2266 = vmax.xlane.f32.xlu0 %v2247
    %v2267 = vpop.xlane.xlu0 %2266
    %2268 = vmax.xlane.f32.xlu0 %v2248
    %v2269 = vpop.xlane.xlu0 %2268
    %2270 = vmax.xlane.f32.xlu0 %v2249
    %v2271 = vpop.xlane.xlu0 %2270
    %2272 = vmax.xlane.f32.xlu0 %v2250
    %v2273 = vpop.xlane.xlu0 %2272
    %2274 = vmax.xlane.f32.xlu0 %v2251
    %v2275 = vpop.xlane.xlu0 %2274
    %2276 = vmax.xlane.f32.xlu0 %v2252
    %v2277 = vpop.xlane.xlu0 %2276
    %2278 = vmax.xlane.f32.xlu0 %v2253
    %v2279 = vpop.xlane.xlu0 %2278
    %2280 = vmax.xlane.f32.xlu0 %v2254
    %v2281 = vpop.xlane.xlu0 %2280
    %2282 = vmax.xlane.f32.xlu0 %v2255
    %v2283 = vpop.xlane.xlu0 %2282
    %2284 = vmax.xlane.f32.xlu0 %v2256
    %v2285 = vpop.xlane.xlu0 %2284
    %2286 = vmax.xlane.f32.xlu0 %v2257
    %v2287 = vpop.xlane.xlu0 %2286
    %2288 = vmax.xlane.f32.xlu0 %v2258
    %v2289 = vpop.xlane.xlu0 %2288
    %2290 = vmax.xlane.f32.xlu0 %v2259
    %v2291 = vpop.xlane.xlu0 %2290
    %v2292 = vsub.f32 %v2244, %v2261
    %v2293 = vsub.f32 %v2245, %v2263
    %v2294 = vsub.f32 %v2246, %v2265
    %v2295 = vsub.f32 %v2247, %v2267
    %v2296 = vsub.f32 %v2248, %v2269
    %v2297 = vsub.f32 %v2249, %v2271
    %v2298 = vsub.f32 %v2250, %v2273
    %v2299 = vsub.f32 %v2251, %v2275
    %v2300 = vsub.f32 %v2252, %v2277
    %v2301 = vsub.f32 %v2253, %v2279
    %v2302 = vsub.f32 %v2254, %v2281
    %v2303 = vsub.f32 %v2255, %v2283
    %v2304 = vsub.f32 %v2256, %v2285
    %v2305 = vsub.f32 %v2257, %v2287
    %v2306 = vsub.f32 %v2258, %v2289
    %v2307 = vsub.f32 %v2259, %v2291
    %v2308 = vmul.f32 %v2292, 1.442695
    %v2309 = vpow.pop %v2308
    %v2310 = vmul.f32 %v2293, 1.442695
    %v2311 = vpow.pop %v2310
    %v2312 = vmul.f32 %v2294, 1.442695
    %v2313 = vpow.pop %v2312
    %v2314 = vmul.f32 %v2295, 1.442695
    %v2315 = vpow.pop %v2314
    %v2316 = vmul.f32 %v2296, 1.442695
    %v2317 = vpow.pop %v2316
    %v2318 = vmul.f32 %v2297, 1.442695
    %v2319 = vpow.pop %v2318
    %v2320 = vmul.f32 %v2298, 1.442695
    %v2321 = vpow.pop %v2320
    %v2322 = vmul.f32 %v2299, 1.442695
    %v2323 = vpow.pop %v2322
    %v2324 = vmul.f32 %v2300, 1.442695
    %v2325 = vpow.pop %v2324
    %v2326 = vmul.f32 %v2301, 1.442695
    %v2327 = vpow.pop %v2326
    %v2328 = vmul.f32 %v2302, 1.442695
    %v2329 = vpow.pop %v2328
    %v2330 = vmul.f32 %v2303, 1.442695
    %v2331 = vpow.pop %v2330
    %v2332 = vmul.f32 %v2304, 1.442695
    %v2333 = vpow.pop %v2332
    %v2334 = vmul.f32 %v2305, 1.442695
    %v2335 = vpow.pop %v2334
    %v2336 = vmul.f32 %v2306, 1.442695
    %v2337 = vpow.pop %v2336
    %v2338 = vmul.f32 %v2307, 1.442695
    %v2339 = vpow.pop %v2338
    %2340 = vadd.xlane.f32.xlu0 %v2309
    %v2341 = vpop.xlane.xlu0 %2340
    %2342 = vadd.xlane.f32.xlu0 %v2311
    %v2343 = vpop.xlane.xlu0 %2342
    %2344 = vadd.xlane.f32.xlu0 %v2313
    %v2345 = vpop.xlane.xlu0 %2344
    %2346 = vadd.xlane.f32.xlu0 %v2315
    %v2347 = vpop.xlane.xlu0 %2346
    %2348 = vadd.xlane.f32.xlu0 %v2317
    %v2349 = vpop.xlane.xlu0 %2348
    %2350 = vadd.xlane.f32.xlu0 %v2319
    %v2351 = vpop.xlane.xlu0 %2350
    %2352 = vadd.xlane.f32.xlu0 %v2321
    %v2353 = vpop.xlane.xlu0 %2352
    %2354 = vadd.xlane.f32.xlu0 %v2323
    %v2355 = vpop.xlane.xlu0 %2354
    %2356 = vadd.xlane.f32.xlu0 %v2325
    %v2357 = vpop.xlane.xlu0 %2356
    %2358 = vadd.xlane.f32.xlu0 %v2327
    %v2359 = vpop.xlane.xlu0 %2358
    %2360 = vadd.xlane.f32.xlu0 %v2329
    %v2361 = vpop.xlane.xlu0 %2360
    %2362 = vadd.xlane.f32.xlu0 %v2331
    %v2363 = vpop.xlane.xlu0 %2362
    %2364 = vadd.xlane.f32.xlu0 %v2333
    %v2365 = vpop.xlane.xlu0 %2364
    %2366 = vadd.xlane.f32.xlu0 %v2335
    %v2367 = vpop.xlane.xlu0 %2366
    %2368 = vadd.xlane.f32.xlu0 %v2337
    %v2369 = vpop.xlane.xlu0 %2368
    %2370 = vadd.xlane.f32.xlu0 %v2339
    %v2371 = vpop.xlane.xlu0 %2370
    %v2372 = vrcp.pop %v2341
    %v2373 = vrcp.pop %v2343
    %v2374 = vrcp.pop %v2345
    %v2375 = vrcp.pop %v2347
    %v2376 = vrcp.pop %v2349
    %v2377 = vrcp.pop %v2351
    %v2378 = vrcp.pop %v2353
    %v2379 = vrcp.pop %v2355
    %v2380 = vrcp.pop %v2357
    %v2381 = vrcp.pop %v2359
    %v2382 = vrcp.pop %v2361
    %v2383 = vrcp.pop %v2363
    %v2384 = vrcp.pop %v2365
    %v2385 = vrcp.pop %v2367
    %v2386 = vrcp.pop %v2369
    %v2387 = vrcp.pop %v2371
    %v2388 = vmul.f32 %v2309, %v2372
    %v2389 = vmul.f32 %v2311, %v2373
    %v2390 = vmul.f32 %v2313, %v2374
    %v2391 = vmul.f32 %v2315, %v2375
    %v2392 = vmul.f32 %v2317, %v2376
    %v2393 = vmul.f32 %v2319, %v2377
    %v2394 = vmul.f32 %v2321, %v2378
    %v2395 = vmul.f32 %v2323, %v2379
    %v2396 = vmul.f32 %v2325, %v2380
    %v2397 = vmul.f32 %v2327, %v2381
    %v2398 = vmul.f32 %v2329, %v2382
    %v2399 = vmul.f32 %v2331, %v2383
    %v2400 = vmul.f32 %v2333, %v2384
    %v2401 = vmul.f32 %v2335, %v2385
    %v2402 = vmul.f32 %v2337, %v2386
    %v2403 = vmul.f32 %v2339, %v2387
    %2404 = vmatprep.subr.mxu0 0.0
    %2405 = vmatpush1.xpose.msra.mxu0 %v2403
    %2406 = vmatprep.subr.mxu0 0.0
    %2407 = vmatpush1.xpose.msra.mxu0 %v2402
    %2408 = vmatprep.subr.mxu0 0.0
    %2409 = vmatpush1.xpose.msra.mxu0 %v2401
    %2410 = vmatprep.subr.mxu0 0.0
    %2411 = vmatpush1.xpose.msra.mxu0 %v2400
    %2412 = vmatprep.subr.mxu0 0.0
    %2413 = vmatpush1.xpose.msra.mxu0 %v2399
    %2414 = vmatprep.subr.mxu0 0.0
    %2415 = vmatpush1.xpose.msra.mxu0 %v2398
    %2416 = vmatprep.subr.mxu0 0.0
    %2417 = vmatpush1.xpose.msra.mxu0 %v2397
    %2418 = vmatprep.subr.mxu0 0.0
    %2419 = vmatpush1.xpose.msra.mxu0 %v2396
    %2420 = vmatprep.subr.mxu0 0.0
    %2421 = vmatpush1.xpose.msra.mxu0 %v2395
    %2422 = vmatprep.subr.mxu0 0.0
    %2423 = vmatpush1.xpose.msra.mxu0 %v2394
    %2424 = vmatprep.subr.mxu0 0.0
    %2425 = vmatpush1.xpose.msra.mxu0 %v2393
    %2426 = vmatprep.subr.mxu0 0.0
    %2427 = vmatpush1.xpose.msra.mxu0 %v2392
    %2428 = vmatprep.subr.mxu0 0.0
    %2429 = vmatpush1.xpose.msra.mxu0 %v2391
    %2430 = vmatprep.subr.mxu0 0.0
    %2431 = vmatpush1.xpose.msra.mxu0 %v2390
    %2432 = vmatprep.subr.mxu0 0.0
    %2433 = vmatpush1.xpose.msra.mxu0 %v2389
    %2434 = vmatprep.subr.mxu0 0.0
    %2435 = vmatpush1.xpose.msra.mxu0 %v2388
    %2436 = vmatprep.subr.mxu0 0.0
    %2437 = vmatpush2.xpose.msra.mxu0 0.0
    %2438 = vmatprep.subr.mxu0 0.0
    %2439 = vmatpush2.xpose.msra.mxu0 0.0
    %2440 = vmatprep.subr.mxu0 0.0
    %2441 = vmatpush2.xpose.msra.mxu0 0.0
    %2442 = vmatprep.subr.mxu0 0.0
    %2443 = vmatpush2.xpose.msra.mxu0 0.0
    %2444 = vmatprep.subr.mxu0 0.0
    %2445 = vmatpush2.xpose.msra.mxu0 0.0
    %2446 = vmatprep.subr.mxu0 0.0
    %2447 = vmatpush2.xpose.msra.mxu0 0.0
    %2448 = vmatprep.subr.mxu0 0.0
    %2449 = vmatpush2.xpose.msra.mxu0 0.0
    %2450 = vmatprep.subr.mxu0 0.0
    %2451 = vmatpush2.xpose.msra.mxu0 0.0
    %2452 = vmatprep.subr.mxu0 0.0
    %2453 = vmatpush2.xpose.msra.mxu0 0.0
    %2454 = vmatprep.subr.mxu0 0.0
    %2455 = vmatpush2.xpose.msra.mxu0 0.0
    %2456 = vmatprep.subr.mxu0 0.0
    %2457 = vmatpush2.xpose.msra.mxu0 0.0
    %2458 = vmatprep.subr.mxu0 0.0
    %2459 = vmatpush2.xpose.msra.mxu0 0.0
    %2460 = vmatprep.subr.mxu0 0.0
    %2461 = vmatpush2.xpose.msra.mxu0 0.0
    %2462 = vmatprep.subr.mxu0 0.0
    %2463 = vmatpush2.xpose.msra.mxu0 0.0
    %2464 = vmatprep.subr.mxu0 0.0
    %2465 = vmatpush2.xpose.msra.mxu0 0.0
    %2466 = vmatprep.subr.mxu0 0.0
    %2467 = vmatpush2.xpose.msra.mxu0 0.0
    %2468 = vmatprep.mubr.f32.mxu0 0.0
    %2469 = vmatmul.mubr.f32.gmra.mxu0 %v2017
    %v2470 = vpop.f32.mrf.mxu0
    %v2471 = vadd.f32 0.0, %v2470
    %v2472 = vpop.f32.mrf.mxu0
    %2473 = vdwg.mxu0
    %2474 = vmatprep.subr.mxu0 0.0
    %2475 = vmatpush1.msra.mxu0 0.0
    %2476 = vmatprep.subr.mxu0 0.0
    %2477 = vmatpush1.msra.mxu0 0.0
    %2478 = vmatprep.subr.mxu0 0.0
    %2479 = vmatpush1.msra.mxu0 0.0
    %2480 = vmatprep.subr.mxu0 0.0
    %2481 = vmatpush1.msra.mxu0 0.0
    %2482 = vmatprep.subr.mxu0 0.0
    %2483 = vmatpush1.msra.mxu0 0.0
    %2484 = vmatprep.subr.mxu0 0.0
    %2485 = vmatpush1.msra.mxu0 0.0
    %2486 = vmatprep.subr.mxu0 0.0
    %2487 = vmatpush1.msra.mxu0 0.0
    %2488 = vmatprep.subr.mxu0 0.0
    %2489 = vmatpush1.msra.mxu0 0.0
    %2490 = vmatprep.subr.mxu0 0.0
    %2491 = vmatpush1.msra.mxu0 0.0
    %2492 = vmatprep.subr.mxu0 0.0
    %2493 = vmatpush1.msra.mxu0 0.0
    %2494 = vmatprep.subr.mxu0 0.0
    %2495 = vmatpush1.msra.mxu0 0.0
    %2496 = vmatprep.subr.mxu0 0.0
    %2497 = vmatpush1.msra.mxu0 0.0
    %2498 = vmatprep.subr.mxu0 0.0
    %2499 = vmatpush1.msra.mxu0 0.0
    %2500 = vmatprep.subr.mxu0 0.0
    %2501 = vmatpush1.msra.mxu0 0.0
    %2502 = vmatprep.subr.mxu0 0.0
    %2503 = vmatpush1.msra.mxu0 0.0
    %2504 = vmatprep.subr.mxu0 0.0
    %2505 = vmatpush1.msra.mxu0 %v2017
    %2506 = vmatprep.subr.mxu0 0.0
    %2507 = vmatpush2.msra.mxu0 0.0
    %2508 = vmatprep.subr.mxu0 0.0
    %2509 = vmatpush2.msra.mxu0 0.0
    %2510 = vmatprep.subr.mxu0 0.0
    %2511 = vmatpush2.msra.mxu0 0.0
    %2512 = vmatprep.subr.mxu0 0.0
    %2513 = vmatpush2.msra.mxu0 0.0
    %2514 = vmatprep.subr.mxu0 0.0
    %2515 = vmatpush2.msra.mxu0 0.0
    %2516 = vmatprep.subr.mxu0 0.0
    %2517 = vmatpush2.msra.mxu0 0.0
    %2518 = vmatprep.subr.mxu0 0.0
    %2519 = vmatpush2.msra.mxu0 0.0
    %2520 = vmatprep.subr.mxu0 0.0
    %2521 = vmatpush2.msra.mxu0 0.0
    %2522 = vmatprep.subr.mxu0 0.0
    %2523 = vmatpush2.msra.mxu0 0.0
    %2524 = vmatprep.subr.mxu0 0.0
    %2525 = vmatpush2.msra.mxu0 0.0
    %2526 = vmatprep.subr.mxu0 0.0
    %2527 = vmatpush2.msra.mxu0 0.0
    %2528 = vmatprep.subr.mxu0 0.0
    %2529 = vmatpush2.msra.mxu0 0.0
    %2530 = vmatprep.subr.mxu0 0.0
    %2531 = vmatpush2.msra.mxu0 0.0
    %2532 = vmatprep.subr.mxu0 0.0
    %2533 = vmatpush2.msra.mxu0 0.0
    %2534 = vmatprep.subr.mxu0 0.0
    %2535 = vmatpush2.msra.mxu0 0.0
    %2536 = vmatprep.subr.mxu0 0.0
    %2537 = vmatpush2.msra.mxu0 0.0
    %2538 = vmatprep.mubr.f32.mxu0 0.0
    %2539 = vmatmul.mubr.f32.gmra.mxu0 %v1161
    %v2540 = vpop.f32.mrf.mxu0
    %v2541 = vadd.f32 %v1148, %v2540
    %v2542 = vpop.f32.mrf.mxu0
    %2543 = vmatprep.mubr.f32.mxu0 0.0
    %2544 = vmatmul.mubr.f32.gmra.mxu0 %v1164
    %v2545 = vpop.f32.mrf.mxu0
    %v2546 = vadd.f32 %v1153, %v2545
    %v2547 = vpop.f32.mrf.mxu0
    %2548 = vmatprep.mubr.f32.mxu0 0.0
    %2549 = vmatmul.mubr.f32.gmra.mxu0 %v1167
    %v2550 = vpop.f32.mrf.mxu0
    %v2551 = vadd.f32 %v1158, %v2550
    %v2552 = vpop.f32.mrf.mxu0
    %2553 = vdwg.mxu0
    %v2554 = vxor.u32 %v2546, 2147483648
    %v2555 = vmul.f32 %v2554, 1.442695
    %v2556 = vpow.pop %v2555
    %v2557 = vadd.f32 %v2556, 1.0
    %v2558 = vrcp.pop %v2557
    %v2559 = vmul.f32 1.0, %v2558
    %v2560 = vmul.f32 %v2541, %v2559
    %v2561 = vmax.f32 %v2551, 0.0
    %v2562 = vmul.f32 %v1257, %v2018
    %v2563 = vmul.f32 %v1259, %v2471
    %v2564 = vadd.f32 %v2562, %v2563
    %v2565 = vmul.f32 %v1262, %v2560
    %v2566 = vadd.f32 %v2564, %v2565
    %v2567 = vmul.f32 %v1265, %v2561
    %v2568 = vadd.f32 %v2566, %v2567
    %2569 = vmatprep.subr.mxu0 0.0
    %2570 = vmatpush1.msra.mxu0 0.0
    %2571 = vmatprep.subr.mxu0 0.0
    %2572 = vmatpush1.msra.mxu0 0.0
    %2573 = vmatprep.subr.mxu0 0.0
    %2574 = vmatpush1.msra.mxu0 0.0
    %2575 = vmatprep.subr.mxu0 0.0
    %2576 = vmatpush1.msra.mxu0 0.0
    %2577 = vmatprep.subr.mxu0 0.0
    %2578 = vmatpush1.msra.mxu0 0.0
    %2579 = vmatprep.subr.mxu0 0.0
    %2580 = vmatpush1.msra.mxu0 0.0
    %2581 = vmatprep.subr.mxu0 0.0
    %2582 = vmatpush1.msra.mxu0 0.0
    %2583 = vmatprep.subr.mxu0 0.0
    %2584 = vmatpush1.msra.mxu0 0.0
    %2585 = vmatprep.subr.mxu0 0.0
    %2586 = vmatpush1.msra.mxu0 0.0
    %2587 = vmatprep.subr.mxu0 0.0
    %2588 = vmatpush1.msra.mxu0 0.0
    %2589 = vmatprep.subr.mxu0 0.0
    %2590 = vmatpush1.msra.mxu0 0.0
    %2591 = vmatprep.subr.mxu0 0.0
    %2592 = vmatpush1.msra.mxu0 0.0
    %2593 = vmatprep.subr.mxu0 0.0
    %2594 = vmatpush1.msra.mxu0 0.0
    %2595 = vmatprep.subr.mxu0 0.0
    %2596 = vmatpush1.msra.mxu0 0.0
    %2597 = vmatprep.subr.mxu0 0.0
    %2598 = vmatpush1.msra.mxu0 0.0
    %2599 = vmatprep.subr.mxu0 0.0
    %2600 = vmatpush1.msra.mxu0 %v2012
    %2601 = vmatprep.subr.mxu0 0.0
    %2602 = vmatpush2.msra.mxu0 0.0
    %2603 = vmatprep.subr.mxu0 0.0
    %2604 = vmatpush2.msra.mxu0 0.0
    %2605 = vmatprep.subr.mxu0 0.0
    %2606 = vmatpush2.msra.mxu0 0.0
    %2607 = vmatprep.subr.mxu0 0.0
    %2608 = vmatpush2.msra.mxu0 0.0
    %2609 = vmatprep.subr.mxu0 0.0
    %2610 = vmatpush2.msra.mxu0 0.0
    %2611 = vmatprep.subr.mxu0 0.0
    %2612 = vmatpush2.msra.mxu0 0.0
    %2613 = vmatprep.subr.mxu0 0.0
    %2614 = vmatpush2.msra.mxu0 0.0
    %2615 = vmatprep.subr.mxu0 0.0
    %2616 = vmatpush2.msra.mxu0 0.0
    %2617 = vmatprep.subr.mxu0 0.0
    %2618 = vmatpush2.msra.mxu0 0.0
    %2619 = vmatprep.subr.mxu0 0.0
    %2620 = vmatpush2.msra.mxu0 0.0
    %2621 = vmatprep.subr.mxu0 0.0
    %2622 = vmatpush2.msra.mxu0 0.0
    %2623 = vmatprep.subr.mxu0 0.0
    %2624 = vmatpush2.msra.mxu0 0.0
    %2625 = vmatprep.subr.mxu0 0.0
    %2626 = vmatpush2.msra.mxu0 0.0
    %2627 = vmatprep.subr.mxu0 0.0
    %2628 = vmatpush2.msra.mxu0 0.0
    %2629 = vmatprep.subr.mxu0 0.0
    %2630 = vmatpush2.msra.mxu0 0.0
    %2631 = vmatprep.subr.mxu0 0.0
    %2632 = vmatpush2.msra.mxu0 0.0
    %2633 = vmatprep.mubr.f32.mxu0 0.0
    %2634 = vmatmul.mubr.f32.gmra.mxu0 %v1269
    %v2635 = vpop.f32.mrf.mxu0
    %v2636 = vadd.f32 0.0, %v2635
    %v2637 = vpop.f32.mrf.mxu0
    %2638 = vdwg.mxu0
    %v2639 = vadd.f32 %v1344, %v2636
    %2640 = vmatprep.subr.mxu0 0.0
    %2641 = vmatpush1.msra.mxu0 0.0
    %2642 = vmatprep.subr.mxu0 0.0
    %2643 = vmatpush1.msra.mxu0 0.0
    %2644 = vmatprep.subr.mxu0 0.0
    %2645 = vmatpush1.msra.mxu0 0.0
    %2646 = vmatprep.subr.mxu0 0.0
    %2647 = vmatpush1.msra.mxu0 0.0
    %2648 = vmatprep.subr.mxu0 0.0
    %2649 = vmatpush1.msra.mxu0 0.0
    %2650 = vmatprep.subr.mxu0 0.0
    %2651 = vmatpush1.msra.mxu0 0.0
    %2652 = vmatprep.subr.mxu0 0.0
    %2653 = vmatpush1.msra.mxu0 0.0
    %2654 = vmatprep.subr.mxu0 0.0
    %2655 = vmatpush1.msra.mxu0 0.0
    %2656 = vmatprep.subr.mxu0 0.0
    %2657 = vmatpush1.msra.mxu0 0.0
    %2658 = vmatprep.subr.mxu0 0.0
    %2659 = vmatpush1.msra.mxu0 0.0
    %2660 = vmatprep.subr.mxu0 0.0
    %2661 = vmatpush1.msra.mxu0 0.0
    %2662 = vmatprep.subr.mxu0 0.0
    %2663 = vmatpush1.msra.mxu0 0.0
    %2664 = vmatprep.subr.mxu0 0.0
    %2665 = vmatpush1.msra.mxu0 0.0
    %2666 = vmatprep.subr.mxu0 0.0
    %2667 = vmatpush1.msra.mxu0 0.0
    %2668 = vmatprep.subr.mxu0 0.0
    %2669 = vmatpush1.msra.mxu0 0.0
    %2670 = vmatprep.subr.mxu0 0.0
    %2671 = vmatpush1.msra.mxu0 %v2568
    %2672 = vmatprep.subr.mxu0 0.0
    %2673 = vmatpush2.msra.mxu0 0.0
    %2674 = vmatprep.subr.mxu0 0.0
    %2675 = vmatpush2.msra.mxu0 0.0
    %2676 = vmatprep.subr.mxu0 0.0
    %2677 = vmatpush2.msra.mxu0 0.0
    %2678 = vmatprep.subr.mxu0 0.0
    %2679 = vmatpush2.msra.mxu0 0.0
    %2680 = vmatprep.subr.mxu0 0.0
    %2681 = vmatpush2.msra.mxu0 0.0
    %2682 = vmatprep.subr.mxu0 0.0
    %2683 = vmatpush2.msra.mxu0 0.0
    %2684 = vmatprep.subr.mxu0 0.0
    %2685 = vmatpush2.msra.mxu0 0.0
    %2686 = vmatprep.subr.mxu0 0.0
    %2687 = vmatpush2.msra.mxu0 0.0
    %2688 = vmatprep.subr.mxu0 0.0
    %2689 = vmatpush2.msra.mxu0 0.0
    %2690 = vmatprep.subr.mxu0 0.0
    %2691 = vmatpush2.msra.mxu0 0.0
    %2692 = vmatprep.subr.mxu0 0.0
    %2693 = vmatpush2.msra.mxu0 0.0
    %2694 = vmatprep.subr.mxu0 0.0
    %2695 = vmatpush2.msra.mxu0 0.0
    %2696 = vmatprep.subr.mxu0 0.0
    %2697 = vmatpush2.msra.mxu0 0.0
    %2698 = vmatprep.subr.mxu0 0.0
    %2699 = vmatpush2.msra.mxu0 0.0
    %2700 = vmatprep.subr.mxu0 0.0
    %2701 = vmatpush2.msra.mxu0 0.0
    %2702 = vmatprep.subr.mxu0 0.0
    %2703 = vmatpush2.msra.mxu0 0.0
    %2704 = vmatprep.mubr.f32.mxu0 0.0
    %2705 = vmatmul.mubr.f32.gmra.mxu0 %v1348
    %v2706 = vpop.f32.mrf.mxu0
    %v2707 = vadd.f32 0.0, %v2706
    %v2708 = vpop.f32.mrf.mxu0
    %2709 = vdwg.mxu0
    %v2710 = vadd.f32 %v2639, %v2707
    %v2711 = vmax.f32 %v2710, 0.0
    %v2712 = vadd.f32 %v2711, %v1456
    %2713 = vadd.xlane.f32.xlu0 %v2712
    %v2714 = vpop.xlane.xlu0 %2713
    %v2715 = vrot.slane %v2714, 4
    %v2716 = vadd.f32 %v2714, %v2715
    %v2717 = vrot.slane %v2716, 2
    %v2718 = vadd.f32 %v2716, %v2717
    %v2719 = vrot.slane %v2718, 1
    %v2720 = vadd.f32 %v2718, %v2719
    %s2721 = vtos %v2720
    %v2722 = vstv %s2721
    %v2723 = vmul.f32 %v2722, 0.0009765625
    %v2724 = vmul.f32 %v2712, %v2712
    %2725 = vadd.xlane.f32.xlu0 %v2724
    %v2726 = vpop.xlane.xlu0 %2725
    %v2727 = vrot.slane %v2726, 4
    %v2728 = vadd.f32 %v2726, %v2727
    %v2729 = vrot.slane %v2728, 2
    %v2730 = vadd.f32 %v2728, %v2729
    %v2731 = vrot.slane %v2730, 1
    %v2732 = vadd.f32 %v2730, %v2731
    %s2733 = vtos %v2732
    %v2734 = vstv %s2733
    %v2735 = vmul.f32 %v2734, 0.0009765625
    %v2736 = vmul.f32 %v2723, %v2723
    %v2737 = vsub.f32 %v2735, %v2736
    %v2738 = vsub.f32 %v2712, %v2723
    %v2739 = vadd.f32 %v2737, 1e-05
    %v2740 = vrsqrt.pop %v2739
    %v2741 = vmul.f32 %v2738, %v2740
    %v2742 = vmul.f32 %v2741, %v92
    %v2743 = vadd.f32 %v2742, %v93
    %s2744 = scalar_lea.vmem [#allocation7], 8
    %2745 = vst [vmem:[%s2744] sm:$0xff] %v2743
    // Predicated region
    $region50: #{tpu_custom_call.1} parent=1 // pred_check
      _
    $region51: #{tpu_custom_call.1} parent=1 // pred_check_branch
      %2747 = sbr.rel (0) target = $region53
    $region52: #{tpu_custom_call.1} parent=1 // pred_region
      %s2749 = ssub.s32 256, 256
      %2750 = vsyncadd [#allocation3], %s2749
      %s2751 = sshll.u32 [#allocation7], 4
      %s2752 = int_to_ptr.vmem [resolvable:$true] %s2751
      %2757 = dma.vmem_to_hbm [thread:$0]  %s2752, 256, %s10, [#allocation3], 128, 128, 8
    $region53: #{tpu_custom_call.1} parent=1 // pred_fallthru
      _
    // Predicated region
    $region54: #{tpu_custom_call.1} parent=1 // pred_check
      _
    $region55: #{tpu_custom_call.1} parent=1 // pred_check_branch
      %2759 = sbr.rel (0) target = $region57
    $region56: #{tpu_custom_call.1} parent=1 // pred_region
      %2760 = dma.done [#allocation3], 256
    $region57: #{tpu_custom_call.1} parent=1 // pred_fallthru
      _
    %2761 = vsyncpa [#allocation3], 1
    %2762 = vsyncpa [#allocation4], 1
    %2763 = vsyncpa [#allocation6], 1

</llo_original>
